<compile_context>
chip_gen: v7x
topology: tpu7x:2x2x1
jax: 0.10.0
libtpu: 0.0.40
codegen_flags: <defaults>
</compile_context>

<pallas_src>
import jax
import jax.numpy as jnp
from jax.experimental import pallas as pl
from jax.experimental.pallas import tpu as pltpu

H1 = 50      # lstm1 hidden size (logical)
H2 = 10      # lstm2 hidden size (logical)
H1P = 128    # lane-padded per-gate width for lstm1
H2P = 128    # lane-padded per-gate width for lstm2
OUTP = 128   # lane-padded fc2 output width (real output is column 0)


def lstm_head_kernel(maxlen_ref,                          # scalar prefetch (SMEM)
                     x_ref, mask_ref,                     # per-chunk, time-major flat
                     wih1_ref, whh1_ref, b1_ref,          # lstm1 (gate-padded)
                     w2_ref, b2_ref,                      # lstm2 ([wih2; whh2], padded)
                     fc1w_ref, fc1b_ref, fc2w_ref, fc2b_ref,
                     out_ref,                             # (B, OUTP)
                     g1x_ref, h1_ref, c1_ref, h2_ref, c2_ref):
    B = h1_ref.shape[0]
    TC = x_ref.shape[0] // B        # timesteps per chunk (static)
    H1P_ = h1_ref.shape[1]
    H2P_ = h2_ref.shape[1]

    t_chunk = pl.program_id(0)

    # ----- init the carried LSTM state once -----
    @pl.when(t_chunk == 0)
    def _init():
        h1_ref[...] = jnp.zeros_like(h1_ref)
        c1_ref[...] = jnp.zeros_like(c1_ref)
        h2_ref[...] = jnp.zeros_like(h2_ref)
        c2_ref[...] = jnp.zeros_like(c2_ref)

    # ----- recurrence over this time chunk (skip chunks past max(lengths);
    #       the mask would freeze the state there anyway) -----
    @pl.when(t_chunk * TC < maxlen_ref[0])
    def _chunk():
        # Hoisted input projection for the whole chunk, bias folded in:
        # one (TC*B, E) @ (E, 4*H1P) MXU op instead of TC tiny matmuls.
        g1x_ref[...] = (
            jnp.dot(x_ref[...], wih1_ref[...], preferred_element_type=jnp.float32)
            + b1_ref[...])

        whh1 = whh1_ref[...]                                   # (H1P, 4*H1P)
        w2 = w2_ref[...]                                       # (H1P+H2P, 4*H2P)
        b2b = jnp.broadcast_to(b2_ref[...], (B, 4 * H2P_))     # hoisted broadcast

        h1 = h1_ref[...]
        c1 = c1_ref[...]
        h2 = h2_ref[...]
        c2 = c2_ref[...]

        # Fully unrolled time loop (static trip count -> concrete slice offsets).
        for t in range(TC):
            m = mask_ref[pl.ds(t * B, B), :]                   # (B, 1)

            # ---- LSTM layer 1: gates at 128-lane offsets 0/128/256/384 ----
            g1 = g1x_ref[pl.ds(t * B, B), :] + jnp.dot(
                h1, whh1, preferred_element_type=jnp.float32)  # (B, 4*H1P)
            i1 = jax.nn.sigmoid(g1[:, 0 * H1P_:1 * H1P_])
            f1 = jax.nn.sigmoid(g1[:, 1 * H1P_:2 * H1P_])
            u1 = jnp.tanh(g1[:, 2 * H1P_:3 * H1P_])
            o1 = jax.nn.sigmoid(g1[:, 3 * H1P_:4 * H1P_])
            c1n = f1 * c1 + i1 * u1
            h1n = o1 * jnp.tanh(c1n)
            # freeze state past the sequence length (packed-sequence semantics)
            c1 = m * c1n + (1.0 - m) * c1
            h1 = m * h1n + (1.0 - m) * h1

            # ---- LSTM layer 2: fused [h1, h2] @ [wih2; whh2] ----
            g2 = jnp.dot(jnp.concatenate([h1, h2], axis=1), w2,
                         preferred_element_type=jnp.float32) + b2b
            i2 = jax.nn.sigmoid(g2[:, 0 * H2P_:1 * H2P_])
            f2 = jax.nn.sigmoid(g2[:, 1 * H2P_:2 * H2P_])
            u2 = jnp.tanh(g2[:, 2 * H2P_:3 * H2P_])
            o2 = jax.nn.sigmoid(g2[:, 3 * H2P_:4 * H2P_])
            c2n = f2 * c2 + i2 * u2
            h2n = o2 * jnp.tanh(c2n)
            c2 = m * c2n + (1.0 - m) * c2
            h2 = m * h2n + (1.0 - m) * h2

        h1_ref[...] = h1
        c1_ref[...] = c1
        h2_ref[...] = h2
        c2_ref[...] = c2

    # ----- epilogue on the last chunk: (dropout=id) fc1 -> relu -> fc2,
    #       lane-dense (B, 128) store (real output in column 0) -----
    @pl.when(t_chunk == pl.num_programs(0) - 1)
    def _epilogue():
        h2 = h2_ref[...]
        y = jnp.dot(h2, fc1w_ref[...], preferred_element_type=jnp.float32) + fc1b_ref[...]
        y = jnp.maximum(y, 0.0)
        out = jnp.dot(y, fc2w_ref[...], preferred_element_type=jnp.float32) + fc2b_ref[...]
        out_ref[...] = out


# ----------------------- weight packing (pad gates to 128-lane slabs) ------------
def _pad_gated(w, rows_pad, h, h_pad):
    """(rows, 4*h) -> (rows_pad, 4*h_pad); gate k moved to lanes [k*h_pad, k*h_pad+h)."""
    rows = w.shape[0]
    out = jnp.zeros((rows_pad, 4 * h_pad), jnp.float32)
    for k in range(4):
        out = out.at[:rows, k * h_pad:k * h_pad + h].set(w[:, k * h:(k + 1) * h])
    return out


def pack_params(params):
    E = params["wih1"].shape[0]
    wih1_p = _pad_gated(params["wih1"], E, H1, H1P)             # (E, 4*H1P)
    whh1_p = _pad_gated(params["whh1"], H1P, H1, H1P)           # (H1P, 4*H1P)
    b1_p = _pad_gated(params["b1"], 1, H1, H1P)                 # (1, 4*H1P)
    wih2_p = _pad_gated(params["wih2"], H1P, H2, H2P)           # (H1P, 4*H2P)
    whh2_p = _pad_gated(params["whh2"], H2P, H2, H2P)           # (H2P, 4*H2P)
    w2_p = jnp.concatenate([wih2_p, whh2_p], axis=0)            # (H1P+H2P, 4*H2P)
    b2_p = _pad_gated(params["b2"], 1, H2, H2P)                 # (1, 4*H2P)

    fc1w_p = jnp.zeros((H2P, H2P), jnp.float32).at[:H2, :H2].set(params["fc1w"])
    fc1b_p = jnp.zeros((1, H2P), jnp.float32).at[:, :H2].set(params["fc1b"])
    fc2w_p = jnp.zeros((H2P, OUTP), jnp.float32).at[:H2, :1].set(params["fc2w"])
    fc2b_p = jnp.zeros((1, OUTP), jnp.float32).at[:, :1].set(params["fc2b"])
    return dict(wih1=wih1_p, whh1=whh1_p, b1=b1_p, w2=w2_p, b2=b2_p,
                fc1w=fc1w_p, fc1b=fc1b_p, fc2w=fc2w_p, fc2b=fc2b_p)


# ----------------------------- wrapper -------------------------------------------
def text_model_hidden_forward(tokens, lengths, params, *, time_chunk=8):
    """tokens: (B, T) int32, lengths: (B,) int32 -> (B, 1) float32."""
    B, T = tokens.shape
    emb = params["embedding"]
    E = emb.shape[1]

    # TODO(synk): fuse the embedding gather + time-major flatten into the kernel
    # (scalar-prefetch token ids, gather per chunk) to avoid materializing the
    # embedded sequence in HBM.
    x = jnp.take(emb, tokens, axis=0).astype(jnp.float32)        # (B, T, E)
    x_tm = jnp.transpose(x, (1, 0, 2))                           # (T, B, E) time-major
    mask = (jnp.arange(T)[:, None] < lengths[None, :]).astype(jnp.float32)  # (T, B)

    TC = int(min(time_chunk, T))
    T_pad = -(-T // TC) * TC
    if T_pad != T:                                               # padded tail is masked
        x_tm = jnp.pad(x_tm, ((0, T_pad - T), (0, 0), (0, 0)))
        mask = jnp.pad(mask, ((0, T_pad - T), (0, 0)))
    num_chunks = T_pad // TC
    assert num_chunks == 1 or (TC * B) % 8 == 0, \
        "time_chunk * batch must be a multiple of 8 when using multiple chunks"

    x_flat = x_tm.reshape(T_pad * B, E)                          # (T*B, E) flat
    mask_flat = mask.reshape(T_pad * B, 1)                       # (T*B, 1)

    kp = pack_params(params)
    max_len = jnp.max(lengths).astype(jnp.int32)[None]           # (1,) SMEM prefetch

    grid_spec = pltpu.PrefetchScalarGridSpec(
        num_scalar_prefetch=1,
        grid=(num_chunks,),
        in_specs=[
            pl.BlockSpec((TC * B, E), lambda t, ml: (t, 0)),            # x chunk
            pl.BlockSpec((TC * B, 1), lambda t, ml: (t, 0)),            # mask chunk
            pl.BlockSpec((E, 4 * H1P), lambda t, ml: (0, 0)),           # wih1
            pl.BlockSpec((H1P, 4 * H1P), lambda t, ml: (0, 0)),         # whh1
            pl.BlockSpec((1, 4 * H1P), lambda t, ml: (0, 0)),           # b1
            pl.BlockSpec((H1P + H2P, 4 * H2P), lambda t, ml: (0, 0)),   # [wih2; whh2]
            pl.BlockSpec((1, 4 * H2P), lambda t, ml: (0, 0)),           # b2
            pl.BlockSpec((H2P, H2P), lambda t, ml: (0, 0)),             # fc1w
            pl.BlockSpec((1, H2P), lambda t, ml: (0, 0)),               # fc1b
            pl.BlockSpec((H2P, OUTP), lambda t, ml: (0, 0)),            # fc2w
            pl.BlockSpec((1, OUTP), lambda t, ml: (0, 0)),              # fc2b
        ],
        out_specs=pl.BlockSpec((B, OUTP), lambda t, ml: (0, 0)),
        scratch_shapes=[
            pltpu.VMEM((TC * B, 4 * H1P), jnp.float32),  # hoisted input projection
            pltpu.VMEM((B, H1P), jnp.float32),           # h1 carry
            pltpu.VMEM((B, H1P), jnp.float32),           # c1 carry
            pltpu.VMEM((B, H2P), jnp.float32),           # h2 carry
            pltpu.VMEM((B, H2P), jnp.float32),           # c2 carry
        ],
    )

    out_padded = pl.pallas_call(
        lstm_head_kernel,
        out_shape=jax.ShapeDtypeStruct((B, OUTP), jnp.float32),
        grid_spec=grid_spec,
        compiler_params=pltpu.CompilerParams(
            dimension_semantics=("arbitrary",),   # serial recurrence over time
            vmem_limit_bytes=32 * 1024 * 1024,
        ),
    )(max_len, x_flat, mask_flat,
      kp["wih1"], kp["whh1"], kp["b1"], kp["w2"], kp["b2"],
      kp["fc1w"], kp["fc1b"], kp["fc2w"], kp["fc2b"])

    return out_padded[:, :1]


# ----------------------- pure-JAX reference (for checking) -----------------------
def reference_forward(tokens, lengths, params):
    B, T = tokens.shape
    x = jnp.take(params["embedding"], tokens, axis=0).astype(jnp.float32)
    mask = (jnp.arange(T)[None, :] < lengths[:, None]).astype(jnp.float32)  # (B, T)

    def lstm_cell(h, c, x_t, m_t, wih, whh, b, H):
        g = x_t @ wih + h @ whh + b
        i = jax.nn.sigmoid(g[:, 0:H])
        f = jax.nn.sigmoid(g[:, H:2 * H])
        gg = jnp.tanh(g[:, 2 * H:3 * H])
        o = jax.nn.sigmoid(g[:, 3 * H:4 * H])
        cn = f * c + i * gg
        hn = o * jnp.tanh(cn)
        c = m_t * cn + (1.0 - m_t) * c
        h = m_t * hn + (1.0 - m_t) * h
        return h, c

    h1 = jnp.zeros((B, H1)); c1 = jnp.zeros((B, H1))
    h2 = jnp.zeros((B, H2)); c2 = jnp.zeros((B, H2))
    for t in range(T):
        m_t = mask[:, t:t + 1]
        h1, c1 = lstm_cell(h1, c1, x[:, t, :], m_t,
                           params["wih1"], params["whh1"], params["b1"], H1)
        h2, c2 = lstm_cell(h2, c2, h1, m_t,
                           params["wih2"], params["whh2"], params["b2"], H2)
    y = jnp.maximum(h2 @ params["fc1w"] + params["fc1b"], 0.0)
    return y @ params["fc2w"] + params["fc2b"]


def init_params(key, vocab_size, embedding_dim):
    ks = jax.random.split(key, 11)
    s1 = 1.0 / jnp.sqrt(jnp.float32(H1))
    s2 = 1.0 / jnp.sqrt(jnp.float32(H2))

    def u(k, shape, s):
        return jax.random.uniform(k, shape, jnp.float32, -s, s)

    return {
        "embedding": jax.random.normal(ks[0], (vocab_size, embedding_dim), jnp.float32),
        # LSTM1 (stored transposed relative to PyTorch: (in, 4*hidden), gates i,f,g,o)
        "wih1": u(ks[1], (embedding_dim, 4 * H1), s1),
        "whh1": u(ks[2], (H1, 4 * H1), s1),
        "b1":   u(ks[3], (1, 4 * H1), s1),      # = b_ih + b_hh combined
        # LSTM2
        "wih2": u(ks[4], (H1, 4 * H2), s2),
        "whh2": u(ks[5], (H2, 4 * H2), s2),
        "b2":   u(ks[6], (1, 4 * H2), s2),
        # heads (stored as (in, out) so kernel does act @ W)
        "fc1w": u(ks[7], (H2, H2), s2),
        "fc1b": u(ks[8], (1, H2), s2),
        "fc2w": u(ks[9], (H2, 1), s2),
        "fc2b": u(ks[10], (1, 1), s2),
    }


if __name__ == "__main__":
    key = jax.random.PRNGKey(0)
    k_tok, k_par = jax.random.split(key)

    vocab_size, embedding_dim = 20, 32
    B, T = 2, 8
    tokens = jax.random.randint(k_tok, (B, T), 0, vocab_size, dtype=jnp.int32)
    lengths = jnp.array([8, 5], dtype=jnp.int32)

    params = init_params(k_par, vocab_size, embedding_dim)

    out = jax.block_until_ready(text_model_hidden_forward(tokens, lengths, params))
    ref = jax.block_until_ready(reference_forward(tokens, lengths, params))

    assert out.shape == (B, 1)
    assert jnp.allclose(out, ref, atol=1e-5, rtol=1e-5), (out, ref)

    print("KERNEL_OK")
</pallas_src>

<mosaic_0001>
module attributes {stable_mosaic.version = 11 : i64} {
  func.func @lstm_head_kernel(%arg0: i32, %arg1: memref<1xi32, #tpu.memory_space<smem>>, %arg2: memref<16x32xf32, #tpu.memory_space<vmem>>, %arg3: memref<16x1xf32, #tpu.memory_space<vmem>>, %arg4: memref<32x512xf32, #tpu.memory_space<vmem>>, %arg5: memref<128x512xf32, #tpu.memory_space<vmem>>, %arg6: memref<1x512xf32, #tpu.memory_space<vmem>>, %arg7: memref<256x512xf32, #tpu.memory_space<vmem>>, %arg8: memref<1x512xf32, #tpu.memory_space<vmem>>, %arg9: memref<128x128xf32, #tpu.memory_space<vmem>>, %arg10: memref<1x128xf32, #tpu.memory_space<vmem>>, %arg11: memref<128x128xf32, #tpu.memory_space<vmem>>, %arg12: memref<1x128xf32, #tpu.memory_space<vmem>>, %arg13: memref<2x128xf32, #tpu.memory_space<vmem>>, %arg14: memref<16x512xf32, #tpu.memory_space<vmem>>, %arg15: memref<2x128xf32, #tpu.memory_space<vmem>>, %arg16: memref<2x128xf32, #tpu.memory_space<vmem>>, %arg17: memref<2x128xf32, #tpu.memory_space<vmem>>, %arg18: memref<2x128xf32, #tpu.memory_space<vmem>>) attributes {dimension_semantics = [#tpu.dimension_semantics<arbitrary>], iteration_bounds = array<i64: 1>, scalar_prefetch = 1 : i64, scratch_operands = 5 : i64, tpu.core_type = #tpu.core_type<tc>, window_params = [{transform_indices = @transform_0, window_bounds = array<i64: 16, 32>}, {transform_indices = @transform_1, window_bounds = array<i64: 16, 1>}, {pipeline_mode = #tpu.pipeline_mode<synchronous>, transform_indices = @transform_2, window_bounds = array<i64: 32, 512>}, {pipeline_mode = #tpu.pipeline_mode<synchronous>, transform_indices = @transform_3, window_bounds = array<i64: 128, 512>}, {pipeline_mode = #tpu.pipeline_mode<synchronous>, transform_indices = @transform_4, window_bounds = array<i64: 1, 512>}, {pipeline_mode = #tpu.pipeline_mode<synchronous>, transform_indices = @transform_5, window_bounds = array<i64: 256, 512>}, {pipeline_mode = #tpu.pipeline_mode<synchronous>, transform_indices = @transform_6, window_bounds = array<i64: 1, 512>}, {pipeline_mode = #tpu.pipeline_mode<synchronous>, transform_indices = @transform_7, window_bounds = array<i64: 128, 128>}, {pipeline_mode = #tpu.pipeline_mode<synchronous>, transform_indices = @transform_8, window_bounds = array<i64: 1, 128>}, {pipeline_mode = #tpu.pipeline_mode<synchronous>, transform_indices = @transform_9, window_bounds = array<i64: 128, 128>}, {pipeline_mode = #tpu.pipeline_mode<synchronous>, transform_indices = @transform_10, window_bounds = array<i64: 1, 128>}, {pipeline_mode = #tpu.pipeline_mode<synchronous>, transform_indices = @transform_11, window_bounds = array<i64: 2, 128>}]} {
    %c0_i32 = arith.constant 0 : i32
    %0 = arith.cmpi eq, %arg0, %c0_i32 : i32
    %1 = arith.extui %0 : i1 to i32
    %c0_i32_0 = arith.constant 0 : i32
    %2 = arith.cmpi ne, %1, %c0_i32_0 : i32
    scf.if %2 {
      %cst = arith.constant 0.000000e+00 : f32
      %11 = vector.broadcast %cst : f32 to vector<2x128xf32>
      %c0_4 = arith.constant 0 : index
      %c0_5 = arith.constant 0 : index
      %12 = vector.load %arg15[%c0_4, %c0_5] : memref<2x128xf32, #tpu.memory_space<vmem>>, vector<2x128xf32>
      tpu.vector_store %arg15[%c0_4, %c0_5], %11 {strides = array<i32>} : memref<2x128xf32, #tpu.memory_space<vmem>>, vector<2x128xf32>,
      %cst_6 = arith.constant 0.000000e+00 : f32
      %13 = vector.broadcast %cst_6 : f32 to vector<2x128xf32>
      %c0_7 = arith.constant 0 : index
      %c0_8 = arith.constant 0 : index
      %14 = vector.load %arg16[%c0_7, %c0_8] : memref<2x128xf32, #tpu.memory_space<vmem>>, vector<2x128xf32>
      tpu.vector_store %arg16[%c0_7, %c0_8], %13 {strides = array<i32>} : memref<2x128xf32, #tpu.memory_space<vmem>>, vector<2x128xf32>,
      %cst_9 = arith.constant 0.000000e+00 : f32
      %15 = vector.broadcast %cst_9 : f32 to vector<2x128xf32>
      %c0_10 = arith.constant 0 : index
      %c0_11 = arith.constant 0 : index
      %16 = vector.load %arg17[%c0_10, %c0_11] : memref<2x128xf32, #tpu.memory_space<vmem>>, vector<2x128xf32>
      tpu.vector_store %arg17[%c0_10, %c0_11], %15 {strides = array<i32>} : memref<2x128xf32, #tpu.memory_space<vmem>>, vector<2x128xf32>,
      %cst_12 = arith.constant 0.000000e+00 : f32
      %17 = vector.broadcast %cst_12 : f32 to vector<2x128xf32>
      %c0_13 = arith.constant 0 : index
      %c0_14 = arith.constant 0 : index
      %18 = vector.load %arg18[%c0_13, %c0_14] : memref<2x128xf32, #tpu.memory_space<vmem>>, vector<2x128xf32>
      tpu.vector_store %arg18[%c0_13, %c0_14], %17 {strides = array<i32>} : memref<2x128xf32, #tpu.memory_space<vmem>>, vector<2x128xf32>,
    } else {
    }
    %c8_i32 = arith.constant 8 : i32
    %3 = arith.muli %arg0, %c8_i32 : i32
    %c0 = arith.constant 0 : index
    %4 = memref.load %arg1[%c0] : memref<1xi32, #tpu.memory_space<smem>>
    %5 = arith.cmpi slt, %3, %4 : i32
    %6 = arith.extui %5 : i1 to i32
    %c0_i32_1 = arith.constant 0 : i32
    %7 = arith.cmpi ne, %6, %c0_i32_1 : i32
    scf.if %7 {
      %c0_4 = arith.constant 0 : index
      %c0_5 = arith.constant 0 : index
      %11 = vector.load %arg2[%c0_4, %c0_5] : memref<16x32xf32, #tpu.memory_space<vmem>>, vector<16x32xf32>
      %c0_6 = arith.constant 0 : index
      %c0_7 = arith.constant 0 : index
      %12 = vector.load %arg4[%c0_6, %c0_7] : memref<32x512xf32, #tpu.memory_space<vmem>>, vector<32x512xf32>
      %cst = arith.constant dense<0.000000e+00> : vector<16x512xf32>
      %13 = tpu.matmul %11, %12, %cst {dimension_numbers = #tpu.dot_dimension_numbers<[1], [0], [0], [1], [0, 0, 1, 1], [], []>} : vector<16x32xf32>, vector<32x512xf32>, vector<16x512xf32> -> vector<16x512xf32>
      %c0_8 = arith.constant 0 : index
      %c0_9 = arith.constant 0 : index
      %14 = vector.load %arg6[%c0_8, %c0_9] : memref<1x512xf32, #tpu.memory_space<vmem>>, vector<1x512xf32>
      %15 = vector.broadcast %14 : vector<1x512xf32> to vector<16x512xf32>
      %16 = arith.addf %13, %15 : vector<16x512xf32>
      %c0_10 = arith.constant 0 : index
      %c0_11 = arith.constant 0 : index
      %17 = vector.load %arg14[%c0_10, %c0_11] : memref<16x512xf32, #tpu.memory_space<vmem>>, vector<16x512xf32>
      tpu.vector_store %arg14[%c0_10, %c0_11], %16 {strides = array<i32>} : memref<16x512xf32, #tpu.memory_space<vmem>>, vector<16x512xf32>,
      %c0_12 = arith.constant 0 : index
      %c0_13 = arith.constant 0 : index
      %18 = vector.load %arg5[%c0_12, %c0_13] : memref<128x512xf32, #tpu.memory_space<vmem>>, vector<128x512xf32>
      %c0_14 = arith.constant 0 : index
      %c0_15 = arith.constant 0 : index
      %19 = vector.load %arg7[%c0_14, %c0_15] : memref<256x512xf32, #tpu.memory_space<vmem>>, vector<256x512xf32>
      %c0_16 = arith.constant 0 : index
      %c0_17 = arith.constant 0 : index
      %20 = vector.load %arg8[%c0_16, %c0_17] : memref<1x512xf32, #tpu.memory_space<vmem>>, vector<1x512xf32>
      %21 = vector.shape_cast %20 : vector<1x512xf32> to vector<1x512xf32>
      %22 = vector.broadcast %21 : vector<1x512xf32> to vector<2x512xf32>
      %c0_18 = arith.constant 0 : index
      %c0_19 = arith.constant 0 : index
      %23 = vector.load %arg15[%c0_18, %c0_19] : memref<2x128xf32, #tpu.memory_space<vmem>>, vector<2x128xf32>
      %c0_20 = arith.constant 0 : index
      %c0_21 = arith.constant 0 : index
      %24 = vector.load %arg16[%c0_20, %c0_21] : memref<2x128xf32, #tpu.memory_space<vmem>>, vector<2x128xf32>
      %c0_22 = arith.constant 0 : index
      %c0_23 = arith.constant 0 : index
      %25 = vector.load %arg17[%c0_22, %c0_23] : memref<2x128xf32, #tpu.memory_space<vmem>>, vector<2x128xf32>
      %c0_24 = arith.constant 0 : index
      %c0_25 = arith.constant 0 : index
      %26 = vector.load %arg18[%c0_24, %c0_25] : memref<2x128xf32, #tpu.memory_space<vmem>>, vector<2x128xf32>
      %c0_26 = arith.constant 0 : index
      %c0_27 = arith.constant 0 : index
      %27 = vector.load %arg3[%c0_26, %c0_27] : memref<16x1xf32, #tpu.memory_space<vmem>>, vector<2x1xf32>
      %c0_28 = arith.constant 0 : index
      %c0_29 = arith.constant 0 : index
      %28 = vector.load %arg14[%c0_28, %c0_29] : memref<16x512xf32, #tpu.memory_space<vmem>>, vector<2x512xf32>
      %cst_30 = arith.constant dense<0.000000e+00> : vector<2x512xf32>
      %29 = tpu.matmul %23, %18, %cst_30 {dimension_numbers = #tpu.dot_dimension_numbers<[1], [0], [0], [1], [0, 0, 1, 1], [], []>} : vector<2x128xf32>, vector<128x512xf32>, vector<2x512xf32> -> vector<2x512xf32>
      %30 = arith.addf %28, %29 : vector<2x512xf32>
      %31 = vector.extract_strided_slice %30 {offsets = [0, 0], sizes = [2, 128], strides = [1, 1]} : vector<2x512xf32> to vector<2x128xf32>
      %32 = arith.negf %31 : vector<2x128xf32>
      %33 = math.exp %32 : vector<2x128xf32>
      %cst_31 = arith.constant 1.000000e+00 : f32
      %34 = vector.broadcast %cst_31 : f32 to vector<2x128xf32>
      %35 = arith.addf %34, %33 : vector<2x128xf32>
      %36 = arith.divf %34, %35 : vector<2x128xf32>
      %37 = vector.extract_strided_slice %30 {offsets = [0, 128], sizes = [2, 128], strides = [1, 1]} : vector<2x512xf32> to vector<2x128xf32>
      %38 = arith.negf %37 : vector<2x128xf32>
      %39 = math.exp %38 : vector<2x128xf32>
      %cst_32 = arith.constant 1.000000e+00 : f32
      %40 = vector.broadcast %cst_32 : f32 to vector<2x128xf32>
      %41 = arith.addf %40, %39 : vector<2x128xf32>
      %42 = arith.divf %40, %41 : vector<2x128xf32>
      %43 = vector.extract_strided_slice %30 {offsets = [0, 256], sizes = [2, 128], strides = [1, 1]} : vector<2x512xf32> to vector<2x128xf32>
      %44 = math.tanh %43 : vector<2x128xf32>
      %45 = vector.extract_strided_slice %30 {offsets = [0, 384], sizes = [2, 128], strides = [1, 1]} : vector<2x512xf32> to vector<2x128xf32>
      %46 = arith.negf %45 : vector<2x128xf32>
      %47 = math.exp %46 : vector<2x128xf32>
      %cst_33 = arith.constant 1.000000e+00 : f32
      %48 = vector.broadcast %cst_33 : f32 to vector<2x128xf32>
      %49 = arith.addf %48, %47 : vector<2x128xf32>
      %50 = arith.divf %48, %49 : vector<2x128xf32>
      %51 = arith.mulf %42, %24 : vector<2x128xf32>
      %52 = arith.mulf %36, %44 : vector<2x128xf32>
      %53 = arith.addf %51, %52 : vector<2x128xf32>
      %54 = math.tanh %53 : vector<2x128xf32>
      %55 = arith.mulf %50, %54 : vector<2x128xf32>
      %56 = vector.broadcast %27 : vector<2x1xf32> to vector<2x128xf32>
      %57 = arith.mulf %56, %53 : vector<2x128xf32>
      %cst_34 = arith.constant 1.000000e+00 : f32
      %58 = vector.broadcast %cst_34 : f32 to vector<2x1xf32>
      %59 = arith.subf %58, %27 : vector<2x1xf32>
      %60 = vector.broadcast %59 : vector<2x1xf32> to vector<2x128xf32>
      %61 = arith.mulf %60, %24 : vector<2x128xf32>
      %62 = arith.addf %57, %61 : vector<2x128xf32>
      %63 = vector.broadcast %27 : vector<2x1xf32> to vector<2x128xf32>
      %64 = arith.mulf %63, %55 : vector<2x128xf32>
      %cst_35 = arith.constant 1.000000e+00 : f32
      %65 = vector.broadcast %cst_35 : f32 to vector<2x1xf32>
      %66 = arith.subf %65, %27 : vector<2x1xf32>
      %67 = vector.broadcast %66 : vector<2x1xf32> to vector<2x128xf32>
      %68 = arith.mulf %67, %23 : vector<2x128xf32>
      %69 = arith.addf %64, %68 : vector<2x128xf32>
      %70 = tpu.concatenate %69, %25 in 1 : vector<2x128xf32>, vector<2x128xf32> -> vector<2x256xf32>
      %cst_36 = arith.constant dense<0.000000e+00> : vector<2x512xf32>
      %71 = tpu.matmul %70, %19, %cst_36 {dimension_numbers = #tpu.dot_dimension_numbers<[1], [0], [0], [1], [0, 0, 1, 1], [], []>} : vector<2x256xf32>, vector<256x512xf32>, vector<2x512xf32> -> vector<2x512xf32>
      %72 = arith.addf %71, %22 : vector<2x512xf32>
      %73 = vector.extract_strided_slice %72 {offsets = [0, 0], sizes = [2, 128], strides = [1, 1]} : vector<2x512xf32> to vector<2x128xf32>
      %74 = arith.negf %73 : vector<2x128xf32>
      %75 = math.exp %74 : vector<2x128xf32>
      %cst_37 = arith.constant 1.000000e+00 : f32
      %76 = vector.broadcast %cst_37 : f32 to vector<2x128xf32>
      %77 = arith.addf %76, %75 : vector<2x128xf32>
      %78 = arith.divf %76, %77 : vector<2x128xf32>
      %79 = vector.extract_strided_slice %72 {offsets = [0, 128], sizes = [2, 128], strides = [1, 1]} : vector<2x512xf32> to vector<2x128xf32>
      %80 = arith.negf %79 : vector<2x128xf32>
      %81 = math.exp %80 : vector<2x128xf32>
      %cst_38 = arith.constant 1.000000e+00 : f32
      %82 = vector.broadcast %cst_38 : f32 to vector<2x128xf32>
      %83 = arith.addf %82, %81 : vector<2x128xf32>
      %84 = arith.divf %82, %83 : vector<2x128xf32>
      %85 = vector.extract_strided_slice %72 {offsets = [0, 256], sizes = [2, 128], strides = [1, 1]} : vector<2x512xf32> to vector<2x128xf32>
      %86 = math.tanh %85 : vector<2x128xf32>
      %87 = vector.extract_strided_slice %72 {offsets = [0, 384], sizes = [2, 128], strides = [1, 1]} : vector<2x512xf32> to vector<2x128xf32>
      %88 = arith.negf %87 : vector<2x128xf32>
      %89 = math.exp %88 : vector<2x128xf32>
      %cst_39 = arith.constant 1.000000e+00 : f32
      %90 = vector.broadcast %cst_39 : f32 to vector<2x128xf32>
      %91 = arith.addf %90, %89 : vector<2x128xf32>
      %92 = arith.divf %90, %91 : vector<2x128xf32>
      %93 = arith.mulf %84, %26 : vector<2x128xf32>
      %94 = arith.mulf %78, %86 : vector<2x128xf32>
      %95 = arith.addf %93, %94 : vector<2x128xf32>
      %96 = math.tanh %95 : vector<2x128xf32>
      %97 = arith.mulf %92, %96 : vector<2x128xf32>
      %98 = vector.broadcast %27 : vector<2x1xf32> to vector<2x128xf32>
      %99 = arith.mulf %98, %95 : vector<2x128xf32>
      %cst_40 = arith.constant 1.000000e+00 : f32
      %100 = vector.broadcast %cst_40 : f32 to vector<2x1xf32>
      %101 = arith.subf %100, %27 : vector<2x1xf32>
      %102 = vector.broadcast %101 : vector<2x1xf32> to vector<2x128xf32>
      %103 = arith.mulf %102, %26 : vector<2x128xf32>
      %104 = arith.addf %99, %103 : vector<2x128xf32>
      %105 = vector.broadcast %27 : vector<2x1xf32> to vector<2x128xf32>
      %106 = arith.mulf %105, %97 : vector<2x128xf32>
      %cst_41 = arith.constant 1.000000e+00 : f32
      %107 = vector.broadcast %cst_41 : f32 to vector<2x1xf32>
      %108 = arith.subf %107, %27 : vector<2x1xf32>
      %109 = vector.broadcast %108 : vector<2x1xf32> to vector<2x128xf32>
      %110 = arith.mulf %109, %25 : vector<2x128xf32>
      %111 = arith.addf %106, %110 : vector<2x128xf32>
      %c2 = arith.constant 2 : index
      %c0_42 = arith.constant 0 : index
      %112 = vector.load %arg3[%c2, %c0_42] : memref<16x1xf32, #tpu.memory_space<vmem>>, vector<2x1xf32>
      %c2_43 = arith.constant 2 : index
      %c0_44 = arith.constant 0 : index
      %113 = vector.load %arg14[%c2_43, %c0_44] : memref<16x512xf32, #tpu.memory_space<vmem>>, vector<2x512xf32>
      %cst_45 = arith.constant dense<0.000000e+00> : vector<2x512xf32>
      %114 = tpu.matmul %69, %18, %cst_45 {dimension_numbers = #tpu.dot_dimension_numbers<[1], [0], [0], [1], [0, 0, 1, 1], [], []>} : vector<2x128xf32>, vector<128x512xf32>, vector<2x512xf32> -> vector<2x512xf32>
      %115 = arith.addf %113, %114 : vector<2x512xf32>
      %116 = vector.extract_strided_slice %115 {offsets = [0, 0], sizes = [2, 128], strides = [1, 1]} : vector<2x512xf32> to vector<2x128xf32>
      %117 = arith.negf %116 : vector<2x128xf32>
      %118 = math.exp %117 : vector<2x128xf32>
      %cst_46 = arith.constant 1.000000e+00 : f32
      %119 = vector.broadcast %cst_46 : f32 to vector<2x128xf32>
      %120 = arith.addf %119, %118 : vector<2x128xf32>
      %121 = arith.divf %119, %120 : vector<2x128xf32>
      %122 = vector.extract_strided_slice %115 {offsets = [0, 128], sizes = [2, 128], strides = [1, 1]} : vector<2x512xf32> to vector<2x128xf32>
      %123 = arith.negf %122 : vector<2x128xf32>
      %124 = math.exp %123 : vector<2x128xf32>
      %cst_47 = arith.constant 1.000000e+00 : f32
      %125 = vector.broadcast %cst_47 : f32 to vector<2x128xf32>
      %126 = arith.addf %125, %124 : vector<2x128xf32>
      %127 = arith.divf %125, %126 : vector<2x128xf32>
      %128 = vector.extract_strided_slice %115 {offsets = [0, 256], sizes = [2, 128], strides = [1, 1]} : vector<2x512xf32> to vector<2x128xf32>
      %129 = math.tanh %128 : vector<2x128xf32>
      %130 = vector.extract_strided_slice %115 {offsets = [0, 384], sizes = [2, 128], strides = [1, 1]} : vector<2x512xf32> to vector<2x128xf32>
      %131 = arith.negf %130 : vector<2x128xf32>
      %132 = math.exp %131 : vector<2x128xf32>
      %cst_48 = arith.constant 1.000000e+00 : f32
      %133 = vector.broadcast %cst_48 : f32 to vector<2x128xf32>
      %134 = arith.addf %133, %132 : vector<2x128xf32>
      %135 = arith.divf %133, %134 : vector<2x128xf32>
      %136 = arith.mulf %127, %62 : vector<2x128xf32>
      %137 = arith.mulf %121, %129 : vector<2x128xf32>
      %138 = arith.addf %136, %137 : vector<2x128xf32>
      %139 = math.tanh %138 : vector<2x128xf32>
      %140 = arith.mulf %135, %139 : vector<2x128xf32>
      %141 = vector.broadcast %112 : vector<2x1xf32> to vector<2x128xf32>
      %142 = arith.mulf %141, %138 : vector<2x128xf32>
      %cst_49 = arith.constant 1.000000e+00 : f32
      %143 = vector.broadcast %cst_49 : f32 to vector<2x1xf32>
      %144 = arith.subf %143, %112 : vector<2x1xf32>
      %145 = vector.broadcast %144 : vector<2x1xf32> to vector<2x128xf32>
      %146 = arith.mulf %145, %62 : vector<2x128xf32>
      %147 = arith.addf %142, %146 : vector<2x128xf32>
      %148 = vector.broadcast %112 : vector<2x1xf32> to vector<2x128xf32>
      %149 = arith.mulf %148, %140 : vector<2x128xf32>
      %cst_50 = arith.constant 1.000000e+00 : f32
      %150 = vector.broadcast %cst_50 : f32 to vector<2x1xf32>
      %151 = arith.subf %150, %112 : vector<2x1xf32>
      %152 = vector.broadcast %151 : vector<2x1xf32> to vector<2x128xf32>
      %153 = arith.mulf %152, %69 : vector<2x128xf32>
      %154 = arith.addf %149, %153 : vector<2x128xf32>
      %155 = tpu.concatenate %154, %111 in 1 : vector<2x128xf32>, vector<2x128xf32> -> vector<2x256xf32>
      %cst_51 = arith.constant dense<0.000000e+00> : vector<2x512xf32>
      %156 = tpu.matmul %155, %19, %cst_51 {dimension_numbers = #tpu.dot_dimension_numbers<[1], [0], [0], [1], [0, 0, 1, 1], [], []>} : vector<2x256xf32>, vector<256x512xf32>, vector<2x512xf32> -> vector<2x512xf32>
      %157 = arith.addf %156, %22 : vector<2x512xf32>
      %158 = vector.extract_strided_slice %157 {offsets = [0, 0], sizes = [2, 128], strides = [1, 1]} : vector<2x512xf32> to vector<2x128xf32>
      %159 = arith.negf %158 : vector<2x128xf32>
      %160 = math.exp %159 : vector<2x128xf32>
      %cst_52 = arith.constant 1.000000e+00 : f32
      %161 = vector.broadcast %cst_52 : f32 to vector<2x128xf32>
      %162 = arith.addf %161, %160 : vector<2x128xf32>
      %163 = arith.divf %161, %162 : vector<2x128xf32>
      %164 = vector.extract_strided_slice %157 {offsets = [0, 128], sizes = [2, 128], strides = [1, 1]} : vector<2x512xf32> to vector<2x128xf32>
      %165 = arith.negf %164 : vector<2x128xf32>
      %166 = math.exp %165 : vector<2x128xf32>
      %cst_53 = arith.constant 1.000000e+00 : f32
      %167 = vector.broadcast %cst_53 : f32 to vector<2x128xf32>
      %168 = arith.addf %167, %166 : vector<2x128xf32>
      %169 = arith.divf %167, %168 : vector<2x128xf32>
      %170 = vector.extract_strided_slice %157 {offsets = [0, 256], sizes = [2, 128], strides = [1, 1]} : vector<2x512xf32> to vector<2x128xf32>
      %171 = math.tanh %170 : vector<2x128xf32>
      %172 = vector.extract_strided_slice %157 {offsets = [0, 384], sizes = [2, 128], strides = [1, 1]} : vector<2x512xf32> to vector<2x128xf32>
      %173 = arith.negf %172 : vector<2x128xf32>
      %174 = math.exp %173 : vector<2x128xf32>
      %cst_54 = arith.constant 1.000000e+00 : f32
      %175 = vector.broadcast %cst_54 : f32 to vector<2x128xf32>
      %176 = arith.addf %175, %174 : vector<2x128xf32>
      %177 = arith.divf %175, %176 : vector<2x128xf32>
      %178 = arith.mulf %169, %104 : vector<2x128xf32>
      %179 = arith.mulf %163, %171 : vector<2x128xf32>
      %180 = arith.addf %178, %179 : vector<2x128xf32>
      %181 = math.tanh %180 : vector<2x128xf32>
      %182 = arith.mulf %177, %181 : vector<2x128xf32>
      %183 = vector.broadcast %112 : vector<2x1xf32> to vector<2x128xf32>
      %184 = arith.mulf %183, %180 : vector<2x128xf32>
      %cst_55 = arith.constant 1.000000e+00 : f32
      %185 = vector.broadcast %cst_55 : f32 to vector<2x1xf32>
      %186 = arith.subf %185, %112 : vector<2x1xf32>
      %187 = vector.broadcast %186 : vector<2x1xf32> to vector<2x128xf32>
      %188 = arith.mulf %187, %104 : vector<2x128xf32>
      %189 = arith.addf %184, %188 : vector<2x128xf32>
      %190 = vector.broadcast %112 : vector<2x1xf32> to vector<2x128xf32>
      %191 = arith.mulf %190, %182 : vector<2x128xf32>
      %cst_56 = arith.constant 1.000000e+00 : f32
      %192 = vector.broadcast %cst_56 : f32 to vector<2x1xf32>
      %193 = arith.subf %192, %112 : vector<2x1xf32>
      %194 = vector.broadcast %193 : vector<2x1xf32> to vector<2x128xf32>
      %195 = arith.mulf %194, %111 : vector<2x128xf32>
      %196 = arith.addf %191, %195 : vector<2x128xf32>
      %c4 = arith.constant 4 : index
      %c0_57 = arith.constant 0 : index
      %197 = vector.load %arg3[%c4, %c0_57] : memref<16x1xf32, #tpu.memory_space<vmem>>, vector<2x1xf32>
      %c4_58 = arith.constant 4 : index
      %c0_59 = arith.constant 0 : index
      %198 = vector.load %arg14[%c4_58, %c0_59] : memref<16x512xf32, #tpu.memory_space<vmem>>, vector<2x512xf32>
      %cst_60 = arith.constant dense<0.000000e+00> : vector<2x512xf32>
      %199 = tpu.matmul %154, %18, %cst_60 {dimension_numbers = #tpu.dot_dimension_numbers<[1], [0], [0], [1], [0, 0, 1, 1], [], []>} : vector<2x128xf32>, vector<128x512xf32>, vector<2x512xf32> -> vector<2x512xf32>
      %200 = arith.addf %198, %199 : vector<2x512xf32>
      %201 = vector.extract_strided_slice %200 {offsets = [0, 0], sizes = [2, 128], strides = [1, 1]} : vector<2x512xf32> to vector<2x128xf32>
      %202 = arith.negf %201 : vector<2x128xf32>
      %203 = math.exp %202 : vector<2x128xf32>
      %cst_61 = arith.constant 1.000000e+00 : f32
      %204 = vector.broadcast %cst_61 : f32 to vector<2x128xf32>
      %205 = arith.addf %204, %203 : vector<2x128xf32>
      %206 = arith.divf %204, %205 : vector<2x128xf32>
      %207 = vector.extract_strided_slice %200 {offsets = [0, 128], sizes = [2, 128], strides = [1, 1]} : vector<2x512xf32> to vector<2x128xf32>
      %208 = arith.negf %207 : vector<2x128xf32>
      %209 = math.exp %208 : vector<2x128xf32>
      %cst_62 = arith.constant 1.000000e+00 : f32
      %210 = vector.broadcast %cst_62 : f32 to vector<2x128xf32>
      %211 = arith.addf %210, %209 : vector<2x128xf32>
      %212 = arith.divf %210, %211 : vector<2x128xf32>
      %213 = vector.extract_strided_slice %200 {offsets = [0, 256], sizes = [2, 128], strides = [1, 1]} : vector<2x512xf32> to vector<2x128xf32>
      %214 = math.tanh %213 : vector<2x128xf32>
      %215 = vector.extract_strided_slice %200 {offsets = [0, 384], sizes = [2, 128], strides = [1, 1]} : vector<2x512xf32> to vector<2x128xf32>
      %216 = arith.negf %215 : vector<2x128xf32>
      %217 = math.exp %216 : vector<2x128xf32>
      %cst_63 = arith.constant 1.000000e+00 : f32
      %218 = vector.broadcast %cst_63 : f32 to vector<2x128xf32>
      %219 = arith.addf %218, %217 : vector<2x128xf32>
      %220 = arith.divf %218, %219 : vector<2x128xf32>
      %221 = arith.mulf %212, %147 : vector<2x128xf32>
      %222 = arith.mulf %206, %214 : vector<2x128xf32>
      %223 = arith.addf %221, %222 : vector<2x128xf32>
      %224 = math.tanh %223 : vector<2x128xf32>
      %225 = arith.mulf %220, %224 : vector<2x128xf32>
      %226 = vector.broadcast %197 : vector<2x1xf32> to vector<2x128xf32>
      %227 = arith.mulf %226, %223 : vector<2x128xf32>
      %cst_64 = arith.constant 1.000000e+00 : f32
      %228 = vector.broadcast %cst_64 : f32 to vector<2x1xf32>
      %229 = arith.subf %228, %197 : vector<2x1xf32>
      %230 = vector.broadcast %229 : vector<2x1xf32> to vector<2x128xf32>
      %231 = arith.mulf %230, %147 : vector<2x128xf32>
      %232 = arith.addf %227, %231 : vector<2x128xf32>
      %233 = vector.broadcast %197 : vector<2x1xf32> to vector<2x128xf32>
      %234 = arith.mulf %233, %225 : vector<2x128xf32>
      %cst_65 = arith.constant 1.000000e+00 : f32
      %235 = vector.broadcast %cst_65 : f32 to vector<2x1xf32>
      %236 = arith.subf %235, %197 : vector<2x1xf32>
      %237 = vector.broadcast %236 : vector<2x1xf32> to vector<2x128xf32>
      %238 = arith.mulf %237, %154 : vector<2x128xf32>
      %239 = arith.addf %234, %238 : vector<2x128xf32>
      %240 = tpu.concatenate %239, %196 in 1 : vector<2x128xf32>, vector<2x128xf32> -> vector<2x256xf32>
      %cst_66 = arith.constant dense<0.000000e+00> : vector<2x512xf32>
      %241 = tpu.matmul %240, %19, %cst_66 {dimension_numbers = #tpu.dot_dimension_numbers<[1], [0], [0], [1], [0, 0, 1, 1], [], []>} : vector<2x256xf32>, vector<256x512xf32>, vector<2x512xf32> -> vector<2x512xf32>
      %242 = arith.addf %241, %22 : vector<2x512xf32>
      %243 = vector.extract_strided_slice %242 {offsets = [0, 0], sizes = [2, 128], strides = [1, 1]} : vector<2x512xf32> to vector<2x128xf32>
      %244 = arith.negf %243 : vector<2x128xf32>
      %245 = math.exp %244 : vector<2x128xf32>
      %cst_67 = arith.constant 1.000000e+00 : f32
      %246 = vector.broadcast %cst_67 : f32 to vector<2x128xf32>
      %247 = arith.addf %246, %245 : vector<2x128xf32>
      %248 = arith.divf %246, %247 : vector<2x128xf32>
      %249 = vector.extract_strided_slice %242 {offsets = [0, 128], sizes = [2, 128], strides = [1, 1]} : vector<2x512xf32> to vector<2x128xf32>
      %250 = arith.negf %249 : vector<2x128xf32>
      %251 = math.exp %250 : vector<2x128xf32>
      %cst_68 = arith.constant 1.000000e+00 : f32
      %252 = vector.broadcast %cst_68 : f32 to vector<2x128xf32>
      %253 = arith.addf %252, %251 : vector<2x128xf32>
      %254 = arith.divf %252, %253 : vector<2x128xf32>
      %255 = vector.extract_strided_slice %242 {offsets = [0, 256], sizes = [2, 128], strides = [1, 1]} : vector<2x512xf32> to vector<2x128xf32>
      %256 = math.tanh %255 : vector<2x128xf32>
      %257 = vector.extract_strided_slice %242 {offsets = [0, 384], sizes = [2, 128], strides = [1, 1]} : vector<2x512xf32> to vector<2x128xf32>
      %258 = arith.negf %257 : vector<2x128xf32>
      %259 = math.exp %258 : vector<2x128xf32>
      %cst_69 = arith.constant 1.000000e+00 : f32
      %260 = vector.broadcast %cst_69 : f32 to vector<2x128xf32>
      %261 = arith.addf %260, %259 : vector<2x128xf32>
      %262 = arith.divf %260, %261 : vector<2x128xf32>
      %263 = arith.mulf %254, %189 : vector<2x128xf32>
      %264 = arith.mulf %248, %256 : vector<2x128xf32>
      %265 = arith.addf %263, %264 : vector<2x128xf32>
      %266 = math.tanh %265 : vector<2x128xf32>
      %267 = arith.mulf %262, %266 : vector<2x128xf32>
      %268 = vector.broadcast %197 : vector<2x1xf32> to vector<2x128xf32>
      %269 = arith.mulf %268, %265 : vector<2x128xf32>
      %cst_70 = arith.constant 1.000000e+00 : f32
      %270 = vector.broadcast %cst_70 : f32 to vector<2x1xf32>
      %271 = arith.subf %270, %197 : vector<2x1xf32>
      %272 = vector.broadcast %271 : vector<2x1xf32> to vector<2x128xf32>
      %273 = arith.mulf %272, %189 : vector<2x128xf32>
      %274 = arith.addf %269, %273 : vector<2x128xf32>
      %275 = vector.broadcast %197 : vector<2x1xf32> to vector<2x128xf32>
      %276 = arith.mulf %275, %267 : vector<2x128xf32>
      %cst_71 = arith.constant 1.000000e+00 : f32
      %277 = vector.broadcast %cst_71 : f32 to vector<2x1xf32>
      %278 = arith.subf %277, %197 : vector<2x1xf32>
      %279 = vector.broadcast %278 : vector<2x1xf32> to vector<2x128xf32>
      %280 = arith.mulf %279, %196 : vector<2x128xf32>
      %281 = arith.addf %276, %280 : vector<2x128xf32>
      %c6 = arith.constant 6 : index
      %c0_72 = arith.constant 0 : index
      %282 = vector.load %arg3[%c6, %c0_72] : memref<16x1xf32, #tpu.memory_space<vmem>>, vector<2x1xf32>
      %c6_73 = arith.constant 6 : index
      %c0_74 = arith.constant 0 : index
      %283 = vector.load %arg14[%c6_73, %c0_74] : memref<16x512xf32, #tpu.memory_space<vmem>>, vector<2x512xf32>
      %cst_75 = arith.constant dense<0.000000e+00> : vector<2x512xf32>
      %284 = tpu.matmul %239, %18, %cst_75 {dimension_numbers = #tpu.dot_dimension_numbers<[1], [0], [0], [1], [0, 0, 1, 1], [], []>} : vector<2x128xf32>, vector<128x512xf32>, vector<2x512xf32> -> vector<2x512xf32>
      %285 = arith.addf %283, %284 : vector<2x512xf32>
      %286 = vector.extract_strided_slice %285 {offsets = [0, 0], sizes = [2, 128], strides = [1, 1]} : vector<2x512xf32> to vector<2x128xf32>
      %287 = arith.negf %286 : vector<2x128xf32>
      %288 = math.exp %287 : vector<2x128xf32>
      %cst_76 = arith.constant 1.000000e+00 : f32
      %289 = vector.broadcast %cst_76 : f32 to vector<2x128xf32>
      %290 = arith.addf %289, %288 : vector<2x128xf32>
      %291 = arith.divf %289, %290 : vector<2x128xf32>
      %292 = vector.extract_strided_slice %285 {offsets = [0, 128], sizes = [2, 128], strides = [1, 1]} : vector<2x512xf32> to vector<2x128xf32>
      %293 = arith.negf %292 : vector<2x128xf32>
      %294 = math.exp %293 : vector<2x128xf32>
      %cst_77 = arith.constant 1.000000e+00 : f32
      %295 = vector.broadcast %cst_77 : f32 to vector<2x128xf32>
      %296 = arith.addf %295, %294 : vector<2x128xf32>
      %297 = arith.divf %295, %296 : vector<2x128xf32>
      %298 = vector.extract_strided_slice %285 {offsets = [0, 256], sizes = [2, 128], strides = [1, 1]} : vector<2x512xf32> to vector<2x128xf32>
      %299 = math.tanh %298 : vector<2x128xf32>
      %300 = vector.extract_strided_slice %285 {offsets = [0, 384], sizes = [2, 128], strides = [1, 1]} : vector<2x512xf32> to vector<2x128xf32>
      %301 = arith.negf %300 : vector<2x128xf32>
      %302 = math.exp %301 : vector<2x128xf32>
      %cst_78 = arith.constant 1.000000e+00 : f32
      %303 = vector.broadcast %cst_78 : f32 to vector<2x128xf32>
      %304 = arith.addf %303, %302 : vector<2x128xf32>
      %305 = arith.divf %303, %304 : vector<2x128xf32>
      %306 = arith.mulf %297, %232 : vector<2x128xf32>
      %307 = arith.mulf %291, %299 : vector<2x128xf32>
      %308 = arith.addf %306, %307 : vector<2x128xf32>
      %309 = math.tanh %308 : vector<2x128xf32>
      %310 = arith.mulf %305, %309 : vector<2x128xf32>
      %311 = vector.broadcast %282 : vector<2x1xf32> to vector<2x128xf32>
      %312 = arith.mulf %311, %308 : vector<2x128xf32>
      %cst_79 = arith.constant 1.000000e+00 : f32
      %313 = vector.broadcast %cst_79 : f32 to vector<2x1xf32>
      %314 = arith.subf %313, %282 : vector<2x1xf32>
      %315 = vector.broadcast %314 : vector<2x1xf32> to vector<2x128xf32>
      %316 = arith.mulf %315, %232 : vector<2x128xf32>
      %317 = arith.addf %312, %316 : vector<2x128xf32>
      %318 = vector.broadcast %282 : vector<2x1xf32> to vector<2x128xf32>
      %319 = arith.mulf %318, %310 : vector<2x128xf32>
      %cst_80 = arith.constant 1.000000e+00 : f32
      %320 = vector.broadcast %cst_80 : f32 to vector<2x1xf32>
      %321 = arith.subf %320, %282 : vector<2x1xf32>
      %322 = vector.broadcast %321 : vector<2x1xf32> to vector<2x128xf32>
      %323 = arith.mulf %322, %239 : vector<2x128xf32>
      %324 = arith.addf %319, %323 : vector<2x128xf32>
      %325 = tpu.concatenate %324, %281 in 1 : vector<2x128xf32>, vector<2x128xf32> -> vector<2x256xf32>
      %cst_81 = arith.constant dense<0.000000e+00> : vector<2x512xf32>
      %326 = tpu.matmul %325, %19, %cst_81 {dimension_numbers = #tpu.dot_dimension_numbers<[1], [0], [0], [1], [0, 0, 1, 1], [], []>} : vector<2x256xf32>, vector<256x512xf32>, vector<2x512xf32> -> vector<2x512xf32>
      %327 = arith.addf %326, %22 : vector<2x512xf32>
      %328 = vector.extract_strided_slice %327 {offsets = [0, 0], sizes = [2, 128], strides = [1, 1]} : vector<2x512xf32> to vector<2x128xf32>
      %329 = arith.negf %328 : vector<2x128xf32>
      %330 = math.exp %329 : vector<2x128xf32>
      %cst_82 = arith.constant 1.000000e+00 : f32
      %331 = vector.broadcast %cst_82 : f32 to vector<2x128xf32>
      %332 = arith.addf %331, %330 : vector<2x128xf32>
      %333 = arith.divf %331, %332 : vector<2x128xf32>
      %334 = vector.extract_strided_slice %327 {offsets = [0, 128], sizes = [2, 128], strides = [1, 1]} : vector<2x512xf32> to vector<2x128xf32>
      %335 = arith.negf %334 : vector<2x128xf32>
      %336 = math.exp %335 : vector<2x128xf32>
      %cst_83 = arith.constant 1.000000e+00 : f32
      %337 = vector.broadcast %cst_83 : f32 to vector<2x128xf32>
      %338 = arith.addf %337, %336 : vector<2x128xf32>
      %339 = arith.divf %337, %338 : vector<2x128xf32>
      %340 = vector.extract_strided_slice %327 {offsets = [0, 256], sizes = [2, 128], strides = [1, 1]} : vector<2x512xf32> to vector<2x128xf32>
      %341 = math.tanh %340 : vector<2x128xf32>
      %342 = vector.extract_strided_slice %327 {offsets = [0, 384], sizes = [2, 128], strides = [1, 1]} : vector<2x512xf32> to vector<2x128xf32>
      %343 = arith.negf %342 : vector<2x128xf32>
      %344 = math.exp %343 : vector<2x128xf32>
      %cst_84 = arith.constant 1.000000e+00 : f32
      %345 = vector.broadcast %cst_84 : f32 to vector<2x128xf32>
      %346 = arith.addf %345, %344 : vector<2x128xf32>
      %347 = arith.divf %345, %346 : vector<2x128xf32>
      %348 = arith.mulf %339, %274 : vector<2x128xf32>
      %349 = arith.mulf %333, %341 : vector<2x128xf32>
      %350 = arith.addf %348, %349 : vector<2x128xf32>
      %351 = math.tanh %350 : vector<2x128xf32>
      %352 = arith.mulf %347, %351 : vector<2x128xf32>
      %353 = vector.broadcast %282 : vector<2x1xf32> to vector<2x128xf32>
      %354 = arith.mulf %353, %350 : vector<2x128xf32>
      %cst_85 = arith.constant 1.000000e+00 : f32
      %355 = vector.broadcast %cst_85 : f32 to vector<2x1xf32>
      %356 = arith.subf %355, %282 : vector<2x1xf32>
      %357 = vector.broadcast %356 : vector<2x1xf32> to vector<2x128xf32>
      %358 = arith.mulf %357, %274 : vector<2x128xf32>
      %359 = arith.addf %354, %358 : vector<2x128xf32>
      %360 = vector.broadcast %282 : vector<2x1xf32> to vector<2x128xf32>
      %361 = arith.mulf %360, %352 : vector<2x128xf32>
      %cst_86 = arith.constant 1.000000e+00 : f32
      %362 = vector.broadcast %cst_86 : f32 to vector<2x1xf32>
      %363 = arith.subf %362, %282 : vector<2x1xf32>
      %364 = vector.broadcast %363 : vector<2x1xf32> to vector<2x128xf32>
      %365 = arith.mulf %364, %281 : vector<2x128xf32>
      %366 = arith.addf %361, %365 : vector<2x128xf32>
      %c8 = arith.constant 8 : index
      %c0_87 = arith.constant 0 : index
      %367 = vector.load %arg3[%c8, %c0_87] : memref<16x1xf32, #tpu.memory_space<vmem>>, vector<2x1xf32>
      %c8_88 = arith.constant 8 : index
      %c0_89 = arith.constant 0 : index
      %368 = vector.load %arg14[%c8_88, %c0_89] : memref<16x512xf32, #tpu.memory_space<vmem>>, vector<2x512xf32>
      %cst_90 = arith.constant dense<0.000000e+00> : vector<2x512xf32>
      %369 = tpu.matmul %324, %18, %cst_90 {dimension_numbers = #tpu.dot_dimension_numbers<[1], [0], [0], [1], [0, 0, 1, 1], [], []>} : vector<2x128xf32>, vector<128x512xf32>, vector<2x512xf32> -> vector<2x512xf32>
      %370 = arith.addf %368, %369 : vector<2x512xf32>
      %371 = vector.extract_strided_slice %370 {offsets = [0, 0], sizes = [2, 128], strides = [1, 1]} : vector<2x512xf32> to vector<2x128xf32>
      %372 = arith.negf %371 : vector<2x128xf32>
      %373 = math.exp %372 : vector<2x128xf32>
      %cst_91 = arith.constant 1.000000e+00 : f32
      %374 = vector.broadcast %cst_91 : f32 to vector<2x128xf32>
      %375 = arith.addf %374, %373 : vector<2x128xf32>
      %376 = arith.divf %374, %375 : vector<2x128xf32>
      %377 = vector.extract_strided_slice %370 {offsets = [0, 128], sizes = [2, 128], strides = [1, 1]} : vector<2x512xf32> to vector<2x128xf32>
      %378 = arith.negf %377 : vector<2x128xf32>
      %379 = math.exp %378 : vector<2x128xf32>
      %cst_92 = arith.constant 1.000000e+00 : f32
      %380 = vector.broadcast %cst_92 : f32 to vector<2x128xf32>
      %381 = arith.addf %380, %379 : vector<2x128xf32>
      %382 = arith.divf %380, %381 : vector<2x128xf32>
      %383 = vector.extract_strided_slice %370 {offsets = [0, 256], sizes = [2, 128], strides = [1, 1]} : vector<2x512xf32> to vector<2x128xf32>
      %384 = math.tanh %383 : vector<2x128xf32>
      %385 = vector.extract_strided_slice %370 {offsets = [0, 384], sizes = [2, 128], strides = [1, 1]} : vector<2x512xf32> to vector<2x128xf32>
      %386 = arith.negf %385 : vector<2x128xf32>
      %387 = math.exp %386 : vector<2x128xf32>
      %cst_93 = arith.constant 1.000000e+00 : f32
      %388 = vector.broadcast %cst_93 : f32 to vector<2x128xf32>
      %389 = arith.addf %388, %387 : vector<2x128xf32>
      %390 = arith.divf %388, %389 : vector<2x128xf32>
      %391 = arith.mulf %382, %317 : vector<2x128xf32>
      %392 = arith.mulf %376, %384 : vector<2x128xf32>
      %393 = arith.addf %391, %392 : vector<2x128xf32>
      %394 = math.tanh %393 : vector<2x128xf32>
      %395 = arith.mulf %390, %394 : vector<2x128xf32>
      %396 = vector.broadcast %367 : vector<2x1xf32> to vector<2x128xf32>
      %397 = arith.mulf %396, %393 : vector<2x128xf32>
      %cst_94 = arith.constant 1.000000e+00 : f32
      %398 = vector.broadcast %cst_94 : f32 to vector<2x1xf32>
      %399 = arith.subf %398, %367 : vector<2x1xf32>
      %400 = vector.broadcast %399 : vector<2x1xf32> to vector<2x128xf32>
      %401 = arith.mulf %400, %317 : vector<2x128xf32>
      %402 = arith.addf %397, %401 : vector<2x128xf32>
      %403 = vector.broadcast %367 : vector<2x1xf32> to vector<2x128xf32>
      %404 = arith.mulf %403, %395 : vector<2x128xf32>
      %cst_95 = arith.constant 1.000000e+00 : f32
      %405 = vector.broadcast %cst_95 : f32 to vector<2x1xf32>
      %406 = arith.subf %405, %367 : vector<2x1xf32>
      %407 = vector.broadcast %406 : vector<2x1xf32> to vector<2x128xf32>
      %408 = arith.mulf %407, %324 : vector<2x128xf32>
      %409 = arith.addf %404, %408 : vector<2x128xf32>
      %410 = tpu.concatenate %409, %366 in 1 : vector<2x128xf32>, vector<2x128xf32> -> vector<2x256xf32>
      %cst_96 = arith.constant dense<0.000000e+00> : vector<2x512xf32>
      %411 = tpu.matmul %410, %19, %cst_96 {dimension_numbers = #tpu.dot_dimension_numbers<[1], [0], [0], [1], [0, 0, 1, 1], [], []>} : vector<2x256xf32>, vector<256x512xf32>, vector<2x512xf32> -> vector<2x512xf32>
      %412 = arith.addf %411, %22 : vector<2x512xf32>
      %413 = vector.extract_strided_slice %412 {offsets = [0, 0], sizes = [2, 128], strides = [1, 1]} : vector<2x512xf32> to vector<2x128xf32>
      %414 = arith.negf %413 : vector<2x128xf32>
      %415 = math.exp %414 : vector<2x128xf32>
      %cst_97 = arith.constant 1.000000e+00 : f32
      %416 = vector.broadcast %cst_97 : f32 to vector<2x128xf32>
      %417 = arith.addf %416, %415 : vector<2x128xf32>
      %418 = arith.divf %416, %417 : vector<2x128xf32>
      %419 = vector.extract_strided_slice %412 {offsets = [0, 128], sizes = [2, 128], strides = [1, 1]} : vector<2x512xf32> to vector<2x128xf32>
      %420 = arith.negf %419 : vector<2x128xf32>
      %421 = math.exp %420 : vector<2x128xf32>
      %cst_98 = arith.constant 1.000000e+00 : f32
      %422 = vector.broadcast %cst_98 : f32 to vector<2x128xf32>
      %423 = arith.addf %422, %421 : vector<2x128xf32>
      %424 = arith.divf %422, %423 : vector<2x128xf32>
      %425 = vector.extract_strided_slice %412 {offsets = [0, 256], sizes = [2, 128], strides = [1, 1]} : vector<2x512xf32> to vector<2x128xf32>
      %426 = math.tanh %425 : vector<2x128xf32>
      %427 = vector.extract_strided_slice %412 {offsets = [0, 384], sizes = [2, 128], strides = [1, 1]} : vector<2x512xf32> to vector<2x128xf32>
      %428 = arith.negf %427 : vector<2x128xf32>
      %429 = math.exp %428 : vector<2x128xf32>
      %cst_99 = arith.constant 1.000000e+00 : f32
      %430 = vector.broadcast %cst_99 : f32 to vector<2x128xf32>
      %431 = arith.addf %430, %429 : vector<2x128xf32>
      %432 = arith.divf %430, %431 : vector<2x128xf32>
      %433 = arith.mulf %424, %359 : vector<2x128xf32>
      %434 = arith.mulf %418, %426 : vector<2x128xf32>
      %435 = arith.addf %433, %434 : vector<2x128xf32>
      %436 = math.tanh %435 : vector<2x128xf32>
      %437 = arith.mulf %432, %436 : vector<2x128xf32>
      %438 = vector.broadcast %367 : vector<2x1xf32> to vector<2x128xf32>
      %439 = arith.mulf %438, %435 : vector<2x128xf32>
      %cst_100 = arith.constant 1.000000e+00 : f32
      %440 = vector.broadcast %cst_100 : f32 to vector<2x1xf32>
      %441 = arith.subf %440, %367 : vector<2x1xf32>
      %442 = vector.broadcast %441 : vector<2x1xf32> to vector<2x128xf32>
      %443 = arith.mulf %442, %359 : vector<2x128xf32>
      %444 = arith.addf %439, %443 : vector<2x128xf32>
      %445 = vector.broadcast %367 : vector<2x1xf32> to vector<2x128xf32>
      %446 = arith.mulf %445, %437 : vector<2x128xf32>
      %cst_101 = arith.constant 1.000000e+00 : f32
      %447 = vector.broadcast %cst_101 : f32 to vector<2x1xf32>
      %448 = arith.subf %447, %367 : vector<2x1xf32>
      %449 = vector.broadcast %448 : vector<2x1xf32> to vector<2x128xf32>
      %450 = arith.mulf %449, %366 : vector<2x128xf32>
      %451 = arith.addf %446, %450 : vector<2x128xf32>
      %c10 = arith.constant 10 : index
      %c0_102 = arith.constant 0 : index
      %452 = vector.load %arg3[%c10, %c0_102] : memref<16x1xf32, #tpu.memory_space<vmem>>, vector<2x1xf32>
      %c10_103 = arith.constant 10 : index
      %c0_104 = arith.constant 0 : index
      %453 = vector.load %arg14[%c10_103, %c0_104] : memref<16x512xf32, #tpu.memory_space<vmem>>, vector<2x512xf32>
      %cst_105 = arith.constant dense<0.000000e+00> : vector<2x512xf32>
      %454 = tpu.matmul %409, %18, %cst_105 {dimension_numbers = #tpu.dot_dimension_numbers<[1], [0], [0], [1], [0, 0, 1, 1], [], []>} : vector<2x128xf32>, vector<128x512xf32>, vector<2x512xf32> -> vector<2x512xf32>
      %455 = arith.addf %453, %454 : vector<2x512xf32>
      %456 = vector.extract_strided_slice %455 {offsets = [0, 0], sizes = [2, 128], strides = [1, 1]} : vector<2x512xf32> to vector<2x128xf32>
      %457 = arith.negf %456 : vector<2x128xf32>
      %458 = math.exp %457 : vector<2x128xf32>
      %cst_106 = arith.constant 1.000000e+00 : f32
      %459 = vector.broadcast %cst_106 : f32 to vector<2x128xf32>
      %460 = arith.addf %459, %458 : vector<2x128xf32>
      %461 = arith.divf %459, %460 : vector<2x128xf32>
      %462 = vector.extract_strided_slice %455 {offsets = [0, 128], sizes = [2, 128], strides = [1, 1]} : vector<2x512xf32> to vector<2x128xf32>
      %463 = arith.negf %462 : vector<2x128xf32>
      %464 = math.exp %463 : vector<2x128xf32>
      %cst_107 = arith.constant 1.000000e+00 : f32
      %465 = vector.broadcast %cst_107 : f32 to vector<2x128xf32>
      %466 = arith.addf %465, %464 : vector<2x128xf32>
      %467 = arith.divf %465, %466 : vector<2x128xf32>
      %468 = vector.extract_strided_slice %455 {offsets = [0, 256], sizes = [2, 128], strides = [1, 1]} : vector<2x512xf32> to vector<2x128xf32>
      %469 = math.tanh %468 : vector<2x128xf32>
      %470 = vector.extract_strided_slice %455 {offsets = [0, 384], sizes = [2, 128], strides = [1, 1]} : vector<2x512xf32> to vector<2x128xf32>
      %471 = arith.negf %470 : vector<2x128xf32>
      %472 = math.exp %471 : vector<2x128xf32>
      %cst_108 = arith.constant 1.000000e+00 : f32
      %473 = vector.broadcast %cst_108 : f32 to vector<2x128xf32>
      %474 = arith.addf %473, %472 : vector<2x128xf32>
      %475 = arith.divf %473, %474 : vector<2x128xf32>
      %476 = arith.mulf %467, %402 : vector<2x128xf32>
      %477 = arith.mulf %461, %469 : vector<2x128xf32>
      %478 = arith.addf %476, %477 : vector<2x128xf32>
      %479 = math.tanh %478 : vector<2x128xf32>
      %480 = arith.mulf %475, %479 : vector<2x128xf32>
      %481 = vector.broadcast %452 : vector<2x1xf32> to vector<2x128xf32>
      %482 = arith.mulf %481, %478 : vector<2x128xf32>
      %cst_109 = arith.constant 1.000000e+00 : f32
      %483 = vector.broadcast %cst_109 : f32 to vector<2x1xf32>
      %484 = arith.subf %483, %452 : vector<2x1xf32>
      %485 = vector.broadcast %484 : vector<2x1xf32> to vector<2x128xf32>
      %486 = arith.mulf %485, %402 : vector<2x128xf32>
      %487 = arith.addf %482, %486 : vector<2x128xf32>
      %488 = vector.broadcast %452 : vector<2x1xf32> to vector<2x128xf32>
      %489 = arith.mulf %488, %480 : vector<2x128xf32>
      %cst_110 = arith.constant 1.000000e+00 : f32
      %490 = vector.broadcast %cst_110 : f32 to vector<2x1xf32>
      %491 = arith.subf %490, %452 : vector<2x1xf32>
      %492 = vector.broadcast %491 : vector<2x1xf32> to vector<2x128xf32>
      %493 = arith.mulf %492, %409 : vector<2x128xf32>
      %494 = arith.addf %489, %493 : vector<2x128xf32>
      %495 = tpu.concatenate %494, %451 in 1 : vector<2x128xf32>, vector<2x128xf32> -> vector<2x256xf32>
      %cst_111 = arith.constant dense<0.000000e+00> : vector<2x512xf32>
      %496 = tpu.matmul %495, %19, %cst_111 {dimension_numbers = #tpu.dot_dimension_numbers<[1], [0], [0], [1], [0, 0, 1, 1], [], []>} : vector<2x256xf32>, vector<256x512xf32>, vector<2x512xf32> -> vector<2x512xf32>
      %497 = arith.addf %496, %22 : vector<2x512xf32>
      %498 = vector.extract_strided_slice %497 {offsets = [0, 0], sizes = [2, 128], strides = [1, 1]} : vector<2x512xf32> to vector<2x128xf32>
      %499 = arith.negf %498 : vector<2x128xf32>
      %500 = math.exp %499 : vector<2x128xf32>
      %cst_112 = arith.constant 1.000000e+00 : f32
      %501 = vector.broadcast %cst_112 : f32 to vector<2x128xf32>
      %502 = arith.addf %501, %500 : vector<2x128xf32>
      %503 = arith.divf %501, %502 : vector<2x128xf32>
      %504 = vector.extract_strided_slice %497 {offsets = [0, 128], sizes = [2, 128], strides = [1, 1]} : vector<2x512xf32> to vector<2x128xf32>
      %505 = arith.negf %504 : vector<2x128xf32>
      %506 = math.exp %505 : vector<2x128xf32>
      %cst_113 = arith.constant 1.000000e+00 : f32
      %507 = vector.broadcast %cst_113 : f32 to vector<2x128xf32>
      %508 = arith.addf %507, %506 : vector<2x128xf32>
      %509 = arith.divf %507, %508 : vector<2x128xf32>
      %510 = vector.extract_strided_slice %497 {offsets = [0, 256], sizes = [2, 128], strides = [1, 1]} : vector<2x512xf32> to vector<2x128xf32>
      %511 = math.tanh %510 : vector<2x128xf32>
      %512 = vector.extract_strided_slice %497 {offsets = [0, 384], sizes = [2, 128], strides = [1, 1]} : vector<2x512xf32> to vector<2x128xf32>
      %513 = arith.negf %512 : vector<2x128xf32>
      %514 = math.exp %513 : vector<2x128xf32>
      %cst_114 = arith.constant 1.000000e+00 : f32
      %515 = vector.broadcast %cst_114 : f32 to vector<2x128xf32>
      %516 = arith.addf %515, %514 : vector<2x128xf32>
      %517 = arith.divf %515, %516 : vector<2x128xf32>
      %518 = arith.mulf %509, %444 : vector<2x128xf32>
      %519 = arith.mulf %503, %511 : vector<2x128xf32>
      %520 = arith.addf %518, %519 : vector<2x128xf32>
      %521 = math.tanh %520 : vector<2x128xf32>
      %522 = arith.mulf %517, %521 : vector<2x128xf32>
      %523 = vector.broadcast %452 : vector<2x1xf32> to vector<2x128xf32>
      %524 = arith.mulf %523, %520 : vector<2x128xf32>
      %cst_115 = arith.constant 1.000000e+00 : f32
      %525 = vector.broadcast %cst_115 : f32 to vector<2x1xf32>
      %526 = arith.subf %525, %452 : vector<2x1xf32>
      %527 = vector.broadcast %526 : vector<2x1xf32> to vector<2x128xf32>
      %528 = arith.mulf %527, %444 : vector<2x128xf32>
      %529 = arith.addf %524, %528 : vector<2x128xf32>
      %530 = vector.broadcast %452 : vector<2x1xf32> to vector<2x128xf32>
      %531 = arith.mulf %530, %522 : vector<2x128xf32>
      %cst_116 = arith.constant 1.000000e+00 : f32
      %532 = vector.broadcast %cst_116 : f32 to vector<2x1xf32>
      %533 = arith.subf %532, %452 : vector<2x1xf32>
      %534 = vector.broadcast %533 : vector<2x1xf32> to vector<2x128xf32>
      %535 = arith.mulf %534, %451 : vector<2x128xf32>
      %536 = arith.addf %531, %535 : vector<2x128xf32>
      %c12 = arith.constant 12 : index
      %c0_117 = arith.constant 0 : index
      %537 = vector.load %arg3[%c12, %c0_117] : memref<16x1xf32, #tpu.memory_space<vmem>>, vector<2x1xf32>
      %c12_118 = arith.constant 12 : index
      %c0_119 = arith.constant 0 : index
      %538 = vector.load %arg14[%c12_118, %c0_119] : memref<16x512xf32, #tpu.memory_space<vmem>>, vector<2x512xf32>
      %cst_120 = arith.constant dense<0.000000e+00> : vector<2x512xf32>
      %539 = tpu.matmul %494, %18, %cst_120 {dimension_numbers = #tpu.dot_dimension_numbers<[1], [0], [0], [1], [0, 0, 1, 1], [], []>} : vector<2x128xf32>, vector<128x512xf32>, vector<2x512xf32> -> vector<2x512xf32>
      %540 = arith.addf %538, %539 : vector<2x512xf32>
      %541 = vector.extract_strided_slice %540 {offsets = [0, 0], sizes = [2, 128], strides = [1, 1]} : vector<2x512xf32> to vector<2x128xf32>
      %542 = arith.negf %541 : vector<2x128xf32>
      %543 = math.exp %542 : vector<2x128xf32>
      %cst_121 = arith.constant 1.000000e+00 : f32
      %544 = vector.broadcast %cst_121 : f32 to vector<2x128xf32>
      %545 = arith.addf %544, %543 : vector<2x128xf32>
      %546 = arith.divf %544, %545 : vector<2x128xf32>
      %547 = vector.extract_strided_slice %540 {offsets = [0, 128], sizes = [2, 128], strides = [1, 1]} : vector<2x512xf32> to vector<2x128xf32>
      %548 = arith.negf %547 : vector<2x128xf32>
      %549 = math.exp %548 : vector<2x128xf32>
      %cst_122 = arith.constant 1.000000e+00 : f32
      %550 = vector.broadcast %cst_122 : f32 to vector<2x128xf32>
      %551 = arith.addf %550, %549 : vector<2x128xf32>
      %552 = arith.divf %550, %551 : vector<2x128xf32>
      %553 = vector.extract_strided_slice %540 {offsets = [0, 256], sizes = [2, 128], strides = [1, 1]} : vector<2x512xf32> to vector<2x128xf32>
      %554 = math.tanh %553 : vector<2x128xf32>
      %555 = vector.extract_strided_slice %540 {offsets = [0, 384], sizes = [2, 128], strides = [1, 1]} : vector<2x512xf32> to vector<2x128xf32>
      %556 = arith.negf %555 : vector<2x128xf32>
      %557 = math.exp %556 : vector<2x128xf32>
      %cst_123 = arith.constant 1.000000e+00 : f32
      %558 = vector.broadcast %cst_123 : f32 to vector<2x128xf32>
      %559 = arith.addf %558, %557 : vector<2x128xf32>
      %560 = arith.divf %558, %559 : vector<2x128xf32>
      %561 = arith.mulf %552, %487 : vector<2x128xf32>
      %562 = arith.mulf %546, %554 : vector<2x128xf32>
      %563 = arith.addf %561, %562 : vector<2x128xf32>
      %564 = math.tanh %563 : vector<2x128xf32>
      %565 = arith.mulf %560, %564 : vector<2x128xf32>
      %566 = vector.broadcast %537 : vector<2x1xf32> to vector<2x128xf32>
      %567 = arith.mulf %566, %563 : vector<2x128xf32>
      %cst_124 = arith.constant 1.000000e+00 : f32
      %568 = vector.broadcast %cst_124 : f32 to vector<2x1xf32>
      %569 = arith.subf %568, %537 : vector<2x1xf32>
      %570 = vector.broadcast %569 : vector<2x1xf32> to vector<2x128xf32>
      %571 = arith.mulf %570, %487 : vector<2x128xf32>
      %572 = arith.addf %567, %571 : vector<2x128xf32>
      %573 = vector.broadcast %537 : vector<2x1xf32> to vector<2x128xf32>
      %574 = arith.mulf %573, %565 : vector<2x128xf32>
      %cst_125 = arith.constant 1.000000e+00 : f32
      %575 = vector.broadcast %cst_125 : f32 to vector<2x1xf32>
      %576 = arith.subf %575, %537 : vector<2x1xf32>
      %577 = vector.broadcast %576 : vector<2x1xf32> to vector<2x128xf32>
      %578 = arith.mulf %577, %494 : vector<2x128xf32>
      %579 = arith.addf %574, %578 : vector<2x128xf32>
      %580 = tpu.concatenate %579, %536 in 1 : vector<2x128xf32>, vector<2x128xf32> -> vector<2x256xf32>
      %cst_126 = arith.constant dense<0.000000e+00> : vector<2x512xf32>
      %581 = tpu.matmul %580, %19, %cst_126 {dimension_numbers = #tpu.dot_dimension_numbers<[1], [0], [0], [1], [0, 0, 1, 1], [], []>} : vector<2x256xf32>, vector<256x512xf32>, vector<2x512xf32> -> vector<2x512xf32>
      %582 = arith.addf %581, %22 : vector<2x512xf32>
      %583 = vector.extract_strided_slice %582 {offsets = [0, 0], sizes = [2, 128], strides = [1, 1]} : vector<2x512xf32> to vector<2x128xf32>
      %584 = arith.negf %583 : vector<2x128xf32>
      %585 = math.exp %584 : vector<2x128xf32>
      %cst_127 = arith.constant 1.000000e+00 : f32
      %586 = vector.broadcast %cst_127 : f32 to vector<2x128xf32>
      %587 = arith.addf %586, %585 : vector<2x128xf32>
      %588 = arith.divf %586, %587 : vector<2x128xf32>
      %589 = vector.extract_strided_slice %582 {offsets = [0, 128], sizes = [2, 128], strides = [1, 1]} : vector<2x512xf32> to vector<2x128xf32>
      %590 = arith.negf %589 : vector<2x128xf32>
      %591 = math.exp %590 : vector<2x128xf32>
      %cst_128 = arith.constant 1.000000e+00 : f32
      %592 = vector.broadcast %cst_128 : f32 to vector<2x128xf32>
      %593 = arith.addf %592, %591 : vector<2x128xf32>
      %594 = arith.divf %592, %593 : vector<2x128xf32>
      %595 = vector.extract_strided_slice %582 {offsets = [0, 256], sizes = [2, 128], strides = [1, 1]} : vector<2x512xf32> to vector<2x128xf32>
      %596 = math.tanh %595 : vector<2x128xf32>
      %597 = vector.extract_strided_slice %582 {offsets = [0, 384], sizes = [2, 128], strides = [1, 1]} : vector<2x512xf32> to vector<2x128xf32>
      %598 = arith.negf %597 : vector<2x128xf32>
      %599 = math.exp %598 : vector<2x128xf32>
      %cst_129 = arith.constant 1.000000e+00 : f32
      %600 = vector.broadcast %cst_129 : f32 to vector<2x128xf32>
      %601 = arith.addf %600, %599 : vector<2x128xf32>
      %602 = arith.divf %600, %601 : vector<2x128xf32>
      %603 = arith.mulf %594, %529 : vector<2x128xf32>
      %604 = arith.mulf %588, %596 : vector<2x128xf32>
      %605 = arith.addf %603, %604 : vector<2x128xf32>
      %606 = math.tanh %605 : vector<2x128xf32>
      %607 = arith.mulf %602, %606 : vector<2x128xf32>
      %608 = vector.broadcast %537 : vector<2x1xf32> to vector<2x128xf32>
      %609 = arith.mulf %608, %605 : vector<2x128xf32>
      %cst_130 = arith.constant 1.000000e+00 : f32
      %610 = vector.broadcast %cst_130 : f32 to vector<2x1xf32>
      %611 = arith.subf %610, %537 : vector<2x1xf32>
      %612 = vector.broadcast %611 : vector<2x1xf32> to vector<2x128xf32>
      %613 = arith.mulf %612, %529 : vector<2x128xf32>
      %614 = arith.addf %609, %613 : vector<2x128xf32>
      %615 = vector.broadcast %537 : vector<2x1xf32> to vector<2x128xf32>
      %616 = arith.mulf %615, %607 : vector<2x128xf32>
      %cst_131 = arith.constant 1.000000e+00 : f32
      %617 = vector.broadcast %cst_131 : f32 to vector<2x1xf32>
      %618 = arith.subf %617, %537 : vector<2x1xf32>
      %619 = vector.broadcast %618 : vector<2x1xf32> to vector<2x128xf32>
      %620 = arith.mulf %619, %536 : vector<2x128xf32>
      %621 = arith.addf %616, %620 : vector<2x128xf32>
      %c14 = arith.constant 14 : index
      %c0_132 = arith.constant 0 : index
      %622 = vector.load %arg3[%c14, %c0_132] : memref<16x1xf32, #tpu.memory_space<vmem>>, vector<2x1xf32>
      %c14_133 = arith.constant 14 : index
      %c0_134 = arith.constant 0 : index
      %623 = vector.load %arg14[%c14_133, %c0_134] : memref<16x512xf32, #tpu.memory_space<vmem>>, vector<2x512xf32>
      %cst_135 = arith.constant dense<0.000000e+00> : vector<2x512xf32>
      %624 = tpu.matmul %579, %18, %cst_135 {dimension_numbers = #tpu.dot_dimension_numbers<[1], [0], [0], [1], [0, 0, 1, 1], [], []>} : vector<2x128xf32>, vector<128x512xf32>, vector<2x512xf32> -> vector<2x512xf32>
      %625 = arith.addf %623, %624 : vector<2x512xf32>
      %626 = vector.extract_strided_slice %625 {offsets = [0, 0], sizes = [2, 128], strides = [1, 1]} : vector<2x512xf32> to vector<2x128xf32>
      %627 = arith.negf %626 : vector<2x128xf32>
      %628 = math.exp %627 : vector<2x128xf32>
      %cst_136 = arith.constant 1.000000e+00 : f32
      %629 = vector.broadcast %cst_136 : f32 to vector<2x128xf32>
      %630 = arith.addf %629, %628 : vector<2x128xf32>
      %631 = arith.divf %629, %630 : vector<2x128xf32>
      %632 = vector.extract_strided_slice %625 {offsets = [0, 128], sizes = [2, 128], strides = [1, 1]} : vector<2x512xf32> to vector<2x128xf32>
      %633 = arith.negf %632 : vector<2x128xf32>
      %634 = math.exp %633 : vector<2x128xf32>
      %cst_137 = arith.constant 1.000000e+00 : f32
      %635 = vector.broadcast %cst_137 : f32 to vector<2x128xf32>
      %636 = arith.addf %635, %634 : vector<2x128xf32>
      %637 = arith.divf %635, %636 : vector<2x128xf32>
      %638 = vector.extract_strided_slice %625 {offsets = [0, 256], sizes = [2, 128], strides = [1, 1]} : vector<2x512xf32> to vector<2x128xf32>
      %639 = math.tanh %638 : vector<2x128xf32>
      %640 = vector.extract_strided_slice %625 {offsets = [0, 384], sizes = [2, 128], strides = [1, 1]} : vector<2x512xf32> to vector<2x128xf32>
      %641 = arith.negf %640 : vector<2x128xf32>
      %642 = math.exp %641 : vector<2x128xf32>
      %cst_138 = arith.constant 1.000000e+00 : f32
      %643 = vector.broadcast %cst_138 : f32 to vector<2x128xf32>
      %644 = arith.addf %643, %642 : vector<2x128xf32>
      %645 = arith.divf %643, %644 : vector<2x128xf32>
      %646 = arith.mulf %637, %572 : vector<2x128xf32>
      %647 = arith.mulf %631, %639 : vector<2x128xf32>
      %648 = arith.addf %646, %647 : vector<2x128xf32>
      %649 = math.tanh %648 : vector<2x128xf32>
      %650 = arith.mulf %645, %649 : vector<2x128xf32>
      %651 = vector.broadcast %622 : vector<2x1xf32> to vector<2x128xf32>
      %652 = arith.mulf %651, %648 : vector<2x128xf32>
      %cst_139 = arith.constant 1.000000e+00 : f32
      %653 = vector.broadcast %cst_139 : f32 to vector<2x1xf32>
      %654 = arith.subf %653, %622 : vector<2x1xf32>
      %655 = vector.broadcast %654 : vector<2x1xf32> to vector<2x128xf32>
      %656 = arith.mulf %655, %572 : vector<2x128xf32>
      %657 = arith.addf %652, %656 : vector<2x128xf32>
      %658 = vector.broadcast %622 : vector<2x1xf32> to vector<2x128xf32>
      %659 = arith.mulf %658, %650 : vector<2x128xf32>
      %cst_140 = arith.constant 1.000000e+00 : f32
      %660 = vector.broadcast %cst_140 : f32 to vector<2x1xf32>
      %661 = arith.subf %660, %622 : vector<2x1xf32>
      %662 = vector.broadcast %661 : vector<2x1xf32> to vector<2x128xf32>
      %663 = arith.mulf %662, %579 : vector<2x128xf32>
      %664 = arith.addf %659, %663 : vector<2x128xf32>
      %665 = tpu.concatenate %664, %621 in 1 : vector<2x128xf32>, vector<2x128xf32> -> vector<2x256xf32>
      %cst_141 = arith.constant dense<0.000000e+00> : vector<2x512xf32>
      %666 = tpu.matmul %665, %19, %cst_141 {dimension_numbers = #tpu.dot_dimension_numbers<[1], [0], [0], [1], [0, 0, 1, 1], [], []>} : vector<2x256xf32>, vector<256x512xf32>, vector<2x512xf32> -> vector<2x512xf32>
      %667 = arith.addf %666, %22 : vector<2x512xf32>
      %668 = vector.extract_strided_slice %667 {offsets = [0, 0], sizes = [2, 128], strides = [1, 1]} : vector<2x512xf32> to vector<2x128xf32>
      %669 = arith.negf %668 : vector<2x128xf32>
      %670 = math.exp %669 : vector<2x128xf32>
      %cst_142 = arith.constant 1.000000e+00 : f32
      %671 = vector.broadcast %cst_142 : f32 to vector<2x128xf32>
      %672 = arith.addf %671, %670 : vector<2x128xf32>
      %673 = arith.divf %671, %672 : vector<2x128xf32>
      %674 = vector.extract_strided_slice %667 {offsets = [0, 128], sizes = [2, 128], strides = [1, 1]} : vector<2x512xf32> to vector<2x128xf32>
      %675 = arith.negf %674 : vector<2x128xf32>
      %676 = math.exp %675 : vector<2x128xf32>
      %cst_143 = arith.constant 1.000000e+00 : f32
      %677 = vector.broadcast %cst_143 : f32 to vector<2x128xf32>
      %678 = arith.addf %677, %676 : vector<2x128xf32>
      %679 = arith.divf %677, %678 : vector<2x128xf32>
      %680 = vector.extract_strided_slice %667 {offsets = [0, 256], sizes = [2, 128], strides = [1, 1]} : vector<2x512xf32> to vector<2x128xf32>
      %681 = math.tanh %680 : vector<2x128xf32>
      %682 = vector.extract_strided_slice %667 {offsets = [0, 384], sizes = [2, 128], strides = [1, 1]} : vector<2x512xf32> to vector<2x128xf32>
      %683 = arith.negf %682 : vector<2x128xf32>
      %684 = math.exp %683 : vector<2x128xf32>
      %cst_144 = arith.constant 1.000000e+00 : f32
      %685 = vector.broadcast %cst_144 : f32 to vector<2x128xf32>
      %686 = arith.addf %685, %684 : vector<2x128xf32>
      %687 = arith.divf %685, %686 : vector<2x128xf32>
      %688 = arith.mulf %679, %614 : vector<2x128xf32>
      %689 = arith.mulf %673, %681 : vector<2x128xf32>
      %690 = arith.addf %688, %689 : vector<2x128xf32>
      %691 = math.tanh %690 : vector<2x128xf32>
      %692 = arith.mulf %687, %691 : vector<2x128xf32>
      %693 = vector.broadcast %622 : vector<2x1xf32> to vector<2x128xf32>
      %694 = arith.mulf %693, %690 : vector<2x128xf32>
      %cst_145 = arith.constant 1.000000e+00 : f32
      %695 = vector.broadcast %cst_145 : f32 to vector<2x1xf32>
      %696 = arith.subf %695, %622 : vector<2x1xf32>
      %697 = vector.broadcast %696 : vector<2x1xf32> to vector<2x128xf32>
      %698 = arith.mulf %697, %614 : vector<2x128xf32>
      %699 = arith.addf %694, %698 : vector<2x128xf32>
      %700 = vector.broadcast %622 : vector<2x1xf32> to vector<2x128xf32>
      %701 = arith.mulf %700, %692 : vector<2x128xf32>
      %cst_146 = arith.constant 1.000000e+00 : f32
      %702 = vector.broadcast %cst_146 : f32 to vector<2x1xf32>
      %703 = arith.subf %702, %622 : vector<2x1xf32>
      %704 = vector.broadcast %703 : vector<2x1xf32> to vector<2x128xf32>
      %705 = arith.mulf %704, %621 : vector<2x128xf32>
      %706 = arith.addf %701, %705 : vector<2x128xf32>
      %c0_147 = arith.constant 0 : index
      %c0_148 = arith.constant 0 : index
      %707 = vector.load %arg15[%c0_147, %c0_148] : memref<2x128xf32, #tpu.memory_space<vmem>>, vector<2x128xf32>
      tpu.vector_store %arg15[%c0_147, %c0_148], %664 {strides = array<i32>} : memref<2x128xf32, #tpu.memory_space<vmem>>, vector<2x128xf32>,
      %c0_149 = arith.constant 0 : index
      %c0_150 = arith.constant 0 : index
      %708 = vector.load %arg16[%c0_149, %c0_150] : memref<2x128xf32, #tpu.memory_space<vmem>>, vector<2x128xf32>
      tpu.vector_store %arg16[%c0_149, %c0_150], %657 {strides = array<i32>} : memref<2x128xf32, #tpu.memory_space<vmem>>, vector<2x128xf32>,
      %c0_151 = arith.constant 0 : index
      %c0_152 = arith.constant 0 : index
      %709 = vector.load %arg17[%c0_151, %c0_152] : memref<2x128xf32, #tpu.memory_space<vmem>>, vector<2x128xf32>
      tpu.vector_store %arg17[%c0_151, %c0_152], %706 {strides = array<i32>} : memref<2x128xf32, #tpu.memory_space<vmem>>, vector<2x128xf32>,
      %c0_153 = arith.constant 0 : index
      %c0_154 = arith.constant 0 : index
      %710 = vector.load %arg18[%c0_153, %c0_154] : memref<2x128xf32, #tpu.memory_space<vmem>>, vector<2x128xf32>
      tpu.vector_store %arg18[%c0_153, %c0_154], %699 {strides = array<i32>} : memref<2x128xf32, #tpu.memory_space<vmem>>, vector<2x128xf32>,
    } else {
    }
    %c0_i32_2 = arith.constant 0 : i32
    %8 = arith.cmpi eq, %arg0, %c0_i32_2 : i32
    %9 = arith.extui %8 : i1 to i32
    %c0_i32_3 = arith.constant 0 : i32
    %10 = arith.cmpi ne, %9, %c0_i32_3 : i32
    scf.if %10 {
      %c0_4 = arith.constant 0 : index
      %c0_5 = arith.constant 0 : index
      %11 = vector.load %arg17[%c0_4, %c0_5] : memref<2x128xf32, #tpu.memory_space<vmem>>, vector<2x128xf32>
      %c0_6 = arith.constant 0 : index
      %c0_7 = arith.constant 0 : index
      %12 = vector.load %arg9[%c0_6, %c0_7] : memref<128x128xf32, #tpu.memory_space<vmem>>, vector<128x128xf32>
      %cst = arith.constant dense<0.000000e+00> : vector<2x128xf32>
      %13 = tpu.matmul %11, %12, %cst {dimension_numbers = #tpu.dot_dimension_numbers<[1], [0], [0], [1], [0, 0, 1, 1], [], []>} : vector<2x128xf32>, vector<128x128xf32>, vector<2x128xf32> -> vector<2x128xf32>
      %c0_8 = arith.constant 0 : index
      %c0_9 = arith.constant 0 : index
      %14 = vector.load %arg10[%c0_8, %c0_9] : memref<1x128xf32, #tpu.memory_space<vmem>>, vector<1x128xf32>
      %15 = vector.broadcast %14 : vector<1x128xf32> to vector<2x128xf32>
      %16 = arith.addf %13, %15 : vector<2x128xf32>
      %cst_10 = arith.constant 0.000000e+00 : f32
      %17 = vector.broadcast %cst_10 : f32 to vector<2x128xf32>
      %18 = arith.maximumf %16, %17 : vector<2x128xf32>
      %c0_11 = arith.constant 0 : index
      %c0_12 = arith.constant 0 : index
      %19 = vector.load %arg11[%c0_11, %c0_12] : memref<128x128xf32, #tpu.memory_space<vmem>>, vector<128x128xf32>
      %cst_13 = arith.constant dense<0.000000e+00> : vector<2x128xf32>
      %20 = tpu.matmul %18, %19, %cst_13 {dimension_numbers = #tpu.dot_dimension_numbers<[1], [0], [0], [1], [0, 0, 1, 1], [], []>} : vector<2x128xf32>, vector<128x128xf32>, vector<2x128xf32> -> vector<2x128xf32>
      %c0_14 = arith.constant 0 : index
      %c0_15 = arith.constant 0 : index
      %21 = vector.load %arg12[%c0_14, %c0_15] : memref<1x128xf32, #tpu.memory_space<vmem>>, vector<1x128xf32>
      %22 = vector.broadcast %21 : vector<1x128xf32> to vector<2x128xf32>
      %23 = arith.addf %20, %22 : vector<2x128xf32>
      %c0_16 = arith.constant 0 : index
      %c0_17 = arith.constant 0 : index
      %24 = vector.load %arg13[%c0_16, %c0_17] : memref<2x128xf32, #tpu.memory_space<vmem>>, vector<2x128xf32>
      tpu.vector_store %arg13[%c0_16, %c0_17], %23 {strides = array<i32>} : memref<2x128xf32, #tpu.memory_space<vmem>>, vector<2x128xf32>,
    } else {
    }
    return
  }
  func.func @transform_0(%arg0: i32, %arg1: memref<1xi32, #tpu.memory_space<smem>>) -> (i32, i32) {
    %c0_i32 = arith.constant 0 : i32
    %c0_i32_0 = arith.constant 0 : i32
    return %arg0, %c0_i32 : i32, i32
  }
  func.func @transform_1(%arg0: i32, %arg1: memref<1xi32, #tpu.memory_space<smem>>) -> (i32, i32) {
    %c0_i32 = arith.constant 0 : i32
    %c0_i32_0 = arith.constant 0 : i32
    return %arg0, %c0_i32 : i32, i32
  }
  func.func @transform_2(%arg0: i32, %arg1: memref<1xi32, #tpu.memory_space<smem>>) -> (i32, i32) {
    %c0_i32 = arith.constant 0 : i32
    %c0_i32_0 = arith.constant 0 : i32
    %c0_i32_1 = arith.constant 0 : i32
    return %c0_i32, %c0_i32_0 : i32, i32
  }
  func.func @transform_3(%arg0: i32, %arg1: memref<1xi32, #tpu.memory_space<smem>>) -> (i32, i32) {
    %c0_i32 = arith.constant 0 : i32
    %c0_i32_0 = arith.constant 0 : i32
    %c0_i32_1 = arith.constant 0 : i32
    return %c0_i32, %c0_i32_0 : i32, i32
  }
  func.func @transform_4(%arg0: i32, %arg1: memref<1xi32, #tpu.memory_space<smem>>) -> (i32, i32) {
    %c0_i32 = arith.constant 0 : i32
    %c0_i32_0 = arith.constant 0 : i32
    %c0_i32_1 = arith.constant 0 : i32
    return %c0_i32, %c0_i32_0 : i32, i32
  }
  func.func @transform_5(%arg0: i32, %arg1: memref<1xi32, #tpu.memory_space<smem>>) -> (i32, i32) {
    %c0_i32 = arith.constant 0 : i32
    %c0_i32_0 = arith.constant 0 : i32
    %c0_i32_1 = arith.constant 0 : i32
    return %c0_i32, %c0_i32_0 : i32, i32
  }
  func.func @transform_6(%arg0: i32, %arg1: memref<1xi32, #tpu.memory_space<smem>>) -> (i32, i32) {
    %c0_i32 = arith.constant 0 : i32
    %c0_i32_0 = arith.constant 0 : i32
    %c0_i32_1 = arith.constant 0 : i32
    return %c0_i32, %c0_i32_0 : i32, i32
  }
  func.func @transform_7(%arg0: i32, %arg1: memref<1xi32, #tpu.memory_space<smem>>) -> (i32, i32) {
    %c0_i32 = arith.constant 0 : i32
    %c0_i32_0 = arith.constant 0 : i32
    %c0_i32_1 = arith.constant 0 : i32
    return %c0_i32, %c0_i32_0 : i32, i32
  }
  func.func @transform_8(%arg0: i32, %arg1: memref<1xi32, #tpu.memory_space<smem>>) -> (i32, i32) {
    %c0_i32 = arith.constant 0 : i32
    %c0_i32_0 = arith.constant 0 : i32
    %c0_i32_1 = arith.constant 0 : i32
    return %c0_i32, %c0_i32_0 : i32, i32
  }
  func.func @transform_9(%arg0: i32, %arg1: memref<1xi32, #tpu.memory_space<smem>>) -> (i32, i32) {
    %c0_i32 = arith.constant 0 : i32
    %c0_i32_0 = arith.constant 0 : i32
    %c0_i32_1 = arith.constant 0 : i32
    return %c0_i32, %c0_i32_0 : i32, i32
  }
  func.func @transform_10(%arg0: i32, %arg1: memref<1xi32, #tpu.memory_space<smem>>) -> (i32, i32) {
    %c0_i32 = arith.constant 0 : i32
    %c0_i32_0 = arith.constant 0 : i32
    %c0_i32_1 = arith.constant 0 : i32
    return %c0_i32, %c0_i32_0 : i32, i32
  }
  func.func @transform_11(%arg0: i32, %arg1: memref<1xi32, #tpu.memory_space<smem>>) -> (i32, i32) {
    %c0_i32 = arith.constant 0 : i32
    %c0_i32_0 = arith.constant 0 : i32
    %c0_i32_1 = arith.constant 0 : i32
    return %c0_i32, %c0_i32_0 : i32, i32
  }
}

</mosaic_0001>

<llo_original>
// kernel: tpu_custom_call.1
$region0: #{tpu_custom_call.1}
  #allocation0 [shape = 'u32[]', space=smem, size = 0x4, offset = 0x4, fixed_abs, tag = 'smem constant byte address 0x4 - core index']
  #allocation1 [shape = 'u32[144,128]{1,0:T(1,128)}', space=vmem, size = 0x12000, scoped, tag = 'internal scratch']
  #allocation2 [shape = 'f32[16,512]{1,0:T(8,128)}', space=vmem, size = 0x8000, scoped, tag = 'scratch operand']
  #allocation3 [shape = 'f32[2,128]{1,0:T(2,128)}', space=vmem, size = 0x400, scoped, tag = 'scratch operand']
  #allocation4 [shape = 'f32[2,128]{1,0:T(2,128)}', space=vmem, size = 0x400, scoped, tag = 'scratch operand']
  #allocation5 [shape = 'f32[2,128]{1,0:T(2,128)}', space=vmem, size = 0x400, scoped, tag = 'scratch operand']
  #allocation6 [shape = 'f32[2,128]{1,0:T(2,128)}', space=vmem, size = 0x400, scoped, tag = 'scratch operand']
  #allocation7 [shape = 's32[1]{0}', space=sflag, size = 0x4, scoped, tag = 'scoped memory for tpu_custom_call.1']
  #allocation8 [shape = 's32[1]{0:T(128)S(6)}', space=smem, size = 0x200, scoped, tag = 'prefetched SMEM operand 0']
  %s0 = inlined_call_operand.<no memory space> [shape: s32[1], index: 0, kind: input, shape index: {}]
  %s1 = inlined_call_operand.vmem [shape: f32[16,32], index: 1, kind: input, shape index: {}]
  %s2 = inlined_call_operand.vmem [shape: f32[16,1], index: 2, kind: input, shape index: {}]
  %s3 = inlined_call_operand.hbm [shape: f32[32,512], index: 3, kind: input, shape index: {}]
  %s4 = inlined_call_operand.hbm [shape: f32[128,512], index: 4, kind: input, shape index: {}]
  %s5 = inlined_call_operand.vmem [shape: f32[1,512], index: 5, kind: input, shape index: {}]
  %s6 = inlined_call_operand.hbm [shape: f32[256,512], index: 6, kind: input, shape index: {}]
  %s7 = inlined_call_operand.vmem [shape: f32[1,512], index: 7, kind: input, shape index: {}]
  %s8 = inlined_call_operand.hbm [shape: f32[128,128], index: 8, kind: input, shape index: {}]
  %s9 = inlined_call_operand.vmem [shape: f32[1,128], index: 9, kind: input, shape index: {}]
  %s10 = inlined_call_operand.hbm [shape: f32[128,128], index: 10, kind: input, shape index: {}]
  %s11 = inlined_call_operand.vmem [shape: f32[1,128], index: 11, kind: input, shape index: {}]
  %s12 = inlined_call_operand.hbm [shape: f32[2,128], index: 12, kind: output, shape index: {}]
  %s13 = sld [smem:[#allocation0]]
  $region86: #{tpu_custom_call.1} parent=0
    _
  %s15 = ssub.s32 1, %s13
  %s16 = scalar_select 0, %s15, %s13
  %17 = sst [smem:[#allocation8]] %s0
  $region1: #{tpu_custom_call.1} parent=0
    #allocation9 [shape = 'u8[65536]{0}', space=vmem, size = 0x10000, scoped, tag = 'input window, operand 3, single buffered']
    #allocation10 [shape = 's32[1]{0}', space=sflag, size = 0x4, scoped, tag = 'scoped memory for tpu_custom_call.1']
    #allocation11 [shape = 's32[1]{0}', space=sflag, size = 0x4, scoped, tag = 'scoped memory for tpu_custom_call.1']
    #allocation12 [shape = 'u8[262144]{0}', space=vmem, size = 0x40000, scoped, tag = 'input window, operand 4, single buffered']
    #allocation13 [shape = 's32[1]{0}', space=sflag, size = 0x4, scoped, tag = 'scoped memory for tpu_custom_call.1']
    #allocation14 [shape = 'u8[524288]{0}', space=vmem, size = 0x80000, scoped, tag = 'input window, operand 6, single buffered']
    #allocation15 [shape = 'u8[65536]{0}', space=vmem, size = 0x10000, scoped, tag = 'input window, operand 8, single buffered']
    #allocation16 [shape = 's32[1]{0}', space=sflag, size = 0x4, scoped, tag = 'scoped memory for tpu_custom_call.1']
    #allocation17 [shape = 'u8[65536]{0}', space=vmem, size = 0x10000, scoped, tag = 'input window, operand 10, single buffered']
    #allocation18 [shape = 'u8[1024]{0}', space=vmem, size = 0x400, scoped, tag = 'output window, operand 0, single buffered']
    %18 = vsyncpa [#allocation10], 0
    %19 = vsyncpa [#allocation13], 0
    %20 = vsyncpa [#allocation16], 0
    %21 = vsyncpa [#allocation11], 0
    // Predicated region
    $region2: #{tpu_custom_call.1} parent=1 // pred_check
      _
    $region3: #{tpu_custom_call.1} parent=1 // pred_check_branch
      %23 = sbr.rel (0) target = $region5
    $region4: #{tpu_custom_call.1} parent=1 // pred_region
      _
    $region5: #{tpu_custom_call.1} parent=1 // pred_fallthru
      _
    // Predicated region
    $region6: #{tpu_custom_call.1} parent=1 // pred_check
      _
    $region7: #{tpu_custom_call.1} parent=1 // pred_check_branch
      %25 = sbr.rel (0) target = $region9
    $region8: #{tpu_custom_call.1} parent=1 // pred_region
      _
    $region9: #{tpu_custom_call.1} parent=1 // pred_fallthru
      _
    // Predicated region
    $region10: #{tpu_custom_call.1} parent=1 // pred_check
      _
    $region11: #{tpu_custom_call.1} parent=1 // pred_check_branch
      %27 = sbr.rel (0) target = $region13
    $region12: #{tpu_custom_call.1} parent=1 // pred_region
      %s29 = ssub.s32 2048, 2048
      %30 = vsyncadd [#allocation10], %s29
      %s31 = sshll.u32 [#allocation9], 4
      %s32 = int_to_ptr.vmem [resolvable:$true] %s31
      %37 = dma.hbm_to_vmem [thread:$0]  %s3, 2048, %s32, [#allocation10], 512, 512, 32
    $region13: #{tpu_custom_call.1} parent=1 // pred_fallthru
      _
    // Predicated region
    $region14: #{tpu_custom_call.1} parent=1 // pred_check
      _
    $region15: #{tpu_custom_call.1} parent=1 // pred_check_branch
      %39 = sbr.rel (0) target = $region17
    $region16: #{tpu_custom_call.1} parent=1 // pred_region
      %s41 = ssub.s32 8192, 8192
      %42 = vsyncadd [#allocation13], %s41
      %s43 = sshll.u32 [#allocation12], 4
      %s44 = int_to_ptr.vmem [resolvable:$true] %s43
      %49 = dma.hbm_to_vmem [thread:$0]  %s4, 8192, %s44, [#allocation13], 512, 512, 32
    $region17: #{tpu_custom_call.1} parent=1 // pred_fallthru
      _
    // Predicated region
    $region18: #{tpu_custom_call.1} parent=1 // pred_check
      _
    $region19: #{tpu_custom_call.1} parent=1 // pred_check_branch
      %51 = sbr.rel (0) target = $region21
    $region20: #{tpu_custom_call.1} parent=1 // pred_region
      _
    $region21: #{tpu_custom_call.1} parent=1 // pred_fallthru
      _
    // Predicated region
    $region22: #{tpu_custom_call.1} parent=1 // pred_check
      _
    $region23: #{tpu_custom_call.1} parent=1 // pred_check_branch
      %53 = sbr.rel (0) target = $region25
    $region24: #{tpu_custom_call.1} parent=1 // pred_region
      %s55 = ssub.s32 16384, 16384
      %56 = vsyncadd [#allocation13], %s55
      %s57 = sshll.u32 [#allocation14], 4
      %s58 = int_to_ptr.vmem [resolvable:$true] %s57
      %63 = dma.hbm_to_vmem [thread:$0]  %s6, 16384, %s58, [#allocation13], 512, 512, 32
    $region25: #{tpu_custom_call.1} parent=1 // pred_fallthru
      _
    // Predicated region
    $region26: #{tpu_custom_call.1} parent=1 // pred_check
      _
    $region27: #{tpu_custom_call.1} parent=1 // pred_check_branch
      %65 = sbr.rel (0) target = $region29
    $region28: #{tpu_custom_call.1} parent=1 // pred_region
      _
    $region29: #{tpu_custom_call.1} parent=1 // pred_fallthru
      _
    // Predicated region
    $region30: #{tpu_custom_call.1} parent=1 // pred_check
      _
    $region31: #{tpu_custom_call.1} parent=1 // pred_check_branch
      %67 = sbr.rel (0) target = $region33
    $region32: #{tpu_custom_call.1} parent=1 // pred_region
      %s69 = ssub.s32 2048, 2048
      %70 = vsyncadd [#allocation16], %s69
      %s71 = sshll.u32 [#allocation15], 4
      %s72 = int_to_ptr.vmem [resolvable:$true] %s71
      %77 = dma.hbm_to_vmem [thread:$0]  %s8, 2048, %s72, [#allocation16], 128, 128, 8
    $region33: #{tpu_custom_call.1} parent=1 // pred_fallthru
      _
    // Predicated region
    $region34: #{tpu_custom_call.1} parent=1 // pred_check
      _
    $region35: #{tpu_custom_call.1} parent=1 // pred_check_branch
      %79 = sbr.rel (0) target = $region37
    $region36: #{tpu_custom_call.1} parent=1 // pred_region
      _
    $region37: #{tpu_custom_call.1} parent=1 // pred_fallthru
      _
    // Predicated region
    $region38: #{tpu_custom_call.1} parent=1 // pred_check
      _
    $region39: #{tpu_custom_call.1} parent=1 // pred_check_branch
      %81 = sbr.rel (0) target = $region41
    $region40: #{tpu_custom_call.1} parent=1 // pred_region
      %s83 = ssub.s32 2048, 2048
      %84 = vsyncadd [#allocation16], %s83
      %s85 = sshll.u32 [#allocation17], 4
      %s86 = int_to_ptr.vmem [resolvable:$true] %s85
      %91 = dma.hbm_to_vmem [thread:$0]  %s10, 2048, %s86, [#allocation16], 128, 128, 8
    $region41: #{tpu_custom_call.1} parent=1 // pred_fallthru
      _
    // Predicated region
    $region42: #{tpu_custom_call.1} parent=1 // pred_check
      _
    $region43: #{tpu_custom_call.1} parent=1 // pred_check_branch
      %93 = sbr.rel (0) target = $region45
    $region44: #{tpu_custom_call.1} parent=1 // pred_region
      _
    $region45: #{tpu_custom_call.1} parent=1 // pred_fallthru
      _
    // Predicated region
    $region46: #{tpu_custom_call.1} parent=1 // pred_check
      _
    $region47: #{tpu_custom_call.1} parent=1 // pred_check_branch
      %95 = sbr.rel (0) target = $region49
    $region48: #{tpu_custom_call.1} parent=1 // pred_region
      %96 = dma.done [#allocation10], 2048
    $region49: #{tpu_custom_call.1} parent=1 // pred_fallthru
      _
    // Predicated region
    $region50: #{tpu_custom_call.1} parent=1 // pred_check
      _
    $region51: #{tpu_custom_call.1} parent=1 // pred_check_branch
      %98 = sbr.rel (0) target = $region53
    $region52: #{tpu_custom_call.1} parent=1 // pred_region
      %99 = dma.done [#allocation13], 8192
    $region53: #{tpu_custom_call.1} parent=1 // pred_fallthru
      _
    // Predicated region
    $region54: #{tpu_custom_call.1} parent=1 // pred_check
      _
    $region55: #{tpu_custom_call.1} parent=1 // pred_check_branch
      %101 = sbr.rel (0) target = $region57
    $region56: #{tpu_custom_call.1} parent=1 // pred_region
      %102 = dma.done [#allocation13], 16384
    $region57: #{tpu_custom_call.1} parent=1 // pred_fallthru
      _
    // Predicated region
    $region58: #{tpu_custom_call.1} parent=1 // pred_check
      _
    $region59: #{tpu_custom_call.1} parent=1 // pred_check_branch
      %104 = sbr.rel (0) target = $region61
    $region60: #{tpu_custom_call.1} parent=1 // pred_region
      %105 = dma.done [#allocation16], 2048
    $region61: #{tpu_custom_call.1} parent=1 // pred_fallthru
      _
    // Predicated region
    $region62: #{tpu_custom_call.1} parent=1 // pred_check
      _
    $region63: #{tpu_custom_call.1} parent=1 // pred_check_branch
      %107 = sbr.rel (0) target = $region65
    $region64: #{tpu_custom_call.1} parent=1 // pred_region
      %108 = dma.done [#allocation16], 2048
    $region65: #{tpu_custom_call.1} parent=1 // pred_fallthru
      _
    %p109 = scmp.eq.s32.totalorder 0, 0
    // Predicated region
    $region66: #{tpu_custom_call.1} parent=1 // pred_check
      %p110 = pneg %p109
    $region67: #{tpu_custom_call.1} parent=1 // pred_check_branch
      %112 = sbr.rel (%p110) target = $region69
    $region68: #{tpu_custom_call.1} parent=1 // pred_region
      %113 = vst [vmem:[#allocation3] sm:$0x3] 0.0
      %114 = vst [vmem:[#allocation4] sm:$0x3] 0.0
      %115 = vst [vmem:[#allocation5] sm:$0x3] 0.0
      %116 = vst [vmem:[#allocation6] sm:$0x3] 0.0
    $region69: #{tpu_custom_call.1} parent=1 // pred_fallthru
      _
    %s117 = smul.u32 0, 8
    %s118 = sld [smem:[#allocation8]]
    %p119 = scmp.lt.s32.totalorder %s117, %s118
    // Predicated region
    $region70: #{tpu_custom_call.1} parent=1 // pred_check
      %p120 = pneg %p119
    $region71: #{tpu_custom_call.1} parent=1 // pred_check_branch
      %122 = sbr.rel (%p120) target = $region73
    $region72: #{tpu_custom_call.1} parent=1 // pred_region
      %v123 = vld [vmem:[%s1] sm:$0xff]
      %v124 = vld [vmem:[%s1 + $0x8] sm:$0xff]
      %v125 = vld [vmem:[#allocation9] sm:$0xff]
      %v126 = vld [vmem:[#allocation9 + $0x8] sm:$0xff]
      %v127 = vld [vmem:[#allocation9 + $0x10] sm:$0xff]
      %v128 = vld [vmem:[#allocation9 + $0x18] sm:$0xff]
      %v129 = vld [vmem:[#allocation9 + $0x20] sm:$0xff]
      %v130 = vld [vmem:[#allocation9 + $0x28] sm:$0xff]
      %v131 = vld [vmem:[#allocation9 + $0x30] sm:$0xff]
      %v132 = vld [vmem:[#allocation9 + $0x38] sm:$0xff]
      %v133 = vld [vmem:[#allocation9 + $0x40] sm:$0xff]
      %v134 = vld [vmem:[#allocation9 + $0x48] sm:$0xff]
      %v135 = vld [vmem:[#allocation9 + $0x50] sm:$0xff]
      %v136 = vld [vmem:[#allocation9 + $0x58] sm:$0xff]
      %v137 = vld [vmem:[#allocation9 + $0x60] sm:$0xff]
      %v138 = vld [vmem:[#allocation9 + $0x68] sm:$0xff]
      %v139 = vld [vmem:[#allocation9 + $0x70] sm:$0xff]
      %v140 = vld [vmem:[#allocation9 + $0x78] sm:$0xff]
      %v141 = vld [vmem:[%s5] sm:$0xf]
      %v143 = vlaneseq
      %v144 = vshrl.u32 %v143, 7
      %v145 = vsub.s32 0, %v144
      %v146 = vrot.slane %v141, %v145
      %v147 = vlaneseq
      %v148 = vshrl.u32 %v147, 7
      %v149 = vsub.s32 1, %v148
      %v150 = vrot.slane %v141, %v149
      %v151 = vlaneseq
      %v152 = vshrl.u32 %v151, 7
      %v153 = vsub.s32 2, %v152
      %v154 = vrot.slane %v141, %v153
      %v155 = vlaneseq
      %v156 = vshrl.u32 %v155, 7
      %v157 = vsub.s32 3, %v156
      %v158 = vrot.slane %v141, %v157
      %vm163 = vcmask 261120
      %v165 = vsel %vm163, %v123, 0
      %v168 = vsel %vm163, %v124, 0
      %170 = vmatprep.subr.mxu0 %v126
      %171 = vmatpush1.msra.mxu0 %v125
      %172 = vmatprep.subr.mxu0 %v130
      %173 = vmatpush1.msra.mxu0 %v129
      %174 = vmatprep.subr.mxu0 %v134
      %175 = vmatpush1.msra.mxu0 %v133
      %176 = vmatprep.subr.mxu0 %v138
      %177 = vmatpush1.msra.mxu0 %v137
      %178 = vmatprep.subr.mxu0 0.0
      %179 = vmatpush1.msra.mxu0 0.0
      %180 = vmatprep.subr.mxu0 0.0
      %181 = vmatpush1.msra.mxu0 0.0
      %182 = vmatprep.subr.mxu0 0.0
      %183 = vmatpush1.msra.mxu0 0.0
      %184 = vmatprep.subr.mxu0 0.0
      %185 = vmatpush1.msra.mxu0 0.0
      %186 = vmatprep.subr.mxu0 0.0
      %187 = vmatpush1.msra.mxu0 0.0
      %188 = vmatprep.subr.mxu0 0.0
      %189 = vmatpush1.msra.mxu0 0.0
      %190 = vmatprep.subr.mxu0 0.0
      %191 = vmatpush1.msra.mxu0 0.0
      %192 = vmatprep.subr.mxu0 0.0
      %193 = vmatpush1.msra.mxu0 0.0
      %194 = vmatprep.subr.mxu0 0.0
      %195 = vmatpush1.msra.mxu0 0.0
      %196 = vmatprep.subr.mxu0 0.0
      %197 = vmatpush1.msra.mxu0 0.0
      %198 = vmatprep.subr.mxu0 0.0
      %199 = vmatpush1.msra.mxu0 0.0
      %200 = vmatprep.subr.mxu0 0.0
      %201 = vmatpush1.msra.mxu0 0.0
      %202 = vmatprep.subr.mxu0 0.0
      %203 = vmatpush1.msra.mxu0 0.0
      %204 = vmatprep.subr.mxu0 0.0
      %205 = vmatpush1.msra.mxu0 0.0
      %206 = vmatprep.subr.mxu0 0.0
      %207 = vmatpush1.msra.mxu0 0.0
      %208 = vmatprep.subr.mxu0 0.0
      %209 = vmatpush1.msra.mxu0 0.0
      %210 = vmatprep.subr.mxu0 0.0
      %211 = vmatpush1.msra.mxu0 0.0
      %212 = vmatprep.subr.mxu0 0.0
      %213 = vmatpush1.msra.mxu0 0.0
      %214 = vmatprep.subr.mxu0 0.0
      %215 = vmatpush1.msra.mxu0 0.0
      %216 = vmatprep.subr.mxu0 0.0
      %217 = vmatpush1.msra.mxu0 0.0
      %218 = vmatprep.subr.mxu0 0.0
      %219 = vmatpush1.msra.mxu0 0.0
      %220 = vmatprep.subr.mxu0 0.0
      %221 = vmatpush1.msra.mxu0 0.0
      %222 = vmatprep.subr.mxu0 0.0
      %223 = vmatpush1.msra.mxu0 0.0
      %224 = vmatprep.subr.mxu0 0.0
      %225 = vmatpush1.msra.mxu0 0.0
      %226 = vmatprep.subr.mxu0 0.0
      %227 = vmatpush1.msra.mxu0 0.0
      %228 = vmatprep.subr.mxu0 0.0
      %229 = vmatpush1.msra.mxu0 0.0
      %230 = vmatprep.subr.mxu0 0.0
      %231 = vmatpush1.msra.mxu0 0.0
      %232 = vmatprep.subr.mxu0 0.0
      %233 = vmatpush1.msra.mxu0 0.0
      %234 = vmatprep.mubr.f32.mxu0 0.0
      %235 = vmatmul.mubr.f32.gmra.mrb[0].mxu0 %v165
      %v236 = vpop.f32.mrb[0].mxu0
      %v237 = vadd.f32 %v146, %v236
      %v238 = vpop.f32.mrb[0].mxu0
      %v239 = vadd.f32 %v150, %v238
      %240 = vmatprep.mubr.f32.mxu0 0.0
      %241 = vmatmul.mubr.f32.gmra.mrb[0].mxu0 %v168
      %v242 = vpop.f32.mrb[0].mxu0
      %v243 = vadd.f32 %v146, %v242
      %v244 = vpop.f32.mrb[0].mxu0
      %v245 = vadd.f32 %v150, %v244
      %246 = vdwg.mxu0
      %247 = vmatprep.subr.mxu0 %v128
      %248 = vmatpush1.msra.mxu0 %v127
      %249 = vmatprep.subr.mxu0 %v132
      %250 = vmatpush1.msra.mxu0 %v131
      %251 = vmatprep.subr.mxu0 %v136
      %252 = vmatpush1.msra.mxu0 %v135
      %253 = vmatprep.subr.mxu0 %v140
      %254 = vmatpush1.msra.mxu0 %v139
      %255 = vmatprep.subr.mxu0 0.0
      %256 = vmatpush1.msra.mxu0 0.0
      %257 = vmatprep.subr.mxu0 0.0
      %258 = vmatpush1.msra.mxu0 0.0
      %259 = vmatprep.subr.mxu0 0.0
      %260 = vmatpush1.msra.mxu0 0.0
      %261 = vmatprep.subr.mxu0 0.0
      %262 = vmatpush1.msra.mxu0 0.0
      %263 = vmatprep.subr.mxu0 0.0
      %264 = vmatpush1.msra.mxu0 0.0
      %265 = vmatprep.subr.mxu0 0.0
      %266 = vmatpush1.msra.mxu0 0.0
      %267 = vmatprep.subr.mxu0 0.0
      %268 = vmatpush1.msra.mxu0 0.0
      %269 = vmatprep.subr.mxu0 0.0
      %270 = vmatpush1.msra.mxu0 0.0
      %271 = vmatprep.subr.mxu0 0.0
      %272 = vmatpush1.msra.mxu0 0.0
      %273 = vmatprep.subr.mxu0 0.0
      %274 = vmatpush1.msra.mxu0 0.0
      %275 = vmatprep.subr.mxu0 0.0
      %276 = vmatpush1.msra.mxu0 0.0
      %277 = vmatprep.subr.mxu0 0.0
      %278 = vmatpush1.msra.mxu0 0.0
      %279 = vmatprep.subr.mxu0 0.0
      %280 = vmatpush1.msra.mxu0 0.0
      %281 = vmatprep.subr.mxu0 0.0
      %282 = vmatpush1.msra.mxu0 0.0
      %283 = vmatprep.subr.mxu0 0.0
      %284 = vmatpush1.msra.mxu0 0.0
      %285 = vmatprep.subr.mxu0 0.0
      %286 = vmatpush1.msra.mxu0 0.0
      %287 = vmatprep.subr.mxu0 0.0
      %288 = vmatpush1.msra.mxu0 0.0
      %289 = vmatprep.subr.mxu0 0.0
      %290 = vmatpush1.msra.mxu0 0.0
      %291 = vmatprep.subr.mxu0 0.0
      %292 = vmatpush1.msra.mxu0 0.0
      %293 = vmatprep.subr.mxu0 0.0
      %294 = vmatpush1.msra.mxu0 0.0
      %295 = vmatprep.subr.mxu0 0.0
      %296 = vmatpush1.msra.mxu0 0.0
      %297 = vmatprep.subr.mxu0 0.0
      %298 = vmatpush1.msra.mxu0 0.0
      %299 = vmatprep.subr.mxu0 0.0
      %300 = vmatpush1.msra.mxu0 0.0
      %301 = vmatprep.subr.mxu0 0.0
      %302 = vmatpush1.msra.mxu0 0.0
      %303 = vmatprep.subr.mxu0 0.0
      %304 = vmatpush1.msra.mxu0 0.0
      %305 = vmatprep.subr.mxu0 0.0
      %306 = vmatpush1.msra.mxu0 0.0
      %307 = vmatprep.subr.mxu0 0.0
      %308 = vmatpush1.msra.mxu0 0.0
      %309 = vmatprep.subr.mxu0 0.0
      %310 = vmatpush1.msra.mxu0 0.0
      %311 = vmatprep.mubr.f32.mxu0 0.0
      %312 = vmatmul.mubr.f32.gmra.mrb[0].mxu0 %v165
      %v313 = vpop.f32.mrb[0].mxu0
      %v314 = vadd.f32 %v154, %v313
      %v315 = vpop.f32.mrb[0].mxu0
      %v316 = vadd.f32 %v158, %v315
      %317 = vmatprep.mubr.f32.mxu0 0.0
      %318 = vmatmul.mubr.f32.gmra.mrb[0].mxu0 %v168
      %v319 = vpop.f32.mrb[0].mxu0
      %v320 = vadd.f32 %v154, %v319
      %v321 = vpop.f32.mrb[0].mxu0
      %v322 = vadd.f32 %v158, %v321
      %323 = vdwg.mxu0
      %324 = vst [vmem:[#allocation2] sm:$0xff] %v237
      %325 = vst [vmem:[#allocation2 + $0x8] sm:$0xff] %v239
      %326 = vst [vmem:[#allocation2 + $0x10] sm:$0xff] %v314
      %327 = vst [vmem:[#allocation2 + $0x18] sm:$0xff] %v316
      %328 = vst [vmem:[#allocation2 + $0x20] sm:$0xff] %v243
      %329 = vst [vmem:[#allocation2 + $0x28] sm:$0xff] %v245
      %330 = vst [vmem:[#allocation2 + $0x30] sm:$0xff] %v320
      %331 = vst [vmem:[#allocation2 + $0x38] sm:$0xff] %v322
      %v332 = vld [vmem:[#allocation12] sm:$0xff]
      %v333 = vld [vmem:[#allocation12 + $0x8] sm:$0xff]
      %v334 = vld [vmem:[#allocation12 + $0x10] sm:$0xff]
      %v335 = vld [vmem:[#allocation12 + $0x18] sm:$0xff]
      %v336 = vld [vmem:[#allocation12 + $0x20] sm:$0xff]
      %v337 = vld [vmem:[#allocation12 + $0x28] sm:$0xff]
      %v338 = vld [vmem:[#allocation12 + $0x30] sm:$0xff]
      %v339 = vld [vmem:[#allocation12 + $0x38] sm:$0xff]
      %v340 = vld [vmem:[#allocation12 + $0x40] sm:$0xff]
      %v341 = vld [vmem:[#allocation12 + $0x48] sm:$0xff]
      %v342 = vld [vmem:[#allocation12 + $0x50] sm:$0xff]
      %v343 = vld [vmem:[#allocation12 + $0x58] sm:$0xff]
      %v344 = vld [vmem:[#allocation12 + $0x60] sm:$0xff]
      %v345 = vld [vmem:[#allocation12 + $0x68] sm:$0xff]
      %v346 = vld [vmem:[#allocation12 + $0x70] sm:$0xff]
      %v347 = vld [vmem:[#allocation12 + $0x78] sm:$0xff]
      %v348 = vld [vmem:[#allocation12 + $0x80] sm:$0xff]
      %v349 = vld [vmem:[#allocation12 + $0x88] sm:$0xff]
      %v350 = vld [vmem:[#allocation12 + $0x90] sm:$0xff]
      %v351 = vld [vmem:[#allocation12 + $0x98] sm:$0xff]
      %v352 = vld [vmem:[#allocation12 + $0xa0] sm:$0xff]
      %v353 = vld [vmem:[#allocation12 + $0xa8] sm:$0xff]
      %v354 = vld [vmem:[#allocation12 + $0xb0] sm:$0xff]
      %v355 = vld [vmem:[#allocation12 + $0xb8] sm:$0xff]
      %v356 = vld [vmem:[#allocation12 + $0xc0] sm:$0xff]
      %v357 = vld [vmem:[#allocation12 + $0xc8] sm:$0xff]
      %v358 = vld [vmem:[#allocation12 + $0xd0] sm:$0xff]
      %v359 = vld [vmem:[#allocation12 + $0xd8] sm:$0xff]
      %v360 = vld [vmem:[#allocation12 + $0xe0] sm:$0xff]
      %v361 = vld [vmem:[#allocation12 + $0xe8] sm:$0xff]
      %v362 = vld [vmem:[#allocation12 + $0xf0] sm:$0xff]
      %v363 = vld [vmem:[#allocation12 + $0xf8] sm:$0xff]
      %v364 = vld [vmem:[#allocation12 + $0x100] sm:$0xff]
      %v365 = vld [vmem:[#allocation12 + $0x108] sm:$0xff]
      %v366 = vld [vmem:[#allocation12 + $0x110] sm:$0xff]
      %v367 = vld [vmem:[#allocation12 + $0x118] sm:$0xff]
      %v368 = vld [vmem:[#allocation12 + $0x120] sm:$0xff]
      %v369 = vld [vmem:[#allocation12 + $0x128] sm:$0xff]
      %v370 = vld [vmem:[#allocation12 + $0x130] sm:$0xff]
      %v371 = vld [vmem:[#allocation12 + $0x138] sm:$0xff]
      %v372 = vld [vmem:[#allocation12 + $0x140] sm:$0xff]
      %v373 = vld [vmem:[#allocation12 + $0x148] sm:$0xff]
      %v374 = vld [vmem:[#allocation12 + $0x150] sm:$0xff]
      %v375 = vld [vmem:[#allocation12 + $0x158] sm:$0xff]
      %v376 = vld [vmem:[#allocation12 + $0x160] sm:$0xff]
      %v377 = vld [vmem:[#allocation12 + $0x168] sm:$0xff]
      %v378 = vld [vmem:[#allocation12 + $0x170] sm:$0xff]
      %v379 = vld [vmem:[#allocation12 + $0x178] sm:$0xff]
      %v380 = vld [vmem:[#allocation12 + $0x180] sm:$0xff]
      %v381 = vld [vmem:[#allocation12 + $0x188] sm:$0xff]
      %v382 = vld [vmem:[#allocation12 + $0x190] sm:$0xff]
      %v383 = vld [vmem:[#allocation12 + $0x198] sm:$0xff]
      %v384 = vld [vmem:[#allocation12 + $0x1a0] sm:$0xff]
      %v385 = vld [vmem:[#allocation12 + $0x1a8] sm:$0xff]
      %v386 = vld [vmem:[#allocation12 + $0x1b0] sm:$0xff]
      %v387 = vld [vmem:[#allocation12 + $0x1b8] sm:$0xff]
      %v388 = vld [vmem:[#allocation12 + $0x1c0] sm:$0xff]
      %v389 = vld [vmem:[#allocation12 + $0x1c8] sm:$0xff]
      %v390 = vld [vmem:[#allocation12 + $0x1d0] sm:$0xff]
      %v391 = vld [vmem:[#allocation12 + $0x1d8] sm:$0xff]
      %v392 = vld [vmem:[#allocation12 + $0x1e0] sm:$0xff]
      %v393 = vld [vmem:[#allocation12 + $0x1e8] sm:$0xff]
      %v394 = vld [vmem:[#allocation12 + $0x1f0] sm:$0xff]
      %v395 = vld [vmem:[#allocation12 + $0x1f8] sm:$0xff]
      %v396 = vld [vmem:[#allocation14] sm:$0xff]
      %v397 = vld [vmem:[#allocation14 + $0x8] sm:$0xff]
      %v398 = vld [vmem:[#allocation14 + $0x10] sm:$0xff]
      %v399 = vld [vmem:[#allocation14 + $0x18] sm:$0xff]
      %v400 = vld [vmem:[#allocation14 + $0x20] sm:$0xff]
      %v401 = vld [vmem:[#allocation14 + $0x28] sm:$0xff]
      %v402 = vld [vmem:[#allocation14 + $0x30] sm:$0xff]
      %v403 = vld [vmem:[#allocation14 + $0x38] sm:$0xff]
      %v404 = vld [vmem:[#allocation14 + $0x40] sm:$0xff]
      %v405 = vld [vmem:[#allocation14 + $0x48] sm:$0xff]
      %v406 = vld [vmem:[#allocation14 + $0x50] sm:$0xff]
      %v407 = vld [vmem:[#allocation14 + $0x58] sm:$0xff]
      %v408 = vld [vmem:[#allocation14 + $0x60] sm:$0xff]
      %v409 = vld [vmem:[#allocation14 + $0x68] sm:$0xff]
      %v410 = vld [vmem:[#allocation14 + $0x70] sm:$0xff]
      %v411 = vld [vmem:[#allocation14 + $0x78] sm:$0xff]
      %v412 = vld [vmem:[#allocation14 + $0x80] sm:$0xff]
      %v413 = vld [vmem:[#allocation14 + $0x88] sm:$0xff]
      %v414 = vld [vmem:[#allocation14 + $0x90] sm:$0xff]
      %v415 = vld [vmem:[#allocation14 + $0x98] sm:$0xff]
      %v416 = vld [vmem:[#allocation14 + $0xa0] sm:$0xff]
      %v417 = vld [vmem:[#allocation14 + $0xa8] sm:$0xff]
      %v418 = vld [vmem:[#allocation14 + $0xb0] sm:$0xff]
      %v419 = vld [vmem:[#allocation14 + $0xb8] sm:$0xff]
      %v420 = vld [vmem:[#allocation14 + $0xc0] sm:$0xff]
      %v421 = vld [vmem:[#allocation14 + $0xc8] sm:$0xff]
      %v422 = vld [vmem:[#allocation14 + $0xd0] sm:$0xff]
      %v423 = vld [vmem:[#allocation14 + $0xd8] sm:$0xff]
      %v424 = vld [vmem:[#allocation14 + $0xe0] sm:$0xff]
      %v425 = vld [vmem:[#allocation14 + $0xe8] sm:$0xff]
      %v426 = vld [vmem:[#allocation14 + $0xf0] sm:$0xff]
      %v427 = vld [vmem:[#allocation14 + $0xf8] sm:$0xff]
      %v428 = vld [vmem:[#allocation14 + $0x100] sm:$0xff]
      %v429 = vld [vmem:[#allocation14 + $0x108] sm:$0xff]
      %v430 = vld [vmem:[#allocation14 + $0x110] sm:$0xff]
      %v431 = vld [vmem:[#allocation14 + $0x118] sm:$0xff]
      %v432 = vld [vmem:[#allocation14 + $0x120] sm:$0xff]
      %v433 = vld [vmem:[#allocation14 + $0x128] sm:$0xff]
      %v434 = vld [vmem:[#allocation14 + $0x130] sm:$0xff]
      %v435 = vld [vmem:[#allocation14 + $0x138] sm:$0xff]
      %v436 = vld [vmem:[#allocation14 + $0x140] sm:$0xff]
      %v437 = vld [vmem:[#allocation14 + $0x148] sm:$0xff]
      %v438 = vld [vmem:[#allocation14 + $0x150] sm:$0xff]
      %v439 = vld [vmem:[#allocation14 + $0x158] sm:$0xff]
      %v440 = vld [vmem:[#allocation14 + $0x160] sm:$0xff]
      %v441 = vld [vmem:[#allocation14 + $0x168] sm:$0xff]
      %v442 = vld [vmem:[#allocation14 + $0x170] sm:$0xff]
      %v443 = vld [vmem:[#allocation14 + $0x178] sm:$0xff]
      %v444 = vld [vmem:[#allocation14 + $0x180] sm:$0xff]
      %v445 = vld [vmem:[#allocation14 + $0x188] sm:$0xff]
      %v446 = vld [vmem:[#allocation14 + $0x190] sm:$0xff]
      %v447 = vld [vmem:[#allocation14 + $0x198] sm:$0xff]
      %v448 = vld [vmem:[#allocation14 + $0x1a0] sm:$0xff]
      %v449 = vld [vmem:[#allocation14 + $0x1a8] sm:$0xff]
      %v450 = vld [vmem:[#allocation14 + $0x1b0] sm:$0xff]
      %v451 = vld [vmem:[#allocation14 + $0x1b8] sm:$0xff]
      %v452 = vld [vmem:[#allocation14 + $0x1c0] sm:$0xff]
      %v453 = vld [vmem:[#allocation14 + $0x1c8] sm:$0xff]
      %v454 = vld [vmem:[#allocation14 + $0x1d0] sm:$0xff]
      %v455 = vld [vmem:[#allocation14 + $0x1d8] sm:$0xff]
      %v456 = vld [vmem:[#allocation14 + $0x1e0] sm:$0xff]
      %v457 = vld [vmem:[#allocation14 + $0x1e8] sm:$0xff]
      %v458 = vld [vmem:[#allocation14 + $0x1f0] sm:$0xff]
      %v459 = vld [vmem:[#allocation14 + $0x1f8] sm:$0xff]
      %v460 = vld [vmem:[#allocation14 + $0x200] sm:$0xff]
      %v461 = vld [vmem:[#allocation14 + $0x208] sm:$0xff]
      %v462 = vld [vmem:[#allocation14 + $0x210] sm:$0xff]
      %v463 = vld [vmem:[#allocation14 + $0x218] sm:$0xff]
      %v464 = vld [vmem:[#allocation14 + $0x220] sm:$0xff]
      %v465 = vld [vmem:[#allocation14 + $0x228] sm:$0xff]
      %v466 = vld [vmem:[#allocation14 + $0x230] sm:$0xff]
      %v467 = vld [vmem:[#allocation14 + $0x238] sm:$0xff]
      %v468 = vld [vmem:[#allocation14 + $0x240] sm:$0xff]
      %v469 = vld [vmem:[#allocation14 + $0x248] sm:$0xff]
      %v470 = vld [vmem:[#allocation14 + $0x250] sm:$0xff]
      %v471 = vld [vmem:[#allocation14 + $0x258] sm:$0xff]
      %v472 = vld [vmem:[#allocation14 + $0x260] sm:$0xff]
      %v473 = vld [vmem:[#allocation14 + $0x268] sm:$0xff]
      %v474 = vld [vmem:[#allocation14 + $0x270] sm:$0xff]
      %v475 = vld [vmem:[#allocation14 + $0x278] sm:$0xff]
      %v476 = vld [vmem:[#allocation14 + $0x280] sm:$0xff]
      %v477 = vld [vmem:[#allocation14 + $0x288] sm:$0xff]
      %v478 = vld [vmem:[#allocation14 + $0x290] sm:$0xff]
      %v479 = vld [vmem:[#allocation14 + $0x298] sm:$0xff]
      %v480 = vld [vmem:[#allocation14 + $0x2a0] sm:$0xff]
      %v481 = vld [vmem:[#allocation14 + $0x2a8] sm:$0xff]
      %v482 = vld [vmem:[#allocation14 + $0x2b0] sm:$0xff]
      %v483 = vld [vmem:[#allocation14 + $0x2b8] sm:$0xff]
      %v484 = vld [vmem:[#allocation14 + $0x2c0] sm:$0xff]
      %v485 = vld [vmem:[#allocation14 + $0x2c8] sm:$0xff]
      %v486 = vld [vmem:[#allocation14 + $0x2d0] sm:$0xff]
      %v487 = vld [vmem:[#allocation14 + $0x2d8] sm:$0xff]
      %v488 = vld [vmem:[#allocation14 + $0x2e0] sm:$0xff]
      %v489 = vld [vmem:[#allocation14 + $0x2e8] sm:$0xff]
      %v490 = vld [vmem:[#allocation14 + $0x2f0] sm:$0xff]
      %v491 = vld [vmem:[#allocation14 + $0x2f8] sm:$0xff]
      %v492 = vld [vmem:[#allocation14 + $0x300] sm:$0xff]
      %v493 = vld [vmem:[#allocation14 + $0x308] sm:$0xff]
      %v494 = vld [vmem:[#allocation14 + $0x310] sm:$0xff]
      %v495 = vld [vmem:[#allocation14 + $0x318] sm:$0xff]
      %v496 = vld [vmem:[#allocation14 + $0x320] sm:$0xff]
      %v497 = vld [vmem:[#allocation14 + $0x328] sm:$0xff]
      %v498 = vld [vmem:[#allocation14 + $0x330] sm:$0xff]
      %v499 = vld [vmem:[#allocation14 + $0x338] sm:$0xff]
      %v500 = vld [vmem:[#allocation14 + $0x340] sm:$0xff]
      %v501 = vld [vmem:[#allocation14 + $0x348] sm:$0xff]
      %v502 = vld [vmem:[#allocation14 + $0x350] sm:$0xff]
      %v503 = vld [vmem:[#allocation14 + $0x358] sm:$0xff]
      %v504 = vld [vmem:[#allocation14 + $0x360] sm:$0xff]
      %v505 = vld [vmem:[#allocation14 + $0x368] sm:$0xff]
      %v506 = vld [vmem:[#allocation14 + $0x370] sm:$0xff]
      %v507 = vld [vmem:[#allocation14 + $0x378] sm:$0xff]
      %v508 = vld [vmem:[#allocation14 + $0x380] sm:$0xff]
      %v509 = vld [vmem:[#allocation14 + $0x388] sm:$0xff]
      %v510 = vld [vmem:[#allocation14 + $0x390] sm:$0xff]
      %v511 = vld [vmem:[#allocation14 + $0x398] sm:$0xff]
      %v512 = vld [vmem:[#allocation14 + $0x3a0] sm:$0xff]
      %v513 = vld [vmem:[#allocation14 + $0x3a8] sm:$0xff]
      %v514 = vld [vmem:[#allocation14 + $0x3b0] sm:$0xff]
      %v515 = vld [vmem:[#allocation14 + $0x3b8] sm:$0xff]
      %v516 = vld [vmem:[#allocation14 + $0x3c0] sm:$0xff]
      %v517 = vld [vmem:[#allocation14 + $0x3c8] sm:$0xff]
      %v518 = vld [vmem:[#allocation14 + $0x3d0] sm:$0xff]
      %v519 = vld [vmem:[#allocation14 + $0x3d8] sm:$0xff]
      %v520 = vld [vmem:[#allocation14 + $0x3e0] sm:$0xff]
      %v521 = vld [vmem:[#allocation14 + $0x3e8] sm:$0xff]
      %v522 = vld [vmem:[#allocation14 + $0x3f0] sm:$0xff]
      %v523 = vld [vmem:[#allocation14 + $0x3f8] sm:$0xff]
      %v524 = vld [vmem:[%s7] sm:$0xf]
      %v526 = vlaneseq
      %v527 = vshrl.u32 %v526, 7
      %v528 = vsub.s32 0, %v527
      %v529 = vrot.slane %v524, %v528
      %v530 = vlaneseq
      %v531 = vshrl.u32 %v530, 7
      %v532 = vsub.s32 1, %v531
      %v533 = vrot.slane %v524, %v532
      %v534 = vlaneseq
      %v535 = vshrl.u32 %v534, 7
      %v536 = vsub.s32 2, %v535
      %v537 = vrot.slane %v524, %v536
      %v538 = vlaneseq
      %v539 = vshrl.u32 %v538, 7
      %v540 = vsub.s32 3, %v539
      %v541 = vrot.slane %v524, %v540
      %v546 = vld [vmem:[#allocation3] sm:$0x3]
      %v547 = vld [vmem:[#allocation4] sm:$0x3]
      %v548 = vld [vmem:[#allocation5] sm:$0x3]
      %v549 = vld [vmem:[#allocation6] sm:$0x3]
      %v550 = vld [vmem:[%s2] sm:$0x3]
      %v551 = vld [vmem:[#allocation2] sm:$0x3]
      %v552 = vld [vmem:[#allocation2 + $0x8] sm:$0x3]
      %v553 = vld [vmem:[#allocation2 + $0x10] sm:$0x3]
      %v554 = vld [vmem:[#allocation2 + $0x18] sm:$0x3]
      %555 = vmatprep.subr.mxu0 %v333
      %556 = vmatpush1.msra.mxu0 %v332
      %557 = vmatprep.subr.mxu0 %v337
      %558 = vmatpush1.msra.mxu0 %v336
      %559 = vmatprep.subr.mxu0 %v341
      %560 = vmatpush1.msra.mxu0 %v340
      %561 = vmatprep.subr.mxu0 %v345
      %562 = vmatpush1.msra.mxu0 %v344
      %563 = vmatprep.subr.mxu0 %v349
      %564 = vmatpush1.msra.mxu0 %v348
      %565 = vmatprep.subr.mxu0 %v353
      %566 = vmatpush1.msra.mxu0 %v352
      %567 = vmatprep.subr.mxu0 %v357
      %568 = vmatpush1.msra.mxu0 %v356
      %569 = vmatprep.subr.mxu0 %v361
      %570 = vmatpush1.msra.mxu0 %v360
      %571 = vmatprep.subr.mxu0 %v365
      %572 = vmatpush1.msra.mxu0 %v364
      %573 = vmatprep.subr.mxu0 %v369
      %574 = vmatpush1.msra.mxu0 %v368
      %575 = vmatprep.subr.mxu0 %v373
      %576 = vmatpush1.msra.mxu0 %v372
      %577 = vmatprep.subr.mxu0 %v377
      %578 = vmatpush1.msra.mxu0 %v376
      %579 = vmatprep.subr.mxu0 %v381
      %580 = vmatpush1.msra.mxu0 %v380
      %581 = vmatprep.subr.mxu0 %v385
      %582 = vmatpush1.msra.mxu0 %v384
      %583 = vmatprep.subr.mxu0 %v389
      %584 = vmatpush1.msra.mxu0 %v388
      %585 = vmatprep.subr.mxu0 %v393
      %586 = vmatpush1.msra.mxu0 %v392
      %587 = vmatprep.subr.mxu0 0.0
      %588 = vmatpush1.msra.mxu0 0.0
      %589 = vmatprep.subr.mxu0 0.0
      %590 = vmatpush1.msra.mxu0 0.0
      %591 = vmatprep.subr.mxu0 0.0
      %592 = vmatpush1.msra.mxu0 0.0
      %593 = vmatprep.subr.mxu0 0.0
      %594 = vmatpush1.msra.mxu0 0.0
      %595 = vmatprep.subr.mxu0 0.0
      %596 = vmatpush1.msra.mxu0 0.0
      %597 = vmatprep.subr.mxu0 0.0
      %598 = vmatpush1.msra.mxu0 0.0
      %599 = vmatprep.subr.mxu0 0.0
      %600 = vmatpush1.msra.mxu0 0.0
      %601 = vmatprep.subr.mxu0 0.0
      %602 = vmatpush1.msra.mxu0 0.0
      %603 = vmatprep.subr.mxu0 0.0
      %604 = vmatpush1.msra.mxu0 0.0
      %605 = vmatprep.subr.mxu0 0.0
      %606 = vmatpush1.msra.mxu0 0.0
      %607 = vmatprep.subr.mxu0 0.0
      %608 = vmatpush1.msra.mxu0 0.0
      %609 = vmatprep.subr.mxu0 0.0
      %610 = vmatpush1.msra.mxu0 0.0
      %611 = vmatprep.subr.mxu0 0.0
      %612 = vmatpush1.msra.mxu0 0.0
      %613 = vmatprep.subr.mxu0 0.0
      %614 = vmatpush1.msra.mxu0 0.0
      %615 = vmatprep.subr.mxu0 0.0
      %616 = vmatpush1.msra.mxu0 0.0
      %617 = vmatprep.subr.mxu0 0.0
      %618 = vmatpush1.msra.mxu0 0.0
      %619 = vmatprep.mubr.f32.mxu0 0.0
      %620 = vmatmul.mubr.f32.gmra.mrb[0].mxu0 %v546
      %v621 = vpop.f32.mrb[0].mxu0
      %v622 = vadd.f32 0.0, %v621
      %v623 = vpop.f32.mrb[0].mxu0
      %v624 = vadd.f32 0.0, %v623
      %625 = vdwg.mxu0
      %626 = vmatprep.subr.mxu0 %v335
      %627 = vmatpush1.msra.mxu0 %v334
      %628 = vmatprep.subr.mxu0 %v339
      %629 = vmatpush1.msra.mxu0 %v338
      %630 = vmatprep.subr.mxu0 %v343
      %631 = vmatpush1.msra.mxu0 %v342
      %632 = vmatprep.subr.mxu0 %v347
      %633 = vmatpush1.msra.mxu0 %v346
      %634 = vmatprep.subr.mxu0 %v351
      %635 = vmatpush1.msra.mxu0 %v350
      %636 = vmatprep.subr.mxu0 %v355
      %637 = vmatpush1.msra.mxu0 %v354
      %638 = vmatprep.subr.mxu0 %v359
      %639 = vmatpush1.msra.mxu0 %v358
      %640 = vmatprep.subr.mxu0 %v363
      %641 = vmatpush1.msra.mxu0 %v362
      %642 = vmatprep.subr.mxu0 %v367
      %643 = vmatpush1.msra.mxu0 %v366
      %644 = vmatprep.subr.mxu0 %v371
      %645 = vmatpush1.msra.mxu0 %v370
      %646 = vmatprep.subr.mxu0 %v375
      %647 = vmatpush1.msra.mxu0 %v374
      %648 = vmatprep.subr.mxu0 %v379
      %649 = vmatpush1.msra.mxu0 %v378
      %650 = vmatprep.subr.mxu0 %v383
      %651 = vmatpush1.msra.mxu0 %v382
      %652 = vmatprep.subr.mxu0 %v387
      %653 = vmatpush1.msra.mxu0 %v386
      %654 = vmatprep.subr.mxu0 %v391
      %655 = vmatpush1.msra.mxu0 %v390
      %656 = vmatprep.subr.mxu0 %v395
      %657 = vmatpush1.msra.mxu0 %v394
      %658 = vmatprep.subr.mxu0 0.0
      %659 = vmatpush1.msra.mxu0 0.0
      %660 = vmatprep.subr.mxu0 0.0
      %661 = vmatpush1.msra.mxu0 0.0
      %662 = vmatprep.subr.mxu0 0.0
      %663 = vmatpush1.msra.mxu0 0.0
      %664 = vmatprep.subr.mxu0 0.0
      %665 = vmatpush1.msra.mxu0 0.0
      %666 = vmatprep.subr.mxu0 0.0
      %667 = vmatpush1.msra.mxu0 0.0
      %668 = vmatprep.subr.mxu0 0.0
      %669 = vmatpush1.msra.mxu0 0.0
      %670 = vmatprep.subr.mxu0 0.0
      %671 = vmatpush1.msra.mxu0 0.0
      %672 = vmatprep.subr.mxu0 0.0
      %673 = vmatpush1.msra.mxu0 0.0
      %674 = vmatprep.subr.mxu0 0.0
      %675 = vmatpush1.msra.mxu0 0.0
      %676 = vmatprep.subr.mxu0 0.0
      %677 = vmatpush1.msra.mxu0 0.0
      %678 = vmatprep.subr.mxu0 0.0
      %679 = vmatpush1.msra.mxu0 0.0
      %680 = vmatprep.subr.mxu0 0.0
      %681 = vmatpush1.msra.mxu0 0.0
      %682 = vmatprep.subr.mxu0 0.0
      %683 = vmatpush1.msra.mxu0 0.0
      %684 = vmatprep.subr.mxu0 0.0
      %685 = vmatpush1.msra.mxu0 0.0
      %686 = vmatprep.subr.mxu0 0.0
      %687 = vmatpush1.msra.mxu0 0.0
      %688 = vmatprep.subr.mxu0 0.0
      %689 = vmatpush1.msra.mxu0 0.0
      %690 = vmatprep.mubr.f32.mxu0 0.0
      %691 = vmatmul.mubr.f32.gmra.mrb[0].mxu0 %v546
      %v692 = vpop.f32.mrb[0].mxu0
      %v693 = vadd.f32 0.0, %v692
      %v694 = vpop.f32.mrb[0].mxu0
      %v695 = vadd.f32 0.0, %v694
      %696 = vdwg.mxu0
      %v697 = vadd.f32 %v551, %v622
      %v698 = vadd.f32 %v552, %v624
      %v699 = vadd.f32 %v553, %v693
      %v700 = vadd.f32 %v554, %v695
      %v701 = vxor.u32 %v697, 2147483648
      %v702 = vmul.f32 %v701, 1.442695
      %v703 = vpow.pop %v702
      %v704 = vadd.f32 %v703, 1.0
      %v705 = vrcp.pop %v704
      %v706 = vmul.f32 1.0, %v705
      %v707 = vxor.u32 %v698, 2147483648
      %v708 = vmul.f32 %v707, 1.442695
      %v709 = vpow.pop %v708
      %v710 = vadd.f32 %v709, 1.0
      %v711 = vrcp.pop %v710
      %v712 = vmul.f32 1.0, %v711
      %v713 = vtanh.pop %v699
      %v714 = vxor.u32 %v700, 2147483648
      %v715 = vmul.f32 %v714, 1.442695
      %v716 = vpow.pop %v715
      %v717 = vadd.f32 %v716, 1.0
      %v718 = vrcp.pop %v717
      %v719 = vmul.f32 1.0, %v718
      %v720 = vmul.f32 %v712, %v547
      %v721 = vmul.f32 %v706, %v713
      %v722 = vadd.f32 %v720, %v721
      %v723 = vtanh.pop %v722
      %v724 = vmul.f32 %v719, %v723
      %726 = vset.pattern.permute.xlu0 0
      %727 = vperm.xlu0 %726, %v550
      %v728 = vpop.permute.xlu0 %727
      %v730 = vmul.f32 %v728, %v722
      %v731 = vsub.f32 1.0, %v550
      %733 = vset.pattern.permute.xlu0 0
      %734 = vperm.xlu0 %733, %v731
      %v735 = vpop.permute.xlu0 %734
      %v737 = vmul.f32 %v735, %v547
      %v738 = vadd.f32 %v730, %v737
      %v739 = vmul.f32 %v728, %v724
      %v740 = vmul.f32 %v735, %v546
      %v741 = vadd.f32 %v739, %v740
      %742 = vmatprep.subr.mxu0 %v397
      %743 = vmatpush1.msra.mxu0 %v396
      %744 = vmatprep.subr.mxu0 %v401
      %745 = vmatpush1.msra.mxu0 %v400
      %746 = vmatprep.subr.mxu0 %v405
      %747 = vmatpush1.msra.mxu0 %v404
      %748 = vmatprep.subr.mxu0 %v409
      %749 = vmatpush1.msra.mxu0 %v408
      %750 = vmatprep.subr.mxu0 %v413
      %751 = vmatpush1.msra.mxu0 %v412
      %752 = vmatprep.subr.mxu0 %v417
      %753 = vmatpush1.msra.mxu0 %v416
      %754 = vmatprep.subr.mxu0 %v421
      %755 = vmatpush1.msra.mxu0 %v420
      %756 = vmatprep.subr.mxu0 %v425
      %757 = vmatpush1.msra.mxu0 %v424
      %758 = vmatprep.subr.mxu0 %v429
      %759 = vmatpush1.msra.mxu0 %v428
      %760 = vmatprep.subr.mxu0 %v433
      %761 = vmatpush1.msra.mxu0 %v432
      %762 = vmatprep.subr.mxu0 %v437
      %763 = vmatpush1.msra.mxu0 %v436
      %764 = vmatprep.subr.mxu0 %v441
      %765 = vmatpush1.msra.mxu0 %v440
      %766 = vmatprep.subr.mxu0 %v445
      %767 = vmatpush1.msra.mxu0 %v444
      %768 = vmatprep.subr.mxu0 %v449
      %769 = vmatpush1.msra.mxu0 %v448
      %770 = vmatprep.subr.mxu0 %v453
      %771 = vmatpush1.msra.mxu0 %v452
      %772 = vmatprep.subr.mxu0 %v457
      %773 = vmatpush1.msra.mxu0 %v456
      %774 = vmatprep.subr.mxu0 %v461
      %775 = vmatpush1.msra.mxu0 %v460
      %776 = vmatprep.subr.mxu0 %v465
      %777 = vmatpush1.msra.mxu0 %v464
      %778 = vmatprep.subr.mxu0 %v469
      %779 = vmatpush1.msra.mxu0 %v468
      %780 = vmatprep.subr.mxu0 %v473
      %781 = vmatpush1.msra.mxu0 %v472
      %782 = vmatprep.subr.mxu0 %v477
      %783 = vmatpush1.msra.mxu0 %v476
      %784 = vmatprep.subr.mxu0 %v481
      %785 = vmatpush1.msra.mxu0 %v480
      %786 = vmatprep.subr.mxu0 %v485
      %787 = vmatpush1.msra.mxu0 %v484
      %788 = vmatprep.subr.mxu0 %v489
      %789 = vmatpush1.msra.mxu0 %v488
      %790 = vmatprep.subr.mxu0 %v493
      %791 = vmatpush1.msra.mxu0 %v492
      %792 = vmatprep.subr.mxu0 %v497
      %793 = vmatpush1.msra.mxu0 %v496
      %794 = vmatprep.subr.mxu0 %v501
      %795 = vmatpush1.msra.mxu0 %v500
      %796 = vmatprep.subr.mxu0 %v505
      %797 = vmatpush1.msra.mxu0 %v504
      %798 = vmatprep.subr.mxu0 %v509
      %799 = vmatpush1.msra.mxu0 %v508
      %800 = vmatprep.subr.mxu0 %v513
      %801 = vmatpush1.msra.mxu0 %v512
      %802 = vmatprep.subr.mxu0 %v517
      %803 = vmatpush1.msra.mxu0 %v516
      %804 = vmatprep.subr.mxu0 %v521
      %805 = vmatpush1.msra.mxu0 %v520
      %806 = vmatprep.mubr.f32.mxu0 %v548
      %807 = vmatmul.mubr.f32.gmra.mrb[0].mxu0 %v741
      %v808 = vpop.f32.mrb[0].mxu0
      %v809 = vadd.f32 %v529, %v808
      %v810 = vpop.f32.mrb[0].mxu0
      %v811 = vadd.f32 %v533, %v810
      %812 = vdwg.mxu0
      %813 = vmatprep.subr.mxu0 %v399
      %814 = vmatpush1.msra.mxu0 %v398
      %815 = vmatprep.subr.mxu0 %v403
      %816 = vmatpush1.msra.mxu0 %v402
      %817 = vmatprep.subr.mxu0 %v407
      %818 = vmatpush1.msra.mxu0 %v406
      %819 = vmatprep.subr.mxu0 %v411
      %820 = vmatpush1.msra.mxu0 %v410
      %821 = vmatprep.subr.mxu0 %v415
      %822 = vmatpush1.msra.mxu0 %v414
      %823 = vmatprep.subr.mxu0 %v419
      %824 = vmatpush1.msra.mxu0 %v418
      %825 = vmatprep.subr.mxu0 %v423
      %826 = vmatpush1.msra.mxu0 %v422
      %827 = vmatprep.subr.mxu0 %v427
      %828 = vmatpush1.msra.mxu0 %v426
      %829 = vmatprep.subr.mxu0 %v431
      %830 = vmatpush1.msra.mxu0 %v430
      %831 = vmatprep.subr.mxu0 %v435
      %832 = vmatpush1.msra.mxu0 %v434
      %833 = vmatprep.subr.mxu0 %v439
      %834 = vmatpush1.msra.mxu0 %v438
      %835 = vmatprep.subr.mxu0 %v443
      %836 = vmatpush1.msra.mxu0 %v442
      %837 = vmatprep.subr.mxu0 %v447
      %838 = vmatpush1.msra.mxu0 %v446
      %839 = vmatprep.subr.mxu0 %v451
      %840 = vmatpush1.msra.mxu0 %v450
      %841 = vmatprep.subr.mxu0 %v455
      %842 = vmatpush1.msra.mxu0 %v454
      %843 = vmatprep.subr.mxu0 %v459
      %844 = vmatpush1.msra.mxu0 %v458
      %845 = vmatprep.subr.mxu0 %v463
      %846 = vmatpush1.msra.mxu0 %v462
      %847 = vmatprep.subr.mxu0 %v467
      %848 = vmatpush1.msra.mxu0 %v466
      %849 = vmatprep.subr.mxu0 %v471
      %850 = vmatpush1.msra.mxu0 %v470
      %851 = vmatprep.subr.mxu0 %v475
      %852 = vmatpush1.msra.mxu0 %v474
      %853 = vmatprep.subr.mxu0 %v479
      %854 = vmatpush1.msra.mxu0 %v478
      %855 = vmatprep.subr.mxu0 %v483
      %856 = vmatpush1.msra.mxu0 %v482
      %857 = vmatprep.subr.mxu0 %v487
      %858 = vmatpush1.msra.mxu0 %v486
      %859 = vmatprep.subr.mxu0 %v491
      %860 = vmatpush1.msra.mxu0 %v490
      %861 = vmatprep.subr.mxu0 %v495
      %862 = vmatpush1.msra.mxu0 %v494
      %863 = vmatprep.subr.mxu0 %v499
      %864 = vmatpush1.msra.mxu0 %v498
      %865 = vmatprep.subr.mxu0 %v503
      %866 = vmatpush1.msra.mxu0 %v502
      %867 = vmatprep.subr.mxu0 %v507
      %868 = vmatpush1.msra.mxu0 %v506
      %869 = vmatprep.subr.mxu0 %v511
      %870 = vmatpush1.msra.mxu0 %v510
      %871 = vmatprep.subr.mxu0 %v515
      %872 = vmatpush1.msra.mxu0 %v514
      %873 = vmatprep.subr.mxu0 %v519
      %874 = vmatpush1.msra.mxu0 %v518
      %875 = vmatprep.subr.mxu0 %v523
      %876 = vmatpush1.msra.mxu0 %v522
      %877 = vmatprep.mubr.f32.mxu0 %v548
      %878 = vmatmul.mubr.f32.gmra.mrb[0].mxu0 %v741
      %v879 = vpop.f32.mrb[0].mxu0
      %v880 = vadd.f32 %v537, %v879
      %v881 = vpop.f32.mrb[0].mxu0
      %v882 = vadd.f32 %v541, %v881
      %883 = vdwg.mxu0
      %v884 = vxor.u32 %v809, 2147483648
      %v885 = vmul.f32 %v884, 1.442695
      %v886 = vpow.pop %v885
      %v887 = vadd.f32 %v886, 1.0
      %v888 = vrcp.pop %v887
      %v889 = vmul.f32 1.0, %v888
      %v890 = vxor.u32 %v811, 2147483648
      %v891 = vmul.f32 %v890, 1.442695
      %v892 = vpow.pop %v891
      %v893 = vadd.f32 %v892, 1.0
      %v894 = vrcp.pop %v893
      %v895 = vmul.f32 1.0, %v894
      %v896 = vtanh.pop %v880
      %v897 = vxor.u32 %v882, 2147483648
      %v898 = vmul.f32 %v897, 1.442695
      %v899 = vpow.pop %v898
      %v900 = vadd.f32 %v899, 1.0
      %v901 = vrcp.pop %v900
      %v902 = vmul.f32 1.0, %v901
      %v903 = vmul.f32 %v895, %v549
      %v904 = vmul.f32 %v889, %v896
      %v905 = vadd.f32 %v903, %v904
      %v906 = vtanh.pop %v905
      %v907 = vmul.f32 %v902, %v906
      %v908 = vmul.f32 %v728, %v905
      %v909 = vmul.f32 %v735, %v549
      %v910 = vadd.f32 %v908, %v909
      %v911 = vmul.f32 %v728, %v907
      %v912 = vmul.f32 %v735, %v548
      %v913 = vadd.f32 %v911, %v912
      %v914 = vld [vmem:[%s2 + $0x2] sm:$0x3]
      %v915 = vld [vmem:[#allocation2] sm:$0xc]
      %v916 = vld [vmem:[#allocation2 + $0x8] sm:$0xc]
      %v917 = vld [vmem:[#allocation2 + $0x10] sm:$0xc]
      %v918 = vld [vmem:[#allocation2 + $0x18] sm:$0xc]
      %919 = vmatprep.subr.mxu0 %v333
      %920 = vmatpush1.msra.mxu0 %v332
      %921 = vmatprep.subr.mxu0 %v337
      %922 = vmatpush1.msra.mxu0 %v336
      %923 = vmatprep.subr.mxu0 %v341
      %924 = vmatpush1.msra.mxu0 %v340
      %925 = vmatprep.subr.mxu0 %v345
      %926 = vmatpush1.msra.mxu0 %v344
      %927 = vmatprep.subr.mxu0 %v349
      %928 = vmatpush1.msra.mxu0 %v348
      %929 = vmatprep.subr.mxu0 %v353
      %930 = vmatpush1.msra.mxu0 %v352
      %931 = vmatprep.subr.mxu0 %v357
      %932 = vmatpush1.msra.mxu0 %v356
      %933 = vmatprep.subr.mxu0 %v361
      %934 = vmatpush1.msra.mxu0 %v360
      %935 = vmatprep.subr.mxu0 %v365
      %936 = vmatpush1.msra.mxu0 %v364
      %937 = vmatprep.subr.mxu0 %v369
      %938 = vmatpush1.msra.mxu0 %v368
      %939 = vmatprep.subr.mxu0 %v373
      %940 = vmatpush1.msra.mxu0 %v372
      %941 = vmatprep.subr.mxu0 %v377
      %942 = vmatpush1.msra.mxu0 %v376
      %943 = vmatprep.subr.mxu0 %v381
      %944 = vmatpush1.msra.mxu0 %v380
      %945 = vmatprep.subr.mxu0 %v385
      %946 = vmatpush1.msra.mxu0 %v384
      %947 = vmatprep.subr.mxu0 %v389
      %948 = vmatpush1.msra.mxu0 %v388
      %949 = vmatprep.subr.mxu0 %v393
      %950 = vmatpush1.msra.mxu0 %v392
      %951 = vmatprep.subr.mxu0 0.0
      %952 = vmatpush1.msra.mxu0 0.0
      %953 = vmatprep.subr.mxu0 0.0
      %954 = vmatpush1.msra.mxu0 0.0
      %955 = vmatprep.subr.mxu0 0.0
      %956 = vmatpush1.msra.mxu0 0.0
      %957 = vmatprep.subr.mxu0 0.0
      %958 = vmatpush1.msra.mxu0 0.0
      %959 = vmatprep.subr.mxu0 0.0
      %960 = vmatpush1.msra.mxu0 0.0
      %961 = vmatprep.subr.mxu0 0.0
      %962 = vmatpush1.msra.mxu0 0.0
      %963 = vmatprep.subr.mxu0 0.0
      %964 = vmatpush1.msra.mxu0 0.0
      %965 = vmatprep.subr.mxu0 0.0
      %966 = vmatpush1.msra.mxu0 0.0
      %967 = vmatprep.subr.mxu0 0.0
      %968 = vmatpush1.msra.mxu0 0.0
      %969 = vmatprep.subr.mxu0 0.0
      %970 = vmatpush1.msra.mxu0 0.0
      %971 = vmatprep.subr.mxu0 0.0
      %972 = vmatpush1.msra.mxu0 0.0
      %973 = vmatprep.subr.mxu0 0.0
      %974 = vmatpush1.msra.mxu0 0.0
      %975 = vmatprep.subr.mxu0 0.0
      %976 = vmatpush1.msra.mxu0 0.0
      %977 = vmatprep.subr.mxu0 0.0
      %978 = vmatpush1.msra.mxu0 0.0
      %979 = vmatprep.subr.mxu0 0.0
      %980 = vmatpush1.msra.mxu0 0.0
      %981 = vmatprep.subr.mxu0 0.0
      %982 = vmatpush1.msra.mxu0 0.0
      %983 = vmatprep.mubr.f32.mxu0 0.0
      %984 = vmatmul.mubr.f32.gmra.mrb[0].mxu0 %v741
      %v985 = vpop.f32.mrb[0].mxu0
      %v986 = vadd.f32 0.0, %v985
      %v987 = vpop.f32.mrb[0].mxu0
      %v988 = vadd.f32 0.0, %v987
      %989 = vdwg.mxu0
      %990 = vmatprep.subr.mxu0 %v335
      %991 = vmatpush1.msra.mxu0 %v334
      %992 = vmatprep.subr.mxu0 %v339
      %993 = vmatpush1.msra.mxu0 %v338
      %994 = vmatprep.subr.mxu0 %v343
      %995 = vmatpush1.msra.mxu0 %v342
      %996 = vmatprep.subr.mxu0 %v347
      %997 = vmatpush1.msra.mxu0 %v346
      %998 = vmatprep.subr.mxu0 %v351
      %999 = vmatpush1.msra.mxu0 %v350
      %1000 = vmatprep.subr.mxu0 %v355
      %1001 = vmatpush1.msra.mxu0 %v354
      %1002 = vmatprep.subr.mxu0 %v359
      %1003 = vmatpush1.msra.mxu0 %v358
      %1004 = vmatprep.subr.mxu0 %v363
      %1005 = vmatpush1.msra.mxu0 %v362
      %1006 = vmatprep.subr.mxu0 %v367
      %1007 = vmatpush1.msra.mxu0 %v366
      %1008 = vmatprep.subr.mxu0 %v371
      %1009 = vmatpush1.msra.mxu0 %v370
      %1010 = vmatprep.subr.mxu0 %v375
      %1011 = vmatpush1.msra.mxu0 %v374
      %1012 = vmatprep.subr.mxu0 %v379
      %1013 = vmatpush1.msra.mxu0 %v378
      %1014 = vmatprep.subr.mxu0 %v383
      %1015 = vmatpush1.msra.mxu0 %v382
      %1016 = vmatprep.subr.mxu0 %v387
      %1017 = vmatpush1.msra.mxu0 %v386
      %1018 = vmatprep.subr.mxu0 %v391
      %1019 = vmatpush1.msra.mxu0 %v390
      %1020 = vmatprep.subr.mxu0 %v395
      %1021 = vmatpush1.msra.mxu0 %v394
      %1022 = vmatprep.subr.mxu0 0.0
      %1023 = vmatpush1.msra.mxu0 0.0
      %1024 = vmatprep.subr.mxu0 0.0
      %1025 = vmatpush1.msra.mxu0 0.0
      %1026 = vmatprep.subr.mxu0 0.0
      %1027 = vmatpush1.msra.mxu0 0.0
      %1028 = vmatprep.subr.mxu0 0.0
      %1029 = vmatpush1.msra.mxu0 0.0
      %1030 = vmatprep.subr.mxu0 0.0
      %1031 = vmatpush1.msra.mxu0 0.0
      %1032 = vmatprep.subr.mxu0 0.0
      %1033 = vmatpush1.msra.mxu0 0.0
      %1034 = vmatprep.subr.mxu0 0.0
      %1035 = vmatpush1.msra.mxu0 0.0
      %1036 = vmatprep.subr.mxu0 0.0
      %1037 = vmatpush1.msra.mxu0 0.0
      %1038 = vmatprep.subr.mxu0 0.0
      %1039 = vmatpush1.msra.mxu0 0.0
      %1040 = vmatprep.subr.mxu0 0.0
      %1041 = vmatpush1.msra.mxu0 0.0
      %1042 = vmatprep.subr.mxu0 0.0
      %1043 = vmatpush1.msra.mxu0 0.0
      %1044 = vmatprep.subr.mxu0 0.0
      %1045 = vmatpush1.msra.mxu0 0.0
      %1046 = vmatprep.subr.mxu0 0.0
      %1047 = vmatpush1.msra.mxu0 0.0
      %1048 = vmatprep.subr.mxu0 0.0
      %1049 = vmatpush1.msra.mxu0 0.0
      %1050 = vmatprep.subr.mxu0 0.0
      %1051 = vmatpush1.msra.mxu0 0.0
      %1052 = vmatprep.subr.mxu0 0.0
      %1053 = vmatpush1.msra.mxu0 0.0
      %1054 = vmatprep.mubr.f32.mxu0 0.0
      %1055 = vmatmul.mubr.f32.gmra.mrb[0].mxu0 %v741
      %v1056 = vpop.f32.mrb[0].mxu0
      %v1057 = vadd.f32 0.0, %v1056
      %v1058 = vpop.f32.mrb[0].mxu0
      %v1059 = vadd.f32 0.0, %v1058
      %1060 = vdwg.mxu0
      %v1065 = vrot.slane %v986, 6
      %v1066 = vrot.slane %v988, 6
      %v1067 = vrot.slane %v1057, 6
      %v1068 = vrot.slane %v1059, 6
      %v1073 = vadd.f32 %v915, %v1065
      %v1074 = vadd.f32 %v916, %v1066
      %v1075 = vadd.f32 %v917, %v1067
      %v1076 = vadd.f32 %v918, %v1068
      %v1077 = vxor.u32 %v1073, 2147483648
      %v1078 = vmul.f32 %v1077, 1.442695
      %v1079 = vpow.pop %v1078
      %v1080 = vadd.f32 %v1079, 1.0
      %v1081 = vrcp.pop %v1080
      %v1082 = vmul.f32 1.0, %v1081
      %v1083 = vxor.u32 %v1074, 2147483648
      %v1084 = vmul.f32 %v1083, 1.442695
      %v1085 = vpow.pop %v1084
      %v1086 = vadd.f32 %v1085, 1.0
      %v1087 = vrcp.pop %v1086
      %v1088 = vmul.f32 1.0, %v1087
      %v1089 = vtanh.pop %v1075
      %v1090 = vxor.u32 %v1076, 2147483648
      %v1091 = vmul.f32 %v1090, 1.442695
      %v1092 = vpow.pop %v1091
      %v1093 = vadd.f32 %v1092, 1.0
      %v1094 = vrcp.pop %v1093
      %v1095 = vmul.f32 1.0, %v1094
      %v1097 = vrot.slane %v738, 6
      %v1099 = vmul.f32 %v1088, %v1097
      %v1100 = vmul.f32 %v1082, %v1089
      %v1101 = vadd.f32 %v1099, %v1100
      %v1102 = vtanh.pop %v1101
      %v1103 = vmul.f32 %v1095, %v1102
      %1105 = vset.pattern.permute.xlu0 0
      %1106 = vperm.xlu0 %1105, %v914
      %v1107 = vpop.permute.xlu0 %1106
      %v1110 = vrot.slane %v1101, 2
      %v1112 = vmul.f32 %v1107, %v1110
      %v1113 = vsub.f32 1.0, %v914
      %1115 = vset.pattern.permute.xlu0 0
      %1116 = vperm.xlu0 %1115, %v1113
      %v1117 = vpop.permute.xlu0 %1116
      %v1119 = vmul.f32 %v1117, %v738
      %v1120 = vadd.f32 %v1112, %v1119
      %v1122 = vrot.slane %v1103, 2
      %v1124 = vmul.f32 %v1107, %v1122
      %v1125 = vmul.f32 %v1117, %v741
      %v1126 = vadd.f32 %v1124, %v1125
      %1127 = vmatprep.subr.mxu0 %v397
      %1128 = vmatpush1.msra.mxu0 %v396
      %1129 = vmatprep.subr.mxu0 %v401
      %1130 = vmatpush1.msra.mxu0 %v400
      %1131 = vmatprep.subr.mxu0 %v405
      %1132 = vmatpush1.msra.mxu0 %v404
      %1133 = vmatprep.subr.mxu0 %v409
      %1134 = vmatpush1.msra.mxu0 %v408
      %1135 = vmatprep.subr.mxu0 %v413
      %1136 = vmatpush1.msra.mxu0 %v412
      %1137 = vmatprep.subr.mxu0 %v417
      %1138 = vmatpush1.msra.mxu0 %v416
      %1139 = vmatprep.subr.mxu0 %v421
      %1140 = vmatpush1.msra.mxu0 %v420
      %1141 = vmatprep.subr.mxu0 %v425
      %1142 = vmatpush1.msra.mxu0 %v424
      %1143 = vmatprep.subr.mxu0 %v429
      %1144 = vmatpush1.msra.mxu0 %v428
      %1145 = vmatprep.subr.mxu0 %v433
      %1146 = vmatpush1.msra.mxu0 %v432
      %1147 = vmatprep.subr.mxu0 %v437
      %1148 = vmatpush1.msra.mxu0 %v436
      %1149 = vmatprep.subr.mxu0 %v441
      %1150 = vmatpush1.msra.mxu0 %v440
      %1151 = vmatprep.subr.mxu0 %v445
      %1152 = vmatpush1.msra.mxu0 %v444
      %1153 = vmatprep.subr.mxu0 %v449
      %1154 = vmatpush1.msra.mxu0 %v448
      %1155 = vmatprep.subr.mxu0 %v453
      %1156 = vmatpush1.msra.mxu0 %v452
      %1157 = vmatprep.subr.mxu0 %v457
      %1158 = vmatpush1.msra.mxu0 %v456
      %1159 = vmatprep.subr.mxu0 %v461
      %1160 = vmatpush1.msra.mxu0 %v460
      %1161 = vmatprep.subr.mxu0 %v465
      %1162 = vmatpush1.msra.mxu0 %v464
      %1163 = vmatprep.subr.mxu0 %v469
      %1164 = vmatpush1.msra.mxu0 %v468
      %1165 = vmatprep.subr.mxu0 %v473
      %1166 = vmatpush1.msra.mxu0 %v472
      %1167 = vmatprep.subr.mxu0 %v477
      %1168 = vmatpush1.msra.mxu0 %v476
      %1169 = vmatprep.subr.mxu0 %v481
      %1170 = vmatpush1.msra.mxu0 %v480
      %1171 = vmatprep.subr.mxu0 %v485
      %1172 = vmatpush1.msra.mxu0 %v484
      %1173 = vmatprep.subr.mxu0 %v489
      %1174 = vmatpush1.msra.mxu0 %v488
      %1175 = vmatprep.subr.mxu0 %v493
      %1176 = vmatpush1.msra.mxu0 %v492
      %1177 = vmatprep.subr.mxu0 %v497
      %1178 = vmatpush1.msra.mxu0 %v496
      %1179 = vmatprep.subr.mxu0 %v501
      %1180 = vmatpush1.msra.mxu0 %v500
      %1181 = vmatprep.subr.mxu0 %v505
      %1182 = vmatpush1.msra.mxu0 %v504
      %1183 = vmatprep.subr.mxu0 %v509
      %1184 = vmatpush1.msra.mxu0 %v508
      %1185 = vmatprep.subr.mxu0 %v513
      %1186 = vmatpush1.msra.mxu0 %v512
      %1187 = vmatprep.subr.mxu0 %v517
      %1188 = vmatpush1.msra.mxu0 %v516
      %1189 = vmatprep.subr.mxu0 %v521
      %1190 = vmatpush1.msra.mxu0 %v520
      %1191 = vmatprep.mubr.f32.mxu0 %v913
      %1192 = vmatmul.mubr.f32.gmra.mrb[0].mxu0 %v1126
      %v1193 = vpop.f32.mrb[0].mxu0
      %v1194 = vadd.f32 %v529, %v1193
      %v1195 = vpop.f32.mrb[0].mxu0
      %v1196 = vadd.f32 %v533, %v1195
      %1197 = vdwg.mxu0
      %1198 = vmatprep.subr.mxu0 %v399
      %1199 = vmatpush1.msra.mxu0 %v398
      %1200 = vmatprep.subr.mxu0 %v403
      %1201 = vmatpush1.msra.mxu0 %v402
      %1202 = vmatprep.subr.mxu0 %v407
      %1203 = vmatpush1.msra.mxu0 %v406
      %1204 = vmatprep.subr.mxu0 %v411
      %1205 = vmatpush1.msra.mxu0 %v410
      %1206 = vmatprep.subr.mxu0 %v415
      %1207 = vmatpush1.msra.mxu0 %v414
      %1208 = vmatprep.subr.mxu0 %v419
      %1209 = vmatpush1.msra.mxu0 %v418
      %1210 = vmatprep.subr.mxu0 %v423
      %1211 = vmatpush1.msra.mxu0 %v422
      %1212 = vmatprep.subr.mxu0 %v427
      %1213 = vmatpush1.msra.mxu0 %v426
      %1214 = vmatprep.subr.mxu0 %v431
      %1215 = vmatpush1.msra.mxu0 %v430
      %1216 = vmatprep.subr.mxu0 %v435
      %1217 = vmatpush1.msra.mxu0 %v434
      %1218 = vmatprep.subr.mxu0 %v439
      %1219 = vmatpush1.msra.mxu0 %v438
      %1220 = vmatprep.subr.mxu0 %v443
      %1221 = vmatpush1.msra.mxu0 %v442
      %1222 = vmatprep.subr.mxu0 %v447
      %1223 = vmatpush1.msra.mxu0 %v446
      %1224 = vmatprep.subr.mxu0 %v451
      %1225 = vmatpush1.msra.mxu0 %v450
      %1226 = vmatprep.subr.mxu0 %v455
      %1227 = vmatpush1.msra.mxu0 %v454
      %1228 = vmatprep.subr.mxu0 %v459
      %1229 = vmatpush1.msra.mxu0 %v458
      %1230 = vmatprep.subr.mxu0 %v463
      %1231 = vmatpush1.msra.mxu0 %v462
      %1232 = vmatprep.subr.mxu0 %v467
      %1233 = vmatpush1.msra.mxu0 %v466
      %1234 = vmatprep.subr.mxu0 %v471
      %1235 = vmatpush1.msra.mxu0 %v470
      %1236 = vmatprep.subr.mxu0 %v475
      %1237 = vmatpush1.msra.mxu0 %v474
      %1238 = vmatprep.subr.mxu0 %v479
      %1239 = vmatpush1.msra.mxu0 %v478
      %1240 = vmatprep.subr.mxu0 %v483
      %1241 = vmatpush1.msra.mxu0 %v482
      %1242 = vmatprep.subr.mxu0 %v487
      %1243 = vmatpush1.msra.mxu0 %v486
      %1244 = vmatprep.subr.mxu0 %v491
      %1245 = vmatpush1.msra.mxu0 %v490
      %1246 = vmatprep.subr.mxu0 %v495
      %1247 = vmatpush1.msra.mxu0 %v494
      %1248 = vmatprep.subr.mxu0 %v499
      %1249 = vmatpush1.msra.mxu0 %v498
      %1250 = vmatprep.subr.mxu0 %v503
      %1251 = vmatpush1.msra.mxu0 %v502
      %1252 = vmatprep.subr.mxu0 %v507
      %1253 = vmatpush1.msra.mxu0 %v506
      %1254 = vmatprep.subr.mxu0 %v511
      %1255 = vmatpush1.msra.mxu0 %v510
      %1256 = vmatprep.subr.mxu0 %v515
      %1257 = vmatpush1.msra.mxu0 %v514
      %1258 = vmatprep.subr.mxu0 %v519
      %1259 = vmatpush1.msra.mxu0 %v518
      %1260 = vmatprep.subr.mxu0 %v523
      %1261 = vmatpush1.msra.mxu0 %v522
      %1262 = vmatprep.mubr.f32.mxu0 %v913
      %1263 = vmatmul.mubr.f32.gmra.mrb[0].mxu0 %v1126
      %v1264 = vpop.f32.mrb[0].mxu0
      %v1265 = vadd.f32 %v537, %v1264
      %v1266 = vpop.f32.mrb[0].mxu0
      %v1267 = vadd.f32 %v541, %v1266
      %1268 = vdwg.mxu0
      %v1269 = vxor.u32 %v1194, 2147483648
      %v1270 = vmul.f32 %v1269, 1.442695
      %v1271 = vpow.pop %v1270
      %v1272 = vadd.f32 %v1271, 1.0
      %v1273 = vrcp.pop %v1272
      %v1274 = vmul.f32 1.0, %v1273
      %v1275 = vxor.u32 %v1196, 2147483648
      %v1276 = vmul.f32 %v1275, 1.442695
      %v1277 = vpow.pop %v1276
      %v1278 = vadd.f32 %v1277, 1.0
      %v1279 = vrcp.pop %v1278
      %v1280 = vmul.f32 1.0, %v1279
      %v1281 = vtanh.pop %v1265
      %v1282 = vxor.u32 %v1267, 2147483648
      %v1283 = vmul.f32 %v1282, 1.442695
      %v1284 = vpow.pop %v1283
      %v1285 = vadd.f32 %v1284, 1.0
      %v1286 = vrcp.pop %v1285
      %v1287 = vmul.f32 1.0, %v1286
      %v1288 = vmul.f32 %v1280, %v910
      %v1289 = vmul.f32 %v1274, %v1281
      %v1290 = vadd.f32 %v1288, %v1289
      %v1291 = vtanh.pop %v1290
      %v1292 = vmul.f32 %v1287, %v1291
      %v1293 = vmul.f32 %v1107, %v1290
      %v1294 = vmul.f32 %v1117, %v910
      %v1295 = vadd.f32 %v1293, %v1294
      %v1296 = vmul.f32 %v1107, %v1292
      %v1297 = vmul.f32 %v1117, %v913
      %v1298 = vadd.f32 %v1296, %v1297
      %v1299 = vld [vmem:[%s2 + $0x4] sm:$0x3]
      %v1300 = vld [vmem:[#allocation2] sm:$0x30]
      %v1301 = vld [vmem:[#allocation2 + $0x8] sm:$0x30]
      %v1302 = vld [vmem:[#allocation2 + $0x10] sm:$0x30]
      %v1303 = vld [vmem:[#allocation2 + $0x18] sm:$0x30]
      %1304 = vmatprep.subr.mxu0 %v333
      %1305 = vmatpush1.msra.mxu0 %v332
      %1306 = vmatprep.subr.mxu0 %v337
      %1307 = vmatpush1.msra.mxu0 %v336
      %1308 = vmatprep.subr.mxu0 %v341
      %1309 = vmatpush1.msra.mxu0 %v340
      %1310 = vmatprep.subr.mxu0 %v345
      %1311 = vmatpush1.msra.mxu0 %v344
      %1312 = vmatprep.subr.mxu0 %v349
      %1313 = vmatpush1.msra.mxu0 %v348
      %1314 = vmatprep.subr.mxu0 %v353
      %1315 = vmatpush1.msra.mxu0 %v352
      %1316 = vmatprep.subr.mxu0 %v357
      %1317 = vmatpush1.msra.mxu0 %v356
      %1318 = vmatprep.subr.mxu0 %v361
      %1319 = vmatpush1.msra.mxu0 %v360
      %1320 = vmatprep.subr.mxu0 %v365
      %1321 = vmatpush1.msra.mxu0 %v364
      %1322 = vmatprep.subr.mxu0 %v369
      %1323 = vmatpush1.msra.mxu0 %v368
      %1324 = vmatprep.subr.mxu0 %v373
      %1325 = vmatpush1.msra.mxu0 %v372
      %1326 = vmatprep.subr.mxu0 %v377
      %1327 = vmatpush1.msra.mxu0 %v376
      %1328 = vmatprep.subr.mxu0 %v381
      %1329 = vmatpush1.msra.mxu0 %v380
      %1330 = vmatprep.subr.mxu0 %v385
      %1331 = vmatpush1.msra.mxu0 %v384
      %1332 = vmatprep.subr.mxu0 %v389
      %1333 = vmatpush1.msra.mxu0 %v388
      %1334 = vmatprep.subr.mxu0 %v393
      %1335 = vmatpush1.msra.mxu0 %v392
      %1336 = vmatprep.subr.mxu0 0.0
      %1337 = vmatpush1.msra.mxu0 0.0
      %1338 = vmatprep.subr.mxu0 0.0
      %1339 = vmatpush1.msra.mxu0 0.0
      %1340 = vmatprep.subr.mxu0 0.0
      %1341 = vmatpush1.msra.mxu0 0.0
      %1342 = vmatprep.subr.mxu0 0.0
      %1343 = vmatpush1.msra.mxu0 0.0
      %1344 = vmatprep.subr.mxu0 0.0
      %1345 = vmatpush1.msra.mxu0 0.0
      %1346 = vmatprep.subr.mxu0 0.0
      %1347 = vmatpush1.msra.mxu0 0.0
      %1348 = vmatprep.subr.mxu0 0.0
      %1349 = vmatpush1.msra.mxu0 0.0
      %1350 = vmatprep.subr.mxu0 0.0
      %1351 = vmatpush1.msra.mxu0 0.0
      %1352 = vmatprep.subr.mxu0 0.0
      %1353 = vmatpush1.msra.mxu0 0.0
      %1354 = vmatprep.subr.mxu0 0.0
      %1355 = vmatpush1.msra.mxu0 0.0
      %1356 = vmatprep.subr.mxu0 0.0
      %1357 = vmatpush1.msra.mxu0 0.0
      %1358 = vmatprep.subr.mxu0 0.0
      %1359 = vmatpush1.msra.mxu0 0.0
      %1360 = vmatprep.subr.mxu0 0.0
      %1361 = vmatpush1.msra.mxu0 0.0
      %1362 = vmatprep.subr.mxu0 0.0
      %1363 = vmatpush1.msra.mxu0 0.0
      %1364 = vmatprep.subr.mxu0 0.0
      %1365 = vmatpush1.msra.mxu0 0.0
      %1366 = vmatprep.subr.mxu0 0.0
      %1367 = vmatpush1.msra.mxu0 0.0
      %1368 = vmatprep.mubr.f32.mxu0 0.0
      %1369 = vmatmul.mubr.f32.gmra.mrb[0].mxu0 %v1126
      %v1370 = vpop.f32.mrb[0].mxu0
      %v1371 = vadd.f32 0.0, %v1370
      %v1372 = vpop.f32.mrb[0].mxu0
      %v1373 = vadd.f32 0.0, %v1372
      %1374 = vdwg.mxu0
      %1375 = vmatprep.subr.mxu0 %v335
      %1376 = vmatpush1.msra.mxu0 %v334
      %1377 = vmatprep.subr.mxu0 %v339
      %1378 = vmatpush1.msra.mxu0 %v338
      %1379 = vmatprep.subr.mxu0 %v343
      %1380 = vmatpush1.msra.mxu0 %v342
      %1381 = vmatprep.subr.mxu0 %v347
      %1382 = vmatpush1.msra.mxu0 %v346
      %1383 = vmatprep.subr.mxu0 %v351
      %1384 = vmatpush1.msra.mxu0 %v350
      %1385 = vmatprep.subr.mxu0 %v355
      %1386 = vmatpush1.msra.mxu0 %v354
      %1387 = vmatprep.subr.mxu0 %v359
      %1388 = vmatpush1.msra.mxu0 %v358
      %1389 = vmatprep.subr.mxu0 %v363
      %1390 = vmatpush1.msra.mxu0 %v362
      %1391 = vmatprep.subr.mxu0 %v367
      %1392 = vmatpush1.msra.mxu0 %v366
      %1393 = vmatprep.subr.mxu0 %v371
      %1394 = vmatpush1.msra.mxu0 %v370
      %1395 = vmatprep.subr.mxu0 %v375
      %1396 = vmatpush1.msra.mxu0 %v374
      %1397 = vmatprep.subr.mxu0 %v379
      %1398 = vmatpush1.msra.mxu0 %v378
      %1399 = vmatprep.subr.mxu0 %v383
      %1400 = vmatpush1.msra.mxu0 %v382
      %1401 = vmatprep.subr.mxu0 %v387
      %1402 = vmatpush1.msra.mxu0 %v386
      %1403 = vmatprep.subr.mxu0 %v391
      %1404 = vmatpush1.msra.mxu0 %v390
      %1405 = vmatprep.subr.mxu0 %v395
      %1406 = vmatpush1.msra.mxu0 %v394
      %1407 = vmatprep.subr.mxu0 0.0
      %1408 = vmatpush1.msra.mxu0 0.0
      %1409 = vmatprep.subr.mxu0 0.0
      %1410 = vmatpush1.msra.mxu0 0.0
      %1411 = vmatprep.subr.mxu0 0.0
      %1412 = vmatpush1.msra.mxu0 0.0
      %1413 = vmatprep.subr.mxu0 0.0
      %1414 = vmatpush1.msra.mxu0 0.0
      %1415 = vmatprep.subr.mxu0 0.0
      %1416 = vmatpush1.msra.mxu0 0.0
      %1417 = vmatprep.subr.mxu0 0.0
      %1418 = vmatpush1.msra.mxu0 0.0
      %1419 = vmatprep.subr.mxu0 0.0
      %1420 = vmatpush1.msra.mxu0 0.0
      %1421 = vmatprep.subr.mxu0 0.0
      %1422 = vmatpush1.msra.mxu0 0.0
      %1423 = vmatprep.subr.mxu0 0.0
      %1424 = vmatpush1.msra.mxu0 0.0
      %1425 = vmatprep.subr.mxu0 0.0
      %1426 = vmatpush1.msra.mxu0 0.0
      %1427 = vmatprep.subr.mxu0 0.0
      %1428 = vmatpush1.msra.mxu0 0.0
      %1429 = vmatprep.subr.mxu0 0.0
      %1430 = vmatpush1.msra.mxu0 0.0
      %1431 = vmatprep.subr.mxu0 0.0
      %1432 = vmatpush1.msra.mxu0 0.0
      %1433 = vmatprep.subr.mxu0 0.0
      %1434 = vmatpush1.msra.mxu0 0.0
      %1435 = vmatprep.subr.mxu0 0.0
      %1436 = vmatpush1.msra.mxu0 0.0
      %1437 = vmatprep.subr.mxu0 0.0
      %1438 = vmatpush1.msra.mxu0 0.0
      %1439 = vmatprep.mubr.f32.mxu0 0.0
      %1440 = vmatmul.mubr.f32.gmra.mrb[0].mxu0 %v1126
      %v1441 = vpop.f32.mrb[0].mxu0
      %v1442 = vadd.f32 0.0, %v1441
      %v1443 = vpop.f32.mrb[0].mxu0
      %v1444 = vadd.f32 0.0, %v1443
      %1445 = vdwg.mxu0
      %v1450 = vrot.slane %v1371, 4
      %v1451 = vrot.slane %v1373, 4
      %v1452 = vrot.slane %v1442, 4
      %v1453 = vrot.slane %v1444, 4
      %v1458 = vadd.f32 %v1300, %v1450
      %v1459 = vadd.f32 %v1301, %v1451
      %v1460 = vadd.f32 %v1302, %v1452
      %v1461 = vadd.f32 %v1303, %v1453
      %v1462 = vxor.u32 %v1458, 2147483648
      %v1463 = vmul.f32 %v1462, 1.442695
      %v1464 = vpow.pop %v1463
      %v1465 = vadd.f32 %v1464, 1.0
      %v1466 = vrcp.pop %v1465
      %v1467 = vmul.f32 1.0, %v1466
      %v1468 = vxor.u32 %v1459, 2147483648
      %v1469 = vmul.f32 %v1468, 1.442695
      %v1470 = vpow.pop %v1469
      %v1471 = vadd.f32 %v1470, 1.0
      %v1472 = vrcp.pop %v1471
      %v1473 = vmul.f32 1.0, %v1472
      %v1474 = vtanh.pop %v1460
      %v1475 = vxor.u32 %v1461, 2147483648
      %v1476 = vmul.f32 %v1475, 1.442695
      %v1477 = vpow.pop %v1476
      %v1478 = vadd.f32 %v1477, 1.0
      %v1479 = vrcp.pop %v1478
      %v1480 = vmul.f32 1.0, %v1479
      %v1482 = vrot.slane %v1120, 4
      %v1484 = vmul.f32 %v1473, %v1482
      %v1485 = vmul.f32 %v1467, %v1474
      %v1486 = vadd.f32 %v1484, %v1485
      %v1487 = vtanh.pop %v1486
      %v1488 = vmul.f32 %v1480, %v1487
      %1490 = vset.pattern.permute.xlu0 0
      %1491 = vperm.xlu0 %1490, %v1299
      %v1492 = vpop.permute.xlu0 %1491
      %v1495 = vrot.slane %v1486, 4
      %v1497 = vmul.f32 %v1492, %v1495
      %v1498 = vsub.f32 1.0, %v1299
      %1500 = vset.pattern.permute.xlu0 0
      %1501 = vperm.xlu0 %1500, %v1498
      %v1502 = vpop.permute.xlu0 %1501
      %v1504 = vmul.f32 %v1502, %v1120
      %v1505 = vadd.f32 %v1497, %v1504
      %v1507 = vrot.slane %v1488, 4
      %v1509 = vmul.f32 %v1492, %v1507
      %v1510 = vmul.f32 %v1502, %v1126
      %v1511 = vadd.f32 %v1509, %v1510
      %1512 = vmatprep.subr.mxu0 %v397
      %1513 = vmatpush1.msra.mxu0 %v396
      %1514 = vmatprep.subr.mxu0 %v401
      %1515 = vmatpush1.msra.mxu0 %v400
      %1516 = vmatprep.subr.mxu0 %v405
      %1517 = vmatpush1.msra.mxu0 %v404
      %1518 = vmatprep.subr.mxu0 %v409
      %1519 = vmatpush1.msra.mxu0 %v408
      %1520 = vmatprep.subr.mxu0 %v413
      %1521 = vmatpush1.msra.mxu0 %v412
      %1522 = vmatprep.subr.mxu0 %v417
      %1523 = vmatpush1.msra.mxu0 %v416
      %1524 = vmatprep.subr.mxu0 %v421
      %1525 = vmatpush1.msra.mxu0 %v420
      %1526 = vmatprep.subr.mxu0 %v425
      %1527 = vmatpush1.msra.mxu0 %v424
      %1528 = vmatprep.subr.mxu0 %v429
      %1529 = vmatpush1.msra.mxu0 %v428
      %1530 = vmatprep.subr.mxu0 %v433
      %1531 = vmatpush1.msra.mxu0 %v432
      %1532 = vmatprep.subr.mxu0 %v437
      %1533 = vmatpush1.msra.mxu0 %v436
      %1534 = vmatprep.subr.mxu0 %v441
      %1535 = vmatpush1.msra.mxu0 %v440
      %1536 = vmatprep.subr.mxu0 %v445
      %1537 = vmatpush1.msra.mxu0 %v444
      %1538 = vmatprep.subr.mxu0 %v449
      %1539 = vmatpush1.msra.mxu0 %v448
      %1540 = vmatprep.subr.mxu0 %v453
      %1541 = vmatpush1.msra.mxu0 %v452
      %1542 = vmatprep.subr.mxu0 %v457
      %1543 = vmatpush1.msra.mxu0 %v456
      %1544 = vmatprep.subr.mxu0 %v461
      %1545 = vmatpush1.msra.mxu0 %v460
      %1546 = vmatprep.subr.mxu0 %v465
      %1547 = vmatpush1.msra.mxu0 %v464
      %1548 = vmatprep.subr.mxu0 %v469
      %1549 = vmatpush1.msra.mxu0 %v468
      %1550 = vmatprep.subr.mxu0 %v473
      %1551 = vmatpush1.msra.mxu0 %v472
      %1552 = vmatprep.subr.mxu0 %v477
      %1553 = vmatpush1.msra.mxu0 %v476
      %1554 = vmatprep.subr.mxu0 %v481
      %1555 = vmatpush1.msra.mxu0 %v480
      %1556 = vmatprep.subr.mxu0 %v485
      %1557 = vmatpush1.msra.mxu0 %v484
      %1558 = vmatprep.subr.mxu0 %v489
      %1559 = vmatpush1.msra.mxu0 %v488
      %1560 = vmatprep.subr.mxu0 %v493
      %1561 = vmatpush1.msra.mxu0 %v492
      %1562 = vmatprep.subr.mxu0 %v497
      %1563 = vmatpush1.msra.mxu0 %v496
      %1564 = vmatprep.subr.mxu0 %v501
      %1565 = vmatpush1.msra.mxu0 %v500
      %1566 = vmatprep.subr.mxu0 %v505
      %1567 = vmatpush1.msra.mxu0 %v504
      %1568 = vmatprep.subr.mxu0 %v509
      %1569 = vmatpush1.msra.mxu0 %v508
      %1570 = vmatprep.subr.mxu0 %v513
      %1571 = vmatpush1.msra.mxu0 %v512
      %1572 = vmatprep.subr.mxu0 %v517
      %1573 = vmatpush1.msra.mxu0 %v516
      %1574 = vmatprep.subr.mxu0 %v521
      %1575 = vmatpush1.msra.mxu0 %v520
      %1576 = vmatprep.mubr.f32.mxu0 %v1298
      %1577 = vmatmul.mubr.f32.gmra.mrb[0].mxu0 %v1511
      %v1578 = vpop.f32.mrb[0].mxu0
      %v1579 = vadd.f32 %v529, %v1578
      %v1580 = vpop.f32.mrb[0].mxu0
      %v1581 = vadd.f32 %v533, %v1580
      %1582 = vdwg.mxu0
      %1583 = vmatprep.subr.mxu0 %v399
      %1584 = vmatpush1.msra.mxu0 %v398
      %1585 = vmatprep.subr.mxu0 %v403
      %1586 = vmatpush1.msra.mxu0 %v402
      %1587 = vmatprep.subr.mxu0 %v407
      %1588 = vmatpush1.msra.mxu0 %v406
      %1589 = vmatprep.subr.mxu0 %v411
      %1590 = vmatpush1.msra.mxu0 %v410
      %1591 = vmatprep.subr.mxu0 %v415
      %1592 = vmatpush1.msra.mxu0 %v414
      %1593 = vmatprep.subr.mxu0 %v419
      %1594 = vmatpush1.msra.mxu0 %v418
      %1595 = vmatprep.subr.mxu0 %v423
      %1596 = vmatpush1.msra.mxu0 %v422
      %1597 = vmatprep.subr.mxu0 %v427
      %1598 = vmatpush1.msra.mxu0 %v426
      %1599 = vmatprep.subr.mxu0 %v431
      %1600 = vmatpush1.msra.mxu0 %v430
      %1601 = vmatprep.subr.mxu0 %v435
      %1602 = vmatpush1.msra.mxu0 %v434
      %1603 = vmatprep.subr.mxu0 %v439
      %1604 = vmatpush1.msra.mxu0 %v438
      %1605 = vmatprep.subr.mxu0 %v443
      %1606 = vmatpush1.msra.mxu0 %v442
      %1607 = vmatprep.subr.mxu0 %v447
      %1608 = vmatpush1.msra.mxu0 %v446
      %1609 = vmatprep.subr.mxu0 %v451
      %1610 = vmatpush1.msra.mxu0 %v450
      %1611 = vmatprep.subr.mxu0 %v455
      %1612 = vmatpush1.msra.mxu0 %v454
      %1613 = vmatprep.subr.mxu0 %v459
      %1614 = vmatpush1.msra.mxu0 %v458
      %1615 = vmatprep.subr.mxu0 %v463
      %1616 = vmatpush1.msra.mxu0 %v462
      %1617 = vmatprep.subr.mxu0 %v467
      %1618 = vmatpush1.msra.mxu0 %v466
      %1619 = vmatprep.subr.mxu0 %v471
      %1620 = vmatpush1.msra.mxu0 %v470
      %1621 = vmatprep.subr.mxu0 %v475
      %1622 = vmatpush1.msra.mxu0 %v474
      %1623 = vmatprep.subr.mxu0 %v479
      %1624 = vmatpush1.msra.mxu0 %v478
      %1625 = vmatprep.subr.mxu0 %v483
      %1626 = vmatpush1.msra.mxu0 %v482
      %1627 = vmatprep.subr.mxu0 %v487
      %1628 = vmatpush1.msra.mxu0 %v486
      %1629 = vmatprep.subr.mxu0 %v491
      %1630 = vmatpush1.msra.mxu0 %v490
      %1631 = vmatprep.subr.mxu0 %v495
      %1632 = vmatpush1.msra.mxu0 %v494
      %1633 = vmatprep.subr.mxu0 %v499
      %1634 = vmatpush1.msra.mxu0 %v498
      %1635 = vmatprep.subr.mxu0 %v503
      %1636 = vmatpush1.msra.mxu0 %v502
      %1637 = vmatprep.subr.mxu0 %v507
      %1638 = vmatpush1.msra.mxu0 %v506
      %1639 = vmatprep.subr.mxu0 %v511
      %1640 = vmatpush1.msra.mxu0 %v510
      %1641 = vmatprep.subr.mxu0 %v515
      %1642 = vmatpush1.msra.mxu0 %v514
      %1643 = vmatprep.subr.mxu0 %v519
      %1644 = vmatpush1.msra.mxu0 %v518
      %1645 = vmatprep.subr.mxu0 %v523
      %1646 = vmatpush1.msra.mxu0 %v522
      %1647 = vmatprep.mubr.f32.mxu0 %v1298
      %1648 = vmatmul.mubr.f32.gmra.mrb[0].mxu0 %v1511
      %v1649 = vpop.f32.mrb[0].mxu0
      %v1650 = vadd.f32 %v537, %v1649
      %v1651 = vpop.f32.mrb[0].mxu0
      %v1652 = vadd.f32 %v541, %v1651
      %1653 = vdwg.mxu0
      %v1654 = vxor.u32 %v1579, 2147483648
      %v1655 = vmul.f32 %v1654, 1.442695
      %v1656 = vpow.pop %v1655
      %v1657 = vadd.f32 %v1656, 1.0
      %v1658 = vrcp.pop %v1657
      %v1659 = vmul.f32 1.0, %v1658
      %v1660 = vxor.u32 %v1581, 2147483648
      %v1661 = vmul.f32 %v1660, 1.442695
      %v1662 = vpow.pop %v1661
      %v1663 = vadd.f32 %v1662, 1.0
      %v1664 = vrcp.pop %v1663
      %v1665 = vmul.f32 1.0, %v1664
      %v1666 = vtanh.pop %v1650
      %v1667 = vxor.u32 %v1652, 2147483648
      %v1668 = vmul.f32 %v1667, 1.442695
      %v1669 = vpow.pop %v1668
      %v1670 = vadd.f32 %v1669, 1.0
      %v1671 = vrcp.pop %v1670
      %v1672 = vmul.f32 1.0, %v1671
      %v1673 = vmul.f32 %v1665, %v1295
      %v1674 = vmul.f32 %v1659, %v1666
      %v1675 = vadd.f32 %v1673, %v1674
      %v1676 = vtanh.pop %v1675
      %v1677 = vmul.f32 %v1672, %v1676
      %v1678 = vmul.f32 %v1492, %v1675
      %v1679 = vmul.f32 %v1502, %v1295
      %v1680 = vadd.f32 %v1678, %v1679
      %v1681 = vmul.f32 %v1492, %v1677
      %v1682 = vmul.f32 %v1502, %v1298
      %v1683 = vadd.f32 %v1681, %v1682
      %v1684 = vld [vmem:[%s2 + $0x6] sm:$0x3]
      %v1685 = vld [vmem:[#allocation2] sm:$0xc0]
      %v1686 = vld [vmem:[#allocation2 + $0x8] sm:$0xc0]
      %v1687 = vld [vmem:[#allocation2 + $0x10] sm:$0xc0]
      %v1688 = vld [vmem:[#allocation2 + $0x18] sm:$0xc0]
      %1689 = vmatprep.subr.mxu0 %v333
      %1690 = vmatpush1.msra.mxu0 %v332
      %1691 = vmatprep.subr.mxu0 %v337
      %1692 = vmatpush1.msra.mxu0 %v336
      %1693 = vmatprep.subr.mxu0 %v341
      %1694 = vmatpush1.msra.mxu0 %v340
      %1695 = vmatprep.subr.mxu0 %v345
      %1696 = vmatpush1.msra.mxu0 %v344
      %1697 = vmatprep.subr.mxu0 %v349
      %1698 = vmatpush1.msra.mxu0 %v348
      %1699 = vmatprep.subr.mxu0 %v353
      %1700 = vmatpush1.msra.mxu0 %v352
      %1701 = vmatprep.subr.mxu0 %v357
      %1702 = vmatpush1.msra.mxu0 %v356
      %1703 = vmatprep.subr.mxu0 %v361
      %1704 = vmatpush1.msra.mxu0 %v360
      %1705 = vmatprep.subr.mxu0 %v365
      %1706 = vmatpush1.msra.mxu0 %v364
      %1707 = vmatprep.subr.mxu0 %v369
      %1708 = vmatpush1.msra.mxu0 %v368
      %1709 = vmatprep.subr.mxu0 %v373
      %1710 = vmatpush1.msra.mxu0 %v372
      %1711 = vmatprep.subr.mxu0 %v377
      %1712 = vmatpush1.msra.mxu0 %v376
      %1713 = vmatprep.subr.mxu0 %v381
      %1714 = vmatpush1.msra.mxu0 %v380
      %1715 = vmatprep.subr.mxu0 %v385
      %1716 = vmatpush1.msra.mxu0 %v384
      %1717 = vmatprep.subr.mxu0 %v389
      %1718 = vmatpush1.msra.mxu0 %v388
      %1719 = vmatprep.subr.mxu0 %v393
      %1720 = vmatpush1.msra.mxu0 %v392
      %1721 = vmatprep.subr.mxu0 0.0
      %1722 = vmatpush1.msra.mxu0 0.0
      %1723 = vmatprep.subr.mxu0 0.0
      %1724 = vmatpush1.msra.mxu0 0.0
      %1725 = vmatprep.subr.mxu0 0.0
      %1726 = vmatpush1.msra.mxu0 0.0
      %1727 = vmatprep.subr.mxu0 0.0
      %1728 = vmatpush1.msra.mxu0 0.0
      %1729 = vmatprep.subr.mxu0 0.0
      %1730 = vmatpush1.msra.mxu0 0.0
      %1731 = vmatprep.subr.mxu0 0.0
      %1732 = vmatpush1.msra.mxu0 0.0
      %1733 = vmatprep.subr.mxu0 0.0
      %1734 = vmatpush1.msra.mxu0 0.0
      %1735 = vmatprep.subr.mxu0 0.0
      %1736 = vmatpush1.msra.mxu0 0.0
      %1737 = vmatprep.subr.mxu0 0.0
      %1738 = vmatpush1.msra.mxu0 0.0
      %1739 = vmatprep.subr.mxu0 0.0
      %1740 = vmatpush1.msra.mxu0 0.0
      %1741 = vmatprep.subr.mxu0 0.0
      %1742 = vmatpush1.msra.mxu0 0.0
      %1743 = vmatprep.subr.mxu0 0.0
      %1744 = vmatpush1.msra.mxu0 0.0
      %1745 = vmatprep.subr.mxu0 0.0
      %1746 = vmatpush1.msra.mxu0 0.0
      %1747 = vmatprep.subr.mxu0 0.0
      %1748 = vmatpush1.msra.mxu0 0.0
      %1749 = vmatprep.subr.mxu0 0.0
      %1750 = vmatpush1.msra.mxu0 0.0
      %1751 = vmatprep.subr.mxu0 0.0
      %1752 = vmatpush1.msra.mxu0 0.0
      %1753 = vmatprep.mubr.f32.mxu0 0.0
      %1754 = vmatmul.mubr.f32.gmra.mrb[0].mxu0 %v1511
      %v1755 = vpop.f32.mrb[0].mxu0
      %v1756 = vadd.f32 0.0, %v1755
      %v1757 = vpop.f32.mrb[0].mxu0
      %v1758 = vadd.f32 0.0, %v1757
      %1759 = vdwg.mxu0
      %1760 = vmatprep.subr.mxu0 %v335
      %1761 = vmatpush1.msra.mxu0 %v334
      %1762 = vmatprep.subr.mxu0 %v339
      %1763 = vmatpush1.msra.mxu0 %v338
      %1764 = vmatprep.subr.mxu0 %v343
      %1765 = vmatpush1.msra.mxu0 %v342
      %1766 = vmatprep.subr.mxu0 %v347
      %1767 = vmatpush1.msra.mxu0 %v346
      %1768 = vmatprep.subr.mxu0 %v351
      %1769 = vmatpush1.msra.mxu0 %v350
      %1770 = vmatprep.subr.mxu0 %v355
      %1771 = vmatpush1.msra.mxu0 %v354
      %1772 = vmatprep.subr.mxu0 %v359
      %1773 = vmatpush1.msra.mxu0 %v358
      %1774 = vmatprep.subr.mxu0 %v363
      %1775 = vmatpush1.msra.mxu0 %v362
      %1776 = vmatprep.subr.mxu0 %v367
      %1777 = vmatpush1.msra.mxu0 %v366
      %1778 = vmatprep.subr.mxu0 %v371
      %1779 = vmatpush1.msra.mxu0 %v370
      %1780 = vmatprep.subr.mxu0 %v375
      %1781 = vmatpush1.msra.mxu0 %v374
      %1782 = vmatprep.subr.mxu0 %v379
      %1783 = vmatpush1.msra.mxu0 %v378
      %1784 = vmatprep.subr.mxu0 %v383
      %1785 = vmatpush1.msra.mxu0 %v382
      %1786 = vmatprep.subr.mxu0 %v387
      %1787 = vmatpush1.msra.mxu0 %v386
      %1788 = vmatprep.subr.mxu0 %v391
      %1789 = vmatpush1.msra.mxu0 %v390
      %1790 = vmatprep.subr.mxu0 %v395
      %1791 = vmatpush1.msra.mxu0 %v394
      %1792 = vmatprep.subr.mxu0 0.0
      %1793 = vmatpush1.msra.mxu0 0.0
      %1794 = vmatprep.subr.mxu0 0.0
      %1795 = vmatpush1.msra.mxu0 0.0
      %1796 = vmatprep.subr.mxu0 0.0
      %1797 = vmatpush1.msra.mxu0 0.0
      %1798 = vmatprep.subr.mxu0 0.0
      %1799 = vmatpush1.msra.mxu0 0.0
      %1800 = vmatprep.subr.mxu0 0.0
      %1801 = vmatpush1.msra.mxu0 0.0
      %1802 = vmatprep.subr.mxu0 0.0
      %1803 = vmatpush1.msra.mxu0 0.0
      %1804 = vmatprep.subr.mxu0 0.0
      %1805 = vmatpush1.msra.mxu0 0.0
      %1806 = vmatprep.subr.mxu0 0.0
      %1807 = vmatpush1.msra.mxu0 0.0
      %1808 = vmatprep.subr.mxu0 0.0
      %1809 = vmatpush1.msra.mxu0 0.0
      %1810 = vmatprep.subr.mxu0 0.0
      %1811 = vmatpush1.msra.mxu0 0.0
      %1812 = vmatprep.subr.mxu0 0.0
      %1813 = vmatpush1.msra.mxu0 0.0
      %1814 = vmatprep.subr.mxu0 0.0
      %1815 = vmatpush1.msra.mxu0 0.0
      %1816 = vmatprep.subr.mxu0 0.0
      %1817 = vmatpush1.msra.mxu0 0.0
      %1818 = vmatprep.subr.mxu0 0.0
      %1819 = vmatpush1.msra.mxu0 0.0
      %1820 = vmatprep.subr.mxu0 0.0
      %1821 = vmatpush1.msra.mxu0 0.0
      %1822 = vmatprep.subr.mxu0 0.0
      %1823 = vmatpush1.msra.mxu0 0.0
      %1824 = vmatprep.mubr.f32.mxu0 0.0
      %1825 = vmatmul.mubr.f32.gmra.mrb[0].mxu0 %v1511
      %v1826 = vpop.f32.mrb[0].mxu0
      %v1827 = vadd.f32 0.0, %v1826
      %v1828 = vpop.f32.mrb[0].mxu0
      %v1829 = vadd.f32 0.0, %v1828
      %1830 = vdwg.mxu0
      %v1835 = vrot.slane %v1756, 2
      %v1836 = vrot.slane %v1758, 2
      %v1837 = vrot.slane %v1827, 2
      %v1838 = vrot.slane %v1829, 2
      %v1843 = vadd.f32 %v1685, %v1835
      %v1844 = vadd.f32 %v1686, %v1836
      %v1845 = vadd.f32 %v1687, %v1837
      %v1846 = vadd.f32 %v1688, %v1838
      %v1847 = vxor.u32 %v1843, 2147483648
      %v1848 = vmul.f32 %v1847, 1.442695
      %v1849 = vpow.pop %v1848
      %v1850 = vadd.f32 %v1849, 1.0
      %v1851 = vrcp.pop %v1850
      %v1852 = vmul.f32 1.0, %v1851
      %v1853 = vxor.u32 %v1844, 2147483648
      %v1854 = vmul.f32 %v1853, 1.442695
      %v1855 = vpow.pop %v1854
      %v1856 = vadd.f32 %v1855, 1.0
      %v1857 = vrcp.pop %v1856
      %v1858 = vmul.f32 1.0, %v1857
      %v1859 = vtanh.pop %v1845
      %v1860 = vxor.u32 %v1846, 2147483648
      %v1861 = vmul.f32 %v1860, 1.442695
      %v1862 = vpow.pop %v1861
      %v1863 = vadd.f32 %v1862, 1.0
      %v1864 = vrcp.pop %v1863
      %v1865 = vmul.f32 1.0, %v1864
      %v1867 = vrot.slane %v1505, 2
      %v1869 = vmul.f32 %v1858, %v1867
      %v1870 = vmul.f32 %v1852, %v1859
      %v1871 = vadd.f32 %v1869, %v1870
      %v1872 = vtanh.pop %v1871
      %v1873 = vmul.f32 %v1865, %v1872
      %1875 = vset.pattern.permute.xlu0 0
      %1876 = vperm.xlu0 %1875, %v1684
      %v1877 = vpop.permute.xlu0 %1876
      %v1880 = vrot.slane %v1871, 6
      %v1882 = vmul.f32 %v1877, %v1880
      %v1883 = vsub.f32 1.0, %v1684
      %1885 = vset.pattern.permute.xlu0 0
      %1886 = vperm.xlu0 %1885, %v1883
      %v1887 = vpop.permute.xlu0 %1886
      %v1889 = vmul.f32 %v1887, %v1505
      %v1890 = vadd.f32 %v1882, %v1889
      %v1892 = vrot.slane %v1873, 6
      %v1894 = vmul.f32 %v1877, %v1892
      %v1895 = vmul.f32 %v1887, %v1511
      %v1896 = vadd.f32 %v1894, %v1895
      %1897 = vmatprep.subr.mxu0 %v397
      %1898 = vmatpush1.msra.mxu0 %v396
      %1899 = vmatprep.subr.mxu0 %v401
      %1900 = vmatpush1.msra.mxu0 %v400
      %1901 = vmatprep.subr.mxu0 %v405
      %1902 = vmatpush1.msra.mxu0 %v404
      %1903 = vmatprep.subr.mxu0 %v409
      %1904 = vmatpush1.msra.mxu0 %v408
      %1905 = vmatprep.subr.mxu0 %v413
      %1906 = vmatpush1.msra.mxu0 %v412
      %1907 = vmatprep.subr.mxu0 %v417
      %1908 = vmatpush1.msra.mxu0 %v416
      %1909 = vmatprep.subr.mxu0 %v421
      %1910 = vmatpush1.msra.mxu0 %v420
      %1911 = vmatprep.subr.mxu0 %v425
      %1912 = vmatpush1.msra.mxu0 %v424
      %1913 = vmatprep.subr.mxu0 %v429
      %1914 = vmatpush1.msra.mxu0 %v428
      %1915 = vmatprep.subr.mxu0 %v433
      %1916 = vmatpush1.msra.mxu0 %v432
      %1917 = vmatprep.subr.mxu0 %v437
      %1918 = vmatpush1.msra.mxu0 %v436
      %1919 = vmatprep.subr.mxu0 %v441
      %1920 = vmatpush1.msra.mxu0 %v440
      %1921 = vmatprep.subr.mxu0 %v445
      %1922 = vmatpush1.msra.mxu0 %v444
      %1923 = vmatprep.subr.mxu0 %v449
      %1924 = vmatpush1.msra.mxu0 %v448
      %1925 = vmatprep.subr.mxu0 %v453
      %1926 = vmatpush1.msra.mxu0 %v452
      %1927 = vmatprep.subr.mxu0 %v457
      %1928 = vmatpush1.msra.mxu0 %v456
      %1929 = vmatprep.subr.mxu0 %v461
      %1930 = vmatpush1.msra.mxu0 %v460
      %1931 = vmatprep.subr.mxu0 %v465
      %1932 = vmatpush1.msra.mxu0 %v464
      %1933 = vmatprep.subr.mxu0 %v469
      %1934 = vmatpush1.msra.mxu0 %v468
      %1935 = vmatprep.subr.mxu0 %v473
      %1936 = vmatpush1.msra.mxu0 %v472
      %1937 = vmatprep.subr.mxu0 %v477
      %1938 = vmatpush1.msra.mxu0 %v476
      %1939 = vmatprep.subr.mxu0 %v481
      %1940 = vmatpush1.msra.mxu0 %v480
      %1941 = vmatprep.subr.mxu0 %v485
      %1942 = vmatpush1.msra.mxu0 %v484
      %1943 = vmatprep.subr.mxu0 %v489
      %1944 = vmatpush1.msra.mxu0 %v488
      %1945 = vmatprep.subr.mxu0 %v493
      %1946 = vmatpush1.msra.mxu0 %v492
      %1947 = vmatprep.subr.mxu0 %v497
      %1948 = vmatpush1.msra.mxu0 %v496
      %1949 = vmatprep.subr.mxu0 %v501
      %1950 = vmatpush1.msra.mxu0 %v500
      %1951 = vmatprep.subr.mxu0 %v505
      %1952 = vmatpush1.msra.mxu0 %v504
      %1953 = vmatprep.subr.mxu0 %v509
      %1954 = vmatpush1.msra.mxu0 %v508
      %1955 = vmatprep.subr.mxu0 %v513
      %1956 = vmatpush1.msra.mxu0 %v512
      %1957 = vmatprep.subr.mxu0 %v517
      %1958 = vmatpush1.msra.mxu0 %v516
      %1959 = vmatprep.subr.mxu0 %v521
      %1960 = vmatpush1.msra.mxu0 %v520
      %1961 = vmatprep.mubr.f32.mxu0 %v1683
      %1962 = vmatmul.mubr.f32.gmra.mrb[0].mxu0 %v1896
      %v1963 = vpop.f32.mrb[0].mxu0
      %v1964 = vadd.f32 %v529, %v1963
      %v1965 = vpop.f32.mrb[0].mxu0
      %v1966 = vadd.f32 %v533, %v1965
      %1967 = vdwg.mxu0
      %1968 = vmatprep.subr.mxu0 %v399
      %1969 = vmatpush1.msra.mxu0 %v398
      %1970 = vmatprep.subr.mxu0 %v403
      %1971 = vmatpush1.msra.mxu0 %v402
      %1972 = vmatprep.subr.mxu0 %v407
      %1973 = vmatpush1.msra.mxu0 %v406
      %1974 = vmatprep.subr.mxu0 %v411
      %1975 = vmatpush1.msra.mxu0 %v410
      %1976 = vmatprep.subr.mxu0 %v415
      %1977 = vmatpush1.msra.mxu0 %v414
      %1978 = vmatprep.subr.mxu0 %v419
      %1979 = vmatpush1.msra.mxu0 %v418
      %1980 = vmatprep.subr.mxu0 %v423
      %1981 = vmatpush1.msra.mxu0 %v422
      %1982 = vmatprep.subr.mxu0 %v427
      %1983 = vmatpush1.msra.mxu0 %v426
      %1984 = vmatprep.subr.mxu0 %v431
      %1985 = vmatpush1.msra.mxu0 %v430
      %1986 = vmatprep.subr.mxu0 %v435
      %1987 = vmatpush1.msra.mxu0 %v434
      %1988 = vmatprep.subr.mxu0 %v439
      %1989 = vmatpush1.msra.mxu0 %v438
      %1990 = vmatprep.subr.mxu0 %v443
      %1991 = vmatpush1.msra.mxu0 %v442
      %1992 = vmatprep.subr.mxu0 %v447
      %1993 = vmatpush1.msra.mxu0 %v446
      %1994 = vmatprep.subr.mxu0 %v451
      %1995 = vmatpush1.msra.mxu0 %v450
      %1996 = vmatprep.subr.mxu0 %v455
      %1997 = vmatpush1.msra.mxu0 %v454
      %1998 = vmatprep.subr.mxu0 %v459
      %1999 = vmatpush1.msra.mxu0 %v458
      %2000 = vmatprep.subr.mxu0 %v463
      %2001 = vmatpush1.msra.mxu0 %v462
      %2002 = vmatprep.subr.mxu0 %v467
      %2003 = vmatpush1.msra.mxu0 %v466
      %2004 = vmatprep.subr.mxu0 %v471
      %2005 = vmatpush1.msra.mxu0 %v470
      %2006 = vmatprep.subr.mxu0 %v475
      %2007 = vmatpush1.msra.mxu0 %v474
      %2008 = vmatprep.subr.mxu0 %v479
      %2009 = vmatpush1.msra.mxu0 %v478
      %2010 = vmatprep.subr.mxu0 %v483
      %2011 = vmatpush1.msra.mxu0 %v482
      %2012 = vmatprep.subr.mxu0 %v487
      %2013 = vmatpush1.msra.mxu0 %v486
      %2014 = vmatprep.subr.mxu0 %v491
      %2015 = vmatpush1.msra.mxu0 %v490
      %2016 = vmatprep.subr.mxu0 %v495
      %2017 = vmatpush1.msra.mxu0 %v494
      %2018 = vmatprep.subr.mxu0 %v499
      %2019 = vmatpush1.msra.mxu0 %v498
      %2020 = vmatprep.subr.mxu0 %v503
      %2021 = vmatpush1.msra.mxu0 %v502
      %2022 = vmatprep.subr.mxu0 %v507
      %2023 = vmatpush1.msra.mxu0 %v506
      %2024 = vmatprep.subr.mxu0 %v511
      %2025 = vmatpush1.msra.mxu0 %v510
      %2026 = vmatprep.subr.mxu0 %v515
      %2027 = vmatpush1.msra.mxu0 %v514
      %2028 = vmatprep.subr.mxu0 %v519
      %2029 = vmatpush1.msra.mxu0 %v518
      %2030 = vmatprep.subr.mxu0 %v523
      %2031 = vmatpush1.msra.mxu0 %v522
      %2032 = vmatprep.mubr.f32.mxu0 %v1683
      %2033 = vmatmul.mubr.f32.gmra.mrb[0].mxu0 %v1896
      %v2034 = vpop.f32.mrb[0].mxu0
      %v2035 = vadd.f32 %v537, %v2034
      %v2036 = vpop.f32.mrb[0].mxu0
      %v2037 = vadd.f32 %v541, %v2036
      %2038 = vdwg.mxu0
      %v2039 = vxor.u32 %v1964, 2147483648
      %v2040 = vmul.f32 %v2039, 1.442695
      %v2041 = vpow.pop %v2040
      %v2042 = vadd.f32 %v2041, 1.0
      %v2043 = vrcp.pop %v2042
      %v2044 = vmul.f32 1.0, %v2043
      %v2045 = vxor.u32 %v1966, 2147483648
      %v2046 = vmul.f32 %v2045, 1.442695
      %v2047 = vpow.pop %v2046
      %v2048 = vadd.f32 %v2047, 1.0
      %v2049 = vrcp.pop %v2048
      %v2050 = vmul.f32 1.0, %v2049
      %v2051 = vtanh.pop %v2035
      %v2052 = vxor.u32 %v2037, 2147483648
      %v2053 = vmul.f32 %v2052, 1.442695
      %v2054 = vpow.pop %v2053
      %v2055 = vadd.f32 %v2054, 1.0
      %v2056 = vrcp.pop %v2055
      %v2057 = vmul.f32 1.0, %v2056
      %v2058 = vmul.f32 %v2050, %v1680
      %v2059 = vmul.f32 %v2044, %v2051
      %v2060 = vadd.f32 %v2058, %v2059
      %v2061 = vtanh.pop %v2060
      %v2062 = vmul.f32 %v2057, %v2061
      %v2063 = vmul.f32 %v1877, %v2060
      %v2064 = vmul.f32 %v1887, %v1680
      %v2065 = vadd.f32 %v2063, %v2064
      %v2066 = vmul.f32 %v1877, %v2062
      %v2067 = vmul.f32 %v1887, %v1683
      %v2068 = vadd.f32 %v2066, %v2067
      %v2069 = vld [vmem:[%s2 + $0x8] sm:$0x3]
      %v2070 = vld [vmem:[#allocation2 + $0x20] sm:$0x3]
      %v2071 = vld [vmem:[#allocation2 + $0x28] sm:$0x3]
      %v2072 = vld [vmem:[#allocation2 + $0x30] sm:$0x3]
      %v2073 = vld [vmem:[#allocation2 + $0x38] sm:$0x3]
      %2074 = vmatprep.subr.mxu0 %v333
      %2075 = vmatpush1.msra.mxu0 %v332
      %2076 = vmatprep.subr.mxu0 %v337
      %2077 = vmatpush1.msra.mxu0 %v336
      %2078 = vmatprep.subr.mxu0 %v341
      %2079 = vmatpush1.msra.mxu0 %v340
      %2080 = vmatprep.subr.mxu0 %v345
      %2081 = vmatpush1.msra.mxu0 %v344
      %2082 = vmatprep.subr.mxu0 %v349
      %2083 = vmatpush1.msra.mxu0 %v348
      %2084 = vmatprep.subr.mxu0 %v353
      %2085 = vmatpush1.msra.mxu0 %v352
      %2086 = vmatprep.subr.mxu0 %v357
      %2087 = vmatpush1.msra.mxu0 %v356
      %2088 = vmatprep.subr.mxu0 %v361
      %2089 = vmatpush1.msra.mxu0 %v360
      %2090 = vmatprep.subr.mxu0 %v365
      %2091 = vmatpush1.msra.mxu0 %v364
      %2092 = vmatprep.subr.mxu0 %v369
      %2093 = vmatpush1.msra.mxu0 %v368
      %2094 = vmatprep.subr.mxu0 %v373
      %2095 = vmatpush1.msra.mxu0 %v372
      %2096 = vmatprep.subr.mxu0 %v377
      %2097 = vmatpush1.msra.mxu0 %v376
      %2098 = vmatprep.subr.mxu0 %v381
      %2099 = vmatpush1.msra.mxu0 %v380
      %2100 = vmatprep.subr.mxu0 %v385
      %2101 = vmatpush1.msra.mxu0 %v384
      %2102 = vmatprep.subr.mxu0 %v389
      %2103 = vmatpush1.msra.mxu0 %v388
      %2104 = vmatprep.subr.mxu0 %v393
      %2105 = vmatpush1.msra.mxu0 %v392
      %2106 = vmatprep.subr.mxu0 0.0
      %2107 = vmatpush1.msra.mxu0 0.0
      %2108 = vmatprep.subr.mxu0 0.0
      %2109 = vmatpush1.msra.mxu0 0.0
      %2110 = vmatprep.subr.mxu0 0.0
      %2111 = vmatpush1.msra.mxu0 0.0
      %2112 = vmatprep.subr.mxu0 0.0
      %2113 = vmatpush1.msra.mxu0 0.0
      %2114 = vmatprep.subr.mxu0 0.0
      %2115 = vmatpush1.msra.mxu0 0.0
      %2116 = vmatprep.subr.mxu0 0.0
      %2117 = vmatpush1.msra.mxu0 0.0
      %2118 = vmatprep.subr.mxu0 0.0
      %2119 = vmatpush1.msra.mxu0 0.0
      %2120 = vmatprep.subr.mxu0 0.0
      %2121 = vmatpush1.msra.mxu0 0.0
      %2122 = vmatprep.subr.mxu0 0.0
      %2123 = vmatpush1.msra.mxu0 0.0
      %2124 = vmatprep.subr.mxu0 0.0
      %2125 = vmatpush1.msra.mxu0 0.0
      %2126 = vmatprep.subr.mxu0 0.0
      %2127 = vmatpush1.msra.mxu0 0.0
      %2128 = vmatprep.subr.mxu0 0.0
      %2129 = vmatpush1.msra.mxu0 0.0
      %2130 = vmatprep.subr.mxu0 0.0
      %2131 = vmatpush1.msra.mxu0 0.0
      %2132 = vmatprep.subr.mxu0 0.0
      %2133 = vmatpush1.msra.mxu0 0.0
      %2134 = vmatprep.subr.mxu0 0.0
      %2135 = vmatpush1.msra.mxu0 0.0
      %2136 = vmatprep.subr.mxu0 0.0
      %2137 = vmatpush1.msra.mxu0 0.0
      %2138 = vmatprep.mubr.f32.mxu0 0.0
      %2139 = vmatmul.mubr.f32.gmra.mrb[0].mxu0 %v1896
      %v2140 = vpop.f32.mrb[0].mxu0
      %v2141 = vadd.f32 0.0, %v2140
      %v2142 = vpop.f32.mrb[0].mxu0
      %v2143 = vadd.f32 0.0, %v2142
      %2144 = vdwg.mxu0
      %2145 = vmatprep.subr.mxu0 %v335
      %2146 = vmatpush1.msra.mxu0 %v334
      %2147 = vmatprep.subr.mxu0 %v339
      %2148 = vmatpush1.msra.mxu0 %v338
      %2149 = vmatprep.subr.mxu0 %v343
      %2150 = vmatpush1.msra.mxu0 %v342
      %2151 = vmatprep.subr.mxu0 %v347
      %2152 = vmatpush1.msra.mxu0 %v346
      %2153 = vmatprep.subr.mxu0 %v351
      %2154 = vmatpush1.msra.mxu0 %v350
      %2155 = vmatprep.subr.mxu0 %v355
      %2156 = vmatpush1.msra.mxu0 %v354
      %2157 = vmatprep.subr.mxu0 %v359
      %2158 = vmatpush1.msra.mxu0 %v358
      %2159 = vmatprep.subr.mxu0 %v363
      %2160 = vmatpush1.msra.mxu0 %v362
      %2161 = vmatprep.subr.mxu0 %v367
      %2162 = vmatpush1.msra.mxu0 %v366
      %2163 = vmatprep.subr.mxu0 %v371
      %2164 = vmatpush1.msra.mxu0 %v370
      %2165 = vmatprep.subr.mxu0 %v375
      %2166 = vmatpush1.msra.mxu0 %v374
      %2167 = vmatprep.subr.mxu0 %v379
      %2168 = vmatpush1.msra.mxu0 %v378
      %2169 = vmatprep.subr.mxu0 %v383
      %2170 = vmatpush1.msra.mxu0 %v382
      %2171 = vmatprep.subr.mxu0 %v387
      %2172 = vmatpush1.msra.mxu0 %v386
      %2173 = vmatprep.subr.mxu0 %v391
      %2174 = vmatpush1.msra.mxu0 %v390
      %2175 = vmatprep.subr.mxu0 %v395
      %2176 = vmatpush1.msra.mxu0 %v394
      %2177 = vmatprep.subr.mxu0 0.0
      %2178 = vmatpush1.msra.mxu0 0.0
      %2179 = vmatprep.subr.mxu0 0.0
      %2180 = vmatpush1.msra.mxu0 0.0
      %2181 = vmatprep.subr.mxu0 0.0
      %2182 = vmatpush1.msra.mxu0 0.0
      %2183 = vmatprep.subr.mxu0 0.0
      %2184 = vmatpush1.msra.mxu0 0.0
      %2185 = vmatprep.subr.mxu0 0.0
      %2186 = vmatpush1.msra.mxu0 0.0
      %2187 = vmatprep.subr.mxu0 0.0
      %2188 = vmatpush1.msra.mxu0 0.0
      %2189 = vmatprep.subr.mxu0 0.0
      %2190 = vmatpush1.msra.mxu0 0.0
      %2191 = vmatprep.subr.mxu0 0.0
      %2192 = vmatpush1.msra.mxu0 0.0
      %2193 = vmatprep.subr.mxu0 0.0
      %2194 = vmatpush1.msra.mxu0 0.0
      %2195 = vmatprep.subr.mxu0 0.0
      %2196 = vmatpush1.msra.mxu0 0.0
      %2197 = vmatprep.subr.mxu0 0.0
      %2198 = vmatpush1.msra.mxu0 0.0
      %2199 = vmatprep.subr.mxu0 0.0
      %2200 = vmatpush1.msra.mxu0 0.0
      %2201 = vmatprep.subr.mxu0 0.0
      %2202 = vmatpush1.msra.mxu0 0.0
      %2203 = vmatprep.subr.mxu0 0.0
      %2204 = vmatpush1.msra.mxu0 0.0
      %2205 = vmatprep.subr.mxu0 0.0
      %2206 = vmatpush1.msra.mxu0 0.0
      %2207 = vmatprep.subr.mxu0 0.0
      %2208 = vmatpush1.msra.mxu0 0.0
      %2209 = vmatprep.mubr.f32.mxu0 0.0
      %2210 = vmatmul.mubr.f32.gmra.mrb[0].mxu0 %v1896
      %v2211 = vpop.f32.mrb[0].mxu0
      %v2212 = vadd.f32 0.0, %v2211
      %v2213 = vpop.f32.mrb[0].mxu0
      %v2214 = vadd.f32 0.0, %v2213
      %2215 = vdwg.mxu0
      %v2216 = vadd.f32 %v2070, %v2141
      %v2217 = vadd.f32 %v2071, %v2143
      %v2218 = vadd.f32 %v2072, %v2212
      %v2219 = vadd.f32 %v2073, %v2214
      %v2220 = vxor.u32 %v2216, 2147483648
      %v2221 = vmul.f32 %v2220, 1.442695
      %v2222 = vpow.pop %v2221
      %v2223 = vadd.f32 %v2222, 1.0
      %v2224 = vrcp.pop %v2223
      %v2225 = vmul.f32 1.0, %v2224
      %v2226 = vxor.u32 %v2217, 2147483648
      %v2227 = vmul.f32 %v2226, 1.442695
      %v2228 = vpow.pop %v2227
      %v2229 = vadd.f32 %v2228, 1.0
      %v2230 = vrcp.pop %v2229
      %v2231 = vmul.f32 1.0, %v2230
      %v2232 = vtanh.pop %v2218
      %v2233 = vxor.u32 %v2219, 2147483648
      %v2234 = vmul.f32 %v2233, 1.442695
      %v2235 = vpow.pop %v2234
      %v2236 = vadd.f32 %v2235, 1.0
      %v2237 = vrcp.pop %v2236
      %v2238 = vmul.f32 1.0, %v2237
      %v2239 = vmul.f32 %v2231, %v1890
      %v2240 = vmul.f32 %v2225, %v2232
      %v2241 = vadd.f32 %v2239, %v2240
      %v2242 = vtanh.pop %v2241
      %v2243 = vmul.f32 %v2238, %v2242
      %2245 = vset.pattern.permute.xlu0 0
      %2246 = vperm.xlu0 %2245, %v2069
      %v2247 = vpop.permute.xlu0 %2246
      %v2249 = vmul.f32 %v2247, %v2241
      %v2250 = vsub.f32 1.0, %v2069
      %2252 = vset.pattern.permute.xlu0 0
      %2253 = vperm.xlu0 %2252, %v2250
      %v2254 = vpop.permute.xlu0 %2253
      %v2256 = vmul.f32 %v2254, %v1890
      %v2257 = vadd.f32 %v2249, %v2256
      %v2258 = vmul.f32 %v2247, %v2243
      %v2259 = vmul.f32 %v2254, %v1896
      %v2260 = vadd.f32 %v2258, %v2259
      %2261 = vmatprep.subr.mxu0 %v397
      %2262 = vmatpush1.msra.mxu0 %v396
      %2263 = vmatprep.subr.mxu0 %v401
      %2264 = vmatpush1.msra.mxu0 %v400
      %2265 = vmatprep.subr.mxu0 %v405
      %2266 = vmatpush1.msra.mxu0 %v404
      %2267 = vmatprep.subr.mxu0 %v409
      %2268 = vmatpush1.msra.mxu0 %v408
      %2269 = vmatprep.subr.mxu0 %v413
      %2270 = vmatpush1.msra.mxu0 %v412
      %2271 = vmatprep.subr.mxu0 %v417
      %2272 = vmatpush1.msra.mxu0 %v416
      %2273 = vmatprep.subr.mxu0 %v421
      %2274 = vmatpush1.msra.mxu0 %v420
      %2275 = vmatprep.subr.mxu0 %v425
      %2276 = vmatpush1.msra.mxu0 %v424
      %2277 = vmatprep.subr.mxu0 %v429
      %2278 = vmatpush1.msra.mxu0 %v428
      %2279 = vmatprep.subr.mxu0 %v433
      %2280 = vmatpush1.msra.mxu0 %v432
      %2281 = vmatprep.subr.mxu0 %v437
      %2282 = vmatpush1.msra.mxu0 %v436
      %2283 = vmatprep.subr.mxu0 %v441
      %2284 = vmatpush1.msra.mxu0 %v440
      %2285 = vmatprep.subr.mxu0 %v445
      %2286 = vmatpush1.msra.mxu0 %v444
      %2287 = vmatprep.subr.mxu0 %v449
      %2288 = vmatpush1.msra.mxu0 %v448
      %2289 = vmatprep.subr.mxu0 %v453
      %2290 = vmatpush1.msra.mxu0 %v452
      %2291 = vmatprep.subr.mxu0 %v457
      %2292 = vmatpush1.msra.mxu0 %v456
      %2293 = vmatprep.subr.mxu0 %v461
      %2294 = vmatpush1.msra.mxu0 %v460
      %2295 = vmatprep.subr.mxu0 %v465
      %2296 = vmatpush1.msra.mxu0 %v464
      %2297 = vmatprep.subr.mxu0 %v469
      %2298 = vmatpush1.msra.mxu0 %v468
      %2299 = vmatprep.subr.mxu0 %v473
      %2300 = vmatpush1.msra.mxu0 %v472
      %2301 = vmatprep.subr.mxu0 %v477
      %2302 = vmatpush1.msra.mxu0 %v476
      %2303 = vmatprep.subr.mxu0 %v481
      %2304 = vmatpush1.msra.mxu0 %v480
      %2305 = vmatprep.subr.mxu0 %v485
      %2306 = vmatpush1.msra.mxu0 %v484
      %2307 = vmatprep.subr.mxu0 %v489
      %2308 = vmatpush1.msra.mxu0 %v488
      %2309 = vmatprep.subr.mxu0 %v493
      %2310 = vmatpush1.msra.mxu0 %v492
      %2311 = vmatprep.subr.mxu0 %v497
      %2312 = vmatpush1.msra.mxu0 %v496
      %2313 = vmatprep.subr.mxu0 %v501
      %2314 = vmatpush1.msra.mxu0 %v500
      %2315 = vmatprep.subr.mxu0 %v505
      %2316 = vmatpush1.msra.mxu0 %v504
      %2317 = vmatprep.subr.mxu0 %v509
      %2318 = vmatpush1.msra.mxu0 %v508
      %2319 = vmatprep.subr.mxu0 %v513
      %2320 = vmatpush1.msra.mxu0 %v512
      %2321 = vmatprep.subr.mxu0 %v517
      %2322 = vmatpush1.msra.mxu0 %v516
      %2323 = vmatprep.subr.mxu0 %v521
      %2324 = vmatpush1.msra.mxu0 %v520
      %2325 = vmatprep.mubr.f32.mxu0 %v2068
      %2326 = vmatmul.mubr.f32.gmra.mrb[0].mxu0 %v2260
      %v2327 = vpop.f32.mrb[0].mxu0
      %v2328 = vadd.f32 %v529, %v2327
      %v2329 = vpop.f32.mrb[0].mxu0
      %v2330 = vadd.f32 %v533, %v2329
      %2331 = vdwg.mxu0
      %2332 = vmatprep.subr.mxu0 %v399
      %2333 = vmatpush1.msra.mxu0 %v398
      %2334 = vmatprep.subr.mxu0 %v403
      %2335 = vmatpush1.msra.mxu0 %v402
      %2336 = vmatprep.subr.mxu0 %v407
      %2337 = vmatpush1.msra.mxu0 %v406
      %2338 = vmatprep.subr.mxu0 %v411
      %2339 = vmatpush1.msra.mxu0 %v410
      %2340 = vmatprep.subr.mxu0 %v415
      %2341 = vmatpush1.msra.mxu0 %v414
      %2342 = vmatprep.subr.mxu0 %v419
      %2343 = vmatpush1.msra.mxu0 %v418
      %2344 = vmatprep.subr.mxu0 %v423
      %2345 = vmatpush1.msra.mxu0 %v422
      %2346 = vmatprep.subr.mxu0 %v427
      %2347 = vmatpush1.msra.mxu0 %v426
      %2348 = vmatprep.subr.mxu0 %v431
      %2349 = vmatpush1.msra.mxu0 %v430
      %2350 = vmatprep.subr.mxu0 %v435
      %2351 = vmatpush1.msra.mxu0 %v434
      %2352 = vmatprep.subr.mxu0 %v439
      %2353 = vmatpush1.msra.mxu0 %v438
      %2354 = vmatprep.subr.mxu0 %v443
      %2355 = vmatpush1.msra.mxu0 %v442
      %2356 = vmatprep.subr.mxu0 %v447
      %2357 = vmatpush1.msra.mxu0 %v446
      %2358 = vmatprep.subr.mxu0 %v451
      %2359 = vmatpush1.msra.mxu0 %v450
      %2360 = vmatprep.subr.mxu0 %v455
      %2361 = vmatpush1.msra.mxu0 %v454
      %2362 = vmatprep.subr.mxu0 %v459
      %2363 = vmatpush1.msra.mxu0 %v458
      %2364 = vmatprep.subr.mxu0 %v463
      %2365 = vmatpush1.msra.mxu0 %v462
      %2366 = vmatprep.subr.mxu0 %v467
      %2367 = vmatpush1.msra.mxu0 %v466
      %2368 = vmatprep.subr.mxu0 %v471
      %2369 = vmatpush1.msra.mxu0 %v470
      %2370 = vmatprep.subr.mxu0 %v475
      %2371 = vmatpush1.msra.mxu0 %v474
      %2372 = vmatprep.subr.mxu0 %v479
      %2373 = vmatpush1.msra.mxu0 %v478
      %2374 = vmatprep.subr.mxu0 %v483
      %2375 = vmatpush1.msra.mxu0 %v482
      %2376 = vmatprep.subr.mxu0 %v487
      %2377 = vmatpush1.msra.mxu0 %v486
      %2378 = vmatprep.subr.mxu0 %v491
      %2379 = vmatpush1.msra.mxu0 %v490
      %2380 = vmatprep.subr.mxu0 %v495
      %2381 = vmatpush1.msra.mxu0 %v494
      %2382 = vmatprep.subr.mxu0 %v499
      %2383 = vmatpush1.msra.mxu0 %v498
      %2384 = vmatprep.subr.mxu0 %v503
      %2385 = vmatpush1.msra.mxu0 %v502
      %2386 = vmatprep.subr.mxu0 %v507
      %2387 = vmatpush1.msra.mxu0 %v506
      %2388 = vmatprep.subr.mxu0 %v511
      %2389 = vmatpush1.msra.mxu0 %v510
      %2390 = vmatprep.subr.mxu0 %v515
      %2391 = vmatpush1.msra.mxu0 %v514
      %2392 = vmatprep.subr.mxu0 %v519
      %2393 = vmatpush1.msra.mxu0 %v518
      %2394 = vmatprep.subr.mxu0 %v523
      %2395 = vmatpush1.msra.mxu0 %v522
      %2396 = vmatprep.mubr.f32.mxu0 %v2068
      %2397 = vmatmul.mubr.f32.gmra.mrb[0].mxu0 %v2260
      %v2398 = vpop.f32.mrb[0].mxu0
      %v2399 = vadd.f32 %v537, %v2398
      %v2400 = vpop.f32.mrb[0].mxu0
      %v2401 = vadd.f32 %v541, %v2400
      %2402 = vdwg.mxu0
      %v2403 = vxor.u32 %v2328, 2147483648
      %v2404 = vmul.f32 %v2403, 1.442695
      %v2405 = vpow.pop %v2404
      %v2406 = vadd.f32 %v2405, 1.0
      %v2407 = vrcp.pop %v2406
      %v2408 = vmul.f32 1.0, %v2407
      %v2409 = vxor.u32 %v2330, 2147483648
      %v2410 = vmul.f32 %v2409, 1.442695
      %v2411 = vpow.pop %v2410
      %v2412 = vadd.f32 %v2411, 1.0
      %v2413 = vrcp.pop %v2412
      %v2414 = vmul.f32 1.0, %v2413
      %v2415 = vtanh.pop %v2399
      %v2416 = vxor.u32 %v2401, 2147483648
      %v2417 = vmul.f32 %v2416, 1.442695
      %v2418 = vpow.pop %v2417
      %v2419 = vadd.f32 %v2418, 1.0
      %v2420 = vrcp.pop %v2419
      %v2421 = vmul.f32 1.0, %v2420
      %v2422 = vmul.f32 %v2414, %v2065
      %v2423 = vmul.f32 %v2408, %v2415
      %v2424 = vadd.f32 %v2422, %v2423
      %v2425 = vtanh.pop %v2424
      %v2426 = vmul.f32 %v2421, %v2425
      %v2427 = vmul.f32 %v2247, %v2424
      %v2428 = vmul.f32 %v2254, %v2065
      %v2429 = vadd.f32 %v2427, %v2428
      %v2430 = vmul.f32 %v2247, %v2426
      %v2431 = vmul.f32 %v2254, %v2068
      %v2432 = vadd.f32 %v2430, %v2431
      %v2433 = vld [vmem:[%s2 + $0xa] sm:$0x3]
      %v2434 = vld [vmem:[#allocation2 + $0x20] sm:$0xc]
      %v2435 = vld [vmem:[#allocation2 + $0x28] sm:$0xc]
      %v2436 = vld [vmem:[#allocation2 + $0x30] sm:$0xc]
      %v2437 = vld [vmem:[#allocation2 + $0x38] sm:$0xc]
      %2438 = vmatprep.subr.mxu0 %v333
      %2439 = vmatpush1.msra.mxu0 %v332
      %2440 = vmatprep.subr.mxu0 %v337
      %2441 = vmatpush1.msra.mxu0 %v336
      %2442 = vmatprep.subr.mxu0 %v341
      %2443 = vmatpush1.msra.mxu0 %v340
      %2444 = vmatprep.subr.mxu0 %v345
      %2445 = vmatpush1.msra.mxu0 %v344
      %2446 = vmatprep.subr.mxu0 %v349
      %2447 = vmatpush1.msra.mxu0 %v348
      %2448 = vmatprep.subr.mxu0 %v353
      %2449 = vmatpush1.msra.mxu0 %v352
      %2450 = vmatprep.subr.mxu0 %v357
      %2451 = vmatpush1.msra.mxu0 %v356
      %2452 = vmatprep.subr.mxu0 %v361
      %2453 = vmatpush1.msra.mxu0 %v360
      %2454 = vmatprep.subr.mxu0 %v365
      %2455 = vmatpush1.msra.mxu0 %v364
      %2456 = vmatprep.subr.mxu0 %v369
      %2457 = vmatpush1.msra.mxu0 %v368
      %2458 = vmatprep.subr.mxu0 %v373
      %2459 = vmatpush1.msra.mxu0 %v372
      %2460 = vmatprep.subr.mxu0 %v377
      %2461 = vmatpush1.msra.mxu0 %v376
      %2462 = vmatprep.subr.mxu0 %v381
      %2463 = vmatpush1.msra.mxu0 %v380
      %2464 = vmatprep.subr.mxu0 %v385
      %2465 = vmatpush1.msra.mxu0 %v384
      %2466 = vmatprep.subr.mxu0 %v389
      %2467 = vmatpush1.msra.mxu0 %v388
      %2468 = vmatprep.subr.mxu0 %v393
      %2469 = vmatpush1.msra.mxu0 %v392
      %2470 = vmatprep.subr.mxu0 0.0
      %2471 = vmatpush1.msra.mxu0 0.0
      %2472 = vmatprep.subr.mxu0 0.0
      %2473 = vmatpush1.msra.mxu0 0.0
      %2474 = vmatprep.subr.mxu0 0.0
      %2475 = vmatpush1.msra.mxu0 0.0
      %2476 = vmatprep.subr.mxu0 0.0
      %2477 = vmatpush1.msra.mxu0 0.0
      %2478 = vmatprep.subr.mxu0 0.0
      %2479 = vmatpush1.msra.mxu0 0.0
      %2480 = vmatprep.subr.mxu0 0.0
      %2481 = vmatpush1.msra.mxu0 0.0
      %2482 = vmatprep.subr.mxu0 0.0
      %2483 = vmatpush1.msra.mxu0 0.0
      %2484 = vmatprep.subr.mxu0 0.0
      %2485 = vmatpush1.msra.mxu0 0.0
      %2486 = vmatprep.subr.mxu0 0.0
      %2487 = vmatpush1.msra.mxu0 0.0
      %2488 = vmatprep.subr.mxu0 0.0
      %2489 = vmatpush1.msra.mxu0 0.0
      %2490 = vmatprep.subr.mxu0 0.0
      %2491 = vmatpush1.msra.mxu0 0.0
      %2492 = vmatprep.subr.mxu0 0.0
      %2493 = vmatpush1.msra.mxu0 0.0
      %2494 = vmatprep.subr.mxu0 0.0
      %2495 = vmatpush1.msra.mxu0 0.0
      %2496 = vmatprep.subr.mxu0 0.0
      %2497 = vmatpush1.msra.mxu0 0.0
      %2498 = vmatprep.subr.mxu0 0.0
      %2499 = vmatpush1.msra.mxu0 0.0
      %2500 = vmatprep.subr.mxu0 0.0
      %2501 = vmatpush1.msra.mxu0 0.0
      %2502 = vmatprep.mubr.f32.mxu0 0.0
      %2503 = vmatmul.mubr.f32.gmra.mrb[0].mxu0 %v2260
      %v2504 = vpop.f32.mrb[0].mxu0
      %v2505 = vadd.f32 0.0, %v2504
      %v2506 = vpop.f32.mrb[0].mxu0
      %v2507 = vadd.f32 0.0, %v2506
      %2508 = vdwg.mxu0
      %2509 = vmatprep.subr.mxu0 %v335
      %2510 = vmatpush1.msra.mxu0 %v334
      %2511 = vmatprep.subr.mxu0 %v339
      %2512 = vmatpush1.msra.mxu0 %v338
      %2513 = vmatprep.subr.mxu0 %v343
      %2514 = vmatpush1.msra.mxu0 %v342
      %2515 = vmatprep.subr.mxu0 %v347
      %2516 = vmatpush1.msra.mxu0 %v346
      %2517 = vmatprep.subr.mxu0 %v351
      %2518 = vmatpush1.msra.mxu0 %v350
      %2519 = vmatprep.subr.mxu0 %v355
      %2520 = vmatpush1.msra.mxu0 %v354
      %2521 = vmatprep.subr.mxu0 %v359
      %2522 = vmatpush1.msra.mxu0 %v358
      %2523 = vmatprep.subr.mxu0 %v363
      %2524 = vmatpush1.msra.mxu0 %v362
      %2525 = vmatprep.subr.mxu0 %v367
      %2526 = vmatpush1.msra.mxu0 %v366
      %2527 = vmatprep.subr.mxu0 %v371
      %2528 = vmatpush1.msra.mxu0 %v370
      %2529 = vmatprep.subr.mxu0 %v375
      %2530 = vmatpush1.msra.mxu0 %v374
      %2531 = vmatprep.subr.mxu0 %v379
      %2532 = vmatpush1.msra.mxu0 %v378
      %2533 = vmatprep.subr.mxu0 %v383
      %2534 = vmatpush1.msra.mxu0 %v382
      %2535 = vmatprep.subr.mxu0 %v387
      %2536 = vmatpush1.msra.mxu0 %v386
      %2537 = vmatprep.subr.mxu0 %v391
      %2538 = vmatpush1.msra.mxu0 %v390
      %2539 = vmatprep.subr.mxu0 %v395
      %2540 = vmatpush1.msra.mxu0 %v394
      %2541 = vmatprep.subr.mxu0 0.0
      %2542 = vmatpush1.msra.mxu0 0.0
      %2543 = vmatprep.subr.mxu0 0.0
      %2544 = vmatpush1.msra.mxu0 0.0
      %2545 = vmatprep.subr.mxu0 0.0
      %2546 = vmatpush1.msra.mxu0 0.0
      %2547 = vmatprep.subr.mxu0 0.0
      %2548 = vmatpush1.msra.mxu0 0.0
      %2549 = vmatprep.subr.mxu0 0.0
      %2550 = vmatpush1.msra.mxu0 0.0
      %2551 = vmatprep.subr.mxu0 0.0
      %2552 = vmatpush1.msra.mxu0 0.0
      %2553 = vmatprep.subr.mxu0 0.0
      %2554 = vmatpush1.msra.mxu0 0.0
      %2555 = vmatprep.subr.mxu0 0.0
      %2556 = vmatpush1.msra.mxu0 0.0
      %2557 = vmatprep.subr.mxu0 0.0
      %2558 = vmatpush1.msra.mxu0 0.0
      %2559 = vmatprep.subr.mxu0 0.0
      %2560 = vmatpush1.msra.mxu0 0.0
      %2561 = vmatprep.subr.mxu0 0.0
      %2562 = vmatpush1.msra.mxu0 0.0
      %2563 = vmatprep.subr.mxu0 0.0
      %2564 = vmatpush1.msra.mxu0 0.0
      %2565 = vmatprep.subr.mxu0 0.0
      %2566 = vmatpush1.msra.mxu0 0.0
      %2567 = vmatprep.subr.mxu0 0.0
      %2568 = vmatpush1.msra.mxu0 0.0
      %2569 = vmatprep.subr.mxu0 0.0
      %2570 = vmatpush1.msra.mxu0 0.0
      %2571 = vmatprep.subr.mxu0 0.0
      %2572 = vmatpush1.msra.mxu0 0.0
      %2573 = vmatprep.mubr.f32.mxu0 0.0
      %2574 = vmatmul.mubr.f32.gmra.mrb[0].mxu0 %v2260
      %v2575 = vpop.f32.mrb[0].mxu0
      %v2576 = vadd.f32 0.0, %v2575
      %v2577 = vpop.f32.mrb[0].mxu0
      %v2578 = vadd.f32 0.0, %v2577
      %2579 = vdwg.mxu0
      %v2584 = vrot.slane %v2505, 6
      %v2585 = vrot.slane %v2507, 6
      %v2586 = vrot.slane %v2576, 6
      %v2587 = vrot.slane %v2578, 6
      %v2592 = vadd.f32 %v2434, %v2584
      %v2593 = vadd.f32 %v2435, %v2585
      %v2594 = vadd.f32 %v2436, %v2586
      %v2595 = vadd.f32 %v2437, %v2587
      %v2596 = vxor.u32 %v2592, 2147483648
      %v2597 = vmul.f32 %v2596, 1.442695
      %v2598 = vpow.pop %v2597
      %v2599 = vadd.f32 %v2598, 1.0
      %v2600 = vrcp.pop %v2599
      %v2601 = vmul.f32 1.0, %v2600
      %v2602 = vxor.u32 %v2593, 2147483648
      %v2603 = vmul.f32 %v2602, 1.442695
      %v2604 = vpow.pop %v2603
      %v2605 = vadd.f32 %v2604, 1.0
      %v2606 = vrcp.pop %v2605
      %v2607 = vmul.f32 1.0, %v2606
      %v2608 = vtanh.pop %v2594
      %v2609 = vxor.u32 %v2595, 2147483648
      %v2610 = vmul.f32 %v2609, 1.442695
      %v2611 = vpow.pop %v2610
      %v2612 = vadd.f32 %v2611, 1.0
      %v2613 = vrcp.pop %v2612
      %v2614 = vmul.f32 1.0, %v2613
      %v2616 = vrot.slane %v2257, 6
      %v2618 = vmul.f32 %v2607, %v2616
      %v2619 = vmul.f32 %v2601, %v2608
      %v2620 = vadd.f32 %v2618, %v2619
      %v2621 = vtanh.pop %v2620
      %v2622 = vmul.f32 %v2614, %v2621
      %2624 = vset.pattern.permute.xlu0 0
      %2625 = vperm.xlu0 %2624, %v2433
      %v2626 = vpop.permute.xlu0 %2625
      %v2629 = vrot.slane %v2620, 2
      %v2631 = vmul.f32 %v2626, %v2629
      %v2632 = vsub.f32 1.0, %v2433
      %2634 = vset.pattern.permute.xlu0 0
      %2635 = vperm.xlu0 %2634, %v2632
      %v2636 = vpop.permute.xlu0 %2635
      %v2638 = vmul.f32 %v2636, %v2257
      %v2639 = vadd.f32 %v2631, %v2638
      %v2641 = vrot.slane %v2622, 2
      %v2643 = vmul.f32 %v2626, %v2641
      %v2644 = vmul.f32 %v2636, %v2260
      %v2645 = vadd.f32 %v2643, %v2644
      %2646 = vmatprep.subr.mxu0 %v397
      %2647 = vmatpush1.msra.mxu0 %v396
      %2648 = vmatprep.subr.mxu0 %v401
      %2649 = vmatpush1.msra.mxu0 %v400
      %2650 = vmatprep.subr.mxu0 %v405
      %2651 = vmatpush1.msra.mxu0 %v404
      %2652 = vmatprep.subr.mxu0 %v409
      %2653 = vmatpush1.msra.mxu0 %v408
      %2654 = vmatprep.subr.mxu0 %v413
      %2655 = vmatpush1.msra.mxu0 %v412
      %2656 = vmatprep.subr.mxu0 %v417
      %2657 = vmatpush1.msra.mxu0 %v416
      %2658 = vmatprep.subr.mxu0 %v421
      %2659 = vmatpush1.msra.mxu0 %v420
      %2660 = vmatprep.subr.mxu0 %v425
      %2661 = vmatpush1.msra.mxu0 %v424
      %2662 = vmatprep.subr.mxu0 %v429
      %2663 = vmatpush1.msra.mxu0 %v428
      %2664 = vmatprep.subr.mxu0 %v433
      %2665 = vmatpush1.msra.mxu0 %v432
      %2666 = vmatprep.subr.mxu0 %v437
      %2667 = vmatpush1.msra.mxu0 %v436
      %2668 = vmatprep.subr.mxu0 %v441
      %2669 = vmatpush1.msra.mxu0 %v440
      %2670 = vmatprep.subr.mxu0 %v445
      %2671 = vmatpush1.msra.mxu0 %v444
      %2672 = vmatprep.subr.mxu0 %v449
      %2673 = vmatpush1.msra.mxu0 %v448
      %2674 = vmatprep.subr.mxu0 %v453
      %2675 = vmatpush1.msra.mxu0 %v452
      %2676 = vmatprep.subr.mxu0 %v457
      %2677 = vmatpush1.msra.mxu0 %v456
      %2678 = vmatprep.subr.mxu0 %v461
      %2679 = vmatpush1.msra.mxu0 %v460
      %2680 = vmatprep.subr.mxu0 %v465
      %2681 = vmatpush1.msra.mxu0 %v464
      %2682 = vmatprep.subr.mxu0 %v469
      %2683 = vmatpush1.msra.mxu0 %v468
      %2684 = vmatprep.subr.mxu0 %v473
      %2685 = vmatpush1.msra.mxu0 %v472
      %2686 = vmatprep.subr.mxu0 %v477
      %2687 = vmatpush1.msra.mxu0 %v476
      %2688 = vmatprep.subr.mxu0 %v481
      %2689 = vmatpush1.msra.mxu0 %v480
      %2690 = vmatprep.subr.mxu0 %v485
      %2691 = vmatpush1.msra.mxu0 %v484
      %2692 = vmatprep.subr.mxu0 %v489
      %2693 = vmatpush1.msra.mxu0 %v488
      %2694 = vmatprep.subr.mxu0 %v493
      %2695 = vmatpush1.msra.mxu0 %v492
      %2696 = vmatprep.subr.mxu0 %v497
      %2697 = vmatpush1.msra.mxu0 %v496
      %2698 = vmatprep.subr.mxu0 %v501
      %2699 = vmatpush1.msra.mxu0 %v500
      %2700 = vmatprep.subr.mxu0 %v505
      %2701 = vmatpush1.msra.mxu0 %v504
      %2702 = vmatprep.subr.mxu0 %v509
      %2703 = vmatpush1.msra.mxu0 %v508
      %2704 = vmatprep.subr.mxu0 %v513
      %2705 = vmatpush1.msra.mxu0 %v512
      %2706 = vmatprep.subr.mxu0 %v517
      %2707 = vmatpush1.msra.mxu0 %v516
      %2708 = vmatprep.subr.mxu0 %v521
      %2709 = vmatpush1.msra.mxu0 %v520
      %2710 = vmatprep.mubr.f32.mxu0 %v2432
      %2711 = vmatmul.mubr.f32.gmra.mrb[0].mxu0 %v2645
      %v2712 = vpop.f32.mrb[0].mxu0
      %v2713 = vadd.f32 %v529, %v2712
      %v2714 = vpop.f32.mrb[0].mxu0
      %v2715 = vadd.f32 %v533, %v2714
      %2716 = vdwg.mxu0
      %2717 = vmatprep.subr.mxu0 %v399
      %2718 = vmatpush1.msra.mxu0 %v398
      %2719 = vmatprep.subr.mxu0 %v403
      %2720 = vmatpush1.msra.mxu0 %v402
      %2721 = vmatprep.subr.mxu0 %v407
      %2722 = vmatpush1.msra.mxu0 %v406
      %2723 = vmatprep.subr.mxu0 %v411
      %2724 = vmatpush1.msra.mxu0 %v410
      %2725 = vmatprep.subr.mxu0 %v415
      %2726 = vmatpush1.msra.mxu0 %v414
      %2727 = vmatprep.subr.mxu0 %v419
      %2728 = vmatpush1.msra.mxu0 %v418
      %2729 = vmatprep.subr.mxu0 %v423
      %2730 = vmatpush1.msra.mxu0 %v422
      %2731 = vmatprep.subr.mxu0 %v427
      %2732 = vmatpush1.msra.mxu0 %v426
      %2733 = vmatprep.subr.mxu0 %v431
      %2734 = vmatpush1.msra.mxu0 %v430
      %2735 = vmatprep.subr.mxu0 %v435
      %2736 = vmatpush1.msra.mxu0 %v434
      %2737 = vmatprep.subr.mxu0 %v439
      %2738 = vmatpush1.msra.mxu0 %v438
      %2739 = vmatprep.subr.mxu0 %v443
      %2740 = vmatpush1.msra.mxu0 %v442
      %2741 = vmatprep.subr.mxu0 %v447
      %2742 = vmatpush1.msra.mxu0 %v446
      %2743 = vmatprep.subr.mxu0 %v451
      %2744 = vmatpush1.msra.mxu0 %v450
      %2745 = vmatprep.subr.mxu0 %v455
      %2746 = vmatpush1.msra.mxu0 %v454
      %2747 = vmatprep.subr.mxu0 %v459
      %2748 = vmatpush1.msra.mxu0 %v458
      %2749 = vmatprep.subr.mxu0 %v463
      %2750 = vmatpush1.msra.mxu0 %v462
      %2751 = vmatprep.subr.mxu0 %v467
      %2752 = vmatpush1.msra.mxu0 %v466
      %2753 = vmatprep.subr.mxu0 %v471
      %2754 = vmatpush1.msra.mxu0 %v470
      %2755 = vmatprep.subr.mxu0 %v475
      %2756 = vmatpush1.msra.mxu0 %v474
      %2757 = vmatprep.subr.mxu0 %v479
      %2758 = vmatpush1.msra.mxu0 %v478
      %2759 = vmatprep.subr.mxu0 %v483
      %2760 = vmatpush1.msra.mxu0 %v482
      %2761 = vmatprep.subr.mxu0 %v487
      %2762 = vmatpush1.msra.mxu0 %v486
      %2763 = vmatprep.subr.mxu0 %v491
      %2764 = vmatpush1.msra.mxu0 %v490
      %2765 = vmatprep.subr.mxu0 %v495
      %2766 = vmatpush1.msra.mxu0 %v494
      %2767 = vmatprep.subr.mxu0 %v499
      %2768 = vmatpush1.msra.mxu0 %v498
      %2769 = vmatprep.subr.mxu0 %v503
      %2770 = vmatpush1.msra.mxu0 %v502
      %2771 = vmatprep.subr.mxu0 %v507
      %2772 = vmatpush1.msra.mxu0 %v506
      %2773 = vmatprep.subr.mxu0 %v511
      %2774 = vmatpush1.msra.mxu0 %v510
      %2775 = vmatprep.subr.mxu0 %v515
      %2776 = vmatpush1.msra.mxu0 %v514
      %2777 = vmatprep.subr.mxu0 %v519
      %2778 = vmatpush1.msra.mxu0 %v518
      %2779 = vmatprep.subr.mxu0 %v523
      %2780 = vmatpush1.msra.mxu0 %v522
      %2781 = vmatprep.mubr.f32.mxu0 %v2432
      %2782 = vmatmul.mubr.f32.gmra.mrb[0].mxu0 %v2645
      %v2783 = vpop.f32.mrb[0].mxu0
      %v2784 = vadd.f32 %v537, %v2783
      %v2785 = vpop.f32.mrb[0].mxu0
      %v2786 = vadd.f32 %v541, %v2785
      %2787 = vdwg.mxu0
      %v2788 = vxor.u32 %v2713, 2147483648
      %v2789 = vmul.f32 %v2788, 1.442695
      %v2790 = vpow.pop %v2789
      %v2791 = vadd.f32 %v2790, 1.0
      %v2792 = vrcp.pop %v2791
      %v2793 = vmul.f32 1.0, %v2792
      %v2794 = vxor.u32 %v2715, 2147483648
      %v2795 = vmul.f32 %v2794, 1.442695
      %v2796 = vpow.pop %v2795
      %v2797 = vadd.f32 %v2796, 1.0
      %v2798 = vrcp.pop %v2797
      %v2799 = vmul.f32 1.0, %v2798
      %v2800 = vtanh.pop %v2784
      %v2801 = vxor.u32 %v2786, 2147483648
      %v2802 = vmul.f32 %v2801, 1.442695
      %v2803 = vpow.pop %v2802
      %v2804 = vadd.f32 %v2803, 1.0
      %v2805 = vrcp.pop %v2804
      %v2806 = vmul.f32 1.0, %v2805
      %v2807 = vmul.f32 %v2799, %v2429
      %v2808 = vmul.f32 %v2793, %v2800
      %v2809 = vadd.f32 %v2807, %v2808
      %v2810 = vtanh.pop %v2809
      %v2811 = vmul.f32 %v2806, %v2810
      %v2812 = vmul.f32 %v2626, %v2809
      %v2813 = vmul.f32 %v2636, %v2429
      %v2814 = vadd.f32 %v2812, %v2813
      %v2815 = vmul.f32 %v2626, %v2811
      %v2816 = vmul.f32 %v2636, %v2432
      %v2817 = vadd.f32 %v2815, %v2816
      %v2818 = vld [vmem:[%s2 + $0xc] sm:$0x3]
      %v2819 = vld [vmem:[#allocation2 + $0x20] sm:$0x30]
      %v2820 = vld [vmem:[#allocation2 + $0x28] sm:$0x30]
      %v2821 = vld [vmem:[#allocation2 + $0x30] sm:$0x30]
      %v2822 = vld [vmem:[#allocation2 + $0x38] sm:$0x30]
      %2823 = vmatprep.subr.mxu0 %v333
      %2824 = vmatpush1.msra.mxu0 %v332
      %2825 = vmatprep.subr.mxu0 %v337
      %2826 = vmatpush1.msra.mxu0 %v336
      %2827 = vmatprep.subr.mxu0 %v341
      %2828 = vmatpush1.msra.mxu0 %v340
      %2829 = vmatprep.subr.mxu0 %v345
      %2830 = vmatpush1.msra.mxu0 %v344
      %2831 = vmatprep.subr.mxu0 %v349
      %2832 = vmatpush1.msra.mxu0 %v348
      %2833 = vmatprep.subr.mxu0 %v353
      %2834 = vmatpush1.msra.mxu0 %v352
      %2835 = vmatprep.subr.mxu0 %v357
      %2836 = vmatpush1.msra.mxu0 %v356
      %2837 = vmatprep.subr.mxu0 %v361
      %2838 = vmatpush1.msra.mxu0 %v360
      %2839 = vmatprep.subr.mxu0 %v365
      %2840 = vmatpush1.msra.mxu0 %v364
      %2841 = vmatprep.subr.mxu0 %v369
      %2842 = vmatpush1.msra.mxu0 %v368
      %2843 = vmatprep.subr.mxu0 %v373
      %2844 = vmatpush1.msra.mxu0 %v372
      %2845 = vmatprep.subr.mxu0 %v377
      %2846 = vmatpush1.msra.mxu0 %v376
      %2847 = vmatprep.subr.mxu0 %v381
      %2848 = vmatpush1.msra.mxu0 %v380
      %2849 = vmatprep.subr.mxu0 %v385
      %2850 = vmatpush1.msra.mxu0 %v384
      %2851 = vmatprep.subr.mxu0 %v389
      %2852 = vmatpush1.msra.mxu0 %v388
      %2853 = vmatprep.subr.mxu0 %v393
      %2854 = vmatpush1.msra.mxu0 %v392
      %2855 = vmatprep.subr.mxu0 0.0
      %2856 = vmatpush1.msra.mxu0 0.0
      %2857 = vmatprep.subr.mxu0 0.0
      %2858 = vmatpush1.msra.mxu0 0.0
      %2859 = vmatprep.subr.mxu0 0.0
      %2860 = vmatpush1.msra.mxu0 0.0
      %2861 = vmatprep.subr.mxu0 0.0
      %2862 = vmatpush1.msra.mxu0 0.0
      %2863 = vmatprep.subr.mxu0 0.0
      %2864 = vmatpush1.msra.mxu0 0.0
      %2865 = vmatprep.subr.mxu0 0.0
      %2866 = vmatpush1.msra.mxu0 0.0
      %2867 = vmatprep.subr.mxu0 0.0
      %2868 = vmatpush1.msra.mxu0 0.0
      %2869 = vmatprep.subr.mxu0 0.0
      %2870 = vmatpush1.msra.mxu0 0.0
      %2871 = vmatprep.subr.mxu0 0.0
      %2872 = vmatpush1.msra.mxu0 0.0
      %2873 = vmatprep.subr.mxu0 0.0
      %2874 = vmatpush1.msra.mxu0 0.0
      %2875 = vmatprep.subr.mxu0 0.0
      %2876 = vmatpush1.msra.mxu0 0.0
      %2877 = vmatprep.subr.mxu0 0.0
      %2878 = vmatpush1.msra.mxu0 0.0
      %2879 = vmatprep.subr.mxu0 0.0
      %2880 = vmatpush1.msra.mxu0 0.0
      %2881 = vmatprep.subr.mxu0 0.0
      %2882 = vmatpush1.msra.mxu0 0.0
      %2883 = vmatprep.subr.mxu0 0.0
      %2884 = vmatpush1.msra.mxu0 0.0
      %2885 = vmatprep.subr.mxu0 0.0
      %2886 = vmatpush1.msra.mxu0 0.0
      %2887 = vmatprep.mubr.f32.mxu0 0.0
      %2888 = vmatmul.mubr.f32.gmra.mrb[0].mxu0 %v2645
      %v2889 = vpop.f32.mrb[0].mxu0
      %v2890 = vadd.f32 0.0, %v2889
      %v2891 = vpop.f32.mrb[0].mxu0
      %v2892 = vadd.f32 0.0, %v2891
      %2893 = vdwg.mxu0
      %2894 = vmatprep.subr.mxu0 %v335
      %2895 = vmatpush1.msra.mxu0 %v334
      %2896 = vmatprep.subr.mxu0 %v339
      %2897 = vmatpush1.msra.mxu0 %v338
      %2898 = vmatprep.subr.mxu0 %v343
      %2899 = vmatpush1.msra.mxu0 %v342
      %2900 = vmatprep.subr.mxu0 %v347
      %2901 = vmatpush1.msra.mxu0 %v346
      %2902 = vmatprep.subr.mxu0 %v351
      %2903 = vmatpush1.msra.mxu0 %v350
      %2904 = vmatprep.subr.mxu0 %v355
      %2905 = vmatpush1.msra.mxu0 %v354
      %2906 = vmatprep.subr.mxu0 %v359
      %2907 = vmatpush1.msra.mxu0 %v358
      %2908 = vmatprep.subr.mxu0 %v363
      %2909 = vmatpush1.msra.mxu0 %v362
      %2910 = vmatprep.subr.mxu0 %v367
      %2911 = vmatpush1.msra.mxu0 %v366
      %2912 = vmatprep.subr.mxu0 %v371
      %2913 = vmatpush1.msra.mxu0 %v370
      %2914 = vmatprep.subr.mxu0 %v375
      %2915 = vmatpush1.msra.mxu0 %v374
      %2916 = vmatprep.subr.mxu0 %v379
      %2917 = vmatpush1.msra.mxu0 %v378
      %2918 = vmatprep.subr.mxu0 %v383
      %2919 = vmatpush1.msra.mxu0 %v382
      %2920 = vmatprep.subr.mxu0 %v387
      %2921 = vmatpush1.msra.mxu0 %v386
      %2922 = vmatprep.subr.mxu0 %v391
      %2923 = vmatpush1.msra.mxu0 %v390
      %2924 = vmatprep.subr.mxu0 %v395
      %2925 = vmatpush1.msra.mxu0 %v394
      %2926 = vmatprep.subr.mxu0 0.0
      %2927 = vmatpush1.msra.mxu0 0.0
      %2928 = vmatprep.subr.mxu0 0.0
      %2929 = vmatpush1.msra.mxu0 0.0
      %2930 = vmatprep.subr.mxu0 0.0
      %2931 = vmatpush1.msra.mxu0 0.0
      %2932 = vmatprep.subr.mxu0 0.0
      %2933 = vmatpush1.msra.mxu0 0.0
      %2934 = vmatprep.subr.mxu0 0.0
      %2935 = vmatpush1.msra.mxu0 0.0
      %2936 = vmatprep.subr.mxu0 0.0
      %2937 = vmatpush1.msra.mxu0 0.0
      %2938 = vmatprep.subr.mxu0 0.0
      %2939 = vmatpush1.msra.mxu0 0.0
      %2940 = vmatprep.subr.mxu0 0.0
      %2941 = vmatpush1.msra.mxu0 0.0
      %2942 = vmatprep.subr.mxu0 0.0
      %2943 = vmatpush1.msra.mxu0 0.0
      %2944 = vmatprep.subr.mxu0 0.0
      %2945 = vmatpush1.msra.mxu0 0.0
      %2946 = vmatprep.subr.mxu0 0.0
      %2947 = vmatpush1.msra.mxu0 0.0
      %2948 = vmatprep.subr.mxu0 0.0
      %2949 = vmatpush1.msra.mxu0 0.0
      %2950 = vmatprep.subr.mxu0 0.0
      %2951 = vmatpush1.msra.mxu0 0.0
      %2952 = vmatprep.subr.mxu0 0.0
      %2953 = vmatpush1.msra.mxu0 0.0
      %2954 = vmatprep.subr.mxu0 0.0
      %2955 = vmatpush1.msra.mxu0 0.0
      %2956 = vmatprep.subr.mxu0 0.0
      %2957 = vmatpush1.msra.mxu0 0.0
      %2958 = vmatprep.mubr.f32.mxu0 0.0
      %2959 = vmatmul.mubr.f32.gmra.mrb[0].mxu0 %v2645
      %v2960 = vpop.f32.mrb[0].mxu0
      %v2961 = vadd.f32 0.0, %v2960
      %v2962 = vpop.f32.mrb[0].mxu0
      %v2963 = vadd.f32 0.0, %v2962
      %2964 = vdwg.mxu0
      %v2969 = vrot.slane %v2890, 4
      %v2970 = vrot.slane %v2892, 4
      %v2971 = vrot.slane %v2961, 4
      %v2972 = vrot.slane %v2963, 4
      %v2977 = vadd.f32 %v2819, %v2969
      %v2978 = vadd.f32 %v2820, %v2970
      %v2979 = vadd.f32 %v2821, %v2971
      %v2980 = vadd.f32 %v2822, %v2972
      %v2981 = vxor.u32 %v2977, 2147483648
      %v2982 = vmul.f32 %v2981, 1.442695
      %v2983 = vpow.pop %v2982
      %v2984 = vadd.f32 %v2983, 1.0
      %v2985 = vrcp.pop %v2984
      %v2986 = vmul.f32 1.0, %v2985
      %v2987 = vxor.u32 %v2978, 2147483648
      %v2988 = vmul.f32 %v2987, 1.442695
      %v2989 = vpow.pop %v2988
      %v2990 = vadd.f32 %v2989, 1.0
      %v2991 = vrcp.pop %v2990
      %v2992 = vmul.f32 1.0, %v2991
      %v2993 = vtanh.pop %v2979
      %v2994 = vxor.u32 %v2980, 2147483648
      %v2995 = vmul.f32 %v2994, 1.442695
      %v2996 = vpow.pop %v2995
      %v2997 = vadd.f32 %v2996, 1.0
      %v2998 = vrcp.pop %v2997
      %v2999 = vmul.f32 1.0, %v2998
      %v3001 = vrot.slane %v2639, 4
      %v3003 = vmul.f32 %v2992, %v3001
      %v3004 = vmul.f32 %v2986, %v2993
      %v3005 = vadd.f32 %v3003, %v3004
      %v3006 = vtanh.pop %v3005
      %v3007 = vmul.f32 %v2999, %v3006
      %3009 = vset.pattern.permute.xlu0 0
      %3010 = vperm.xlu0 %3009, %v2818
      %v3011 = vpop.permute.xlu0 %3010
      %v3014 = vrot.slane %v3005, 4
      %v3016 = vmul.f32 %v3011, %v3014
      %v3017 = vsub.f32 1.0, %v2818
      %3019 = vset.pattern.permute.xlu0 0
      %3020 = vperm.xlu0 %3019, %v3017
      %v3021 = vpop.permute.xlu0 %3020
      %v3023 = vmul.f32 %v3021, %v2639
      %v3024 = vadd.f32 %v3016, %v3023
      %v3026 = vrot.slane %v3007, 4
      %v3028 = vmul.f32 %v3011, %v3026
      %v3029 = vmul.f32 %v3021, %v2645
      %v3030 = vadd.f32 %v3028, %v3029
      %3031 = vmatprep.subr.mxu0 %v397
      %3032 = vmatpush1.msra.mxu0 %v396
      %3033 = vmatprep.subr.mxu0 %v401
      %3034 = vmatpush1.msra.mxu0 %v400
      %3035 = vmatprep.subr.mxu0 %v405
      %3036 = vmatpush1.msra.mxu0 %v404
      %3037 = vmatprep.subr.mxu0 %v409
      %3038 = vmatpush1.msra.mxu0 %v408
      %3039 = vmatprep.subr.mxu0 %v413
      %3040 = vmatpush1.msra.mxu0 %v412
      %3041 = vmatprep.subr.mxu0 %v417
      %3042 = vmatpush1.msra.mxu0 %v416
      %3043 = vmatprep.subr.mxu0 %v421
      %3044 = vmatpush1.msra.mxu0 %v420
      %3045 = vmatprep.subr.mxu0 %v425
      %3046 = vmatpush1.msra.mxu0 %v424
      %3047 = vmatprep.subr.mxu0 %v429
      %3048 = vmatpush1.msra.mxu0 %v428
      %3049 = vmatprep.subr.mxu0 %v433
      %3050 = vmatpush1.msra.mxu0 %v432
      %3051 = vmatprep.subr.mxu0 %v437
      %3052 = vmatpush1.msra.mxu0 %v436
      %3053 = vmatprep.subr.mxu0 %v441
      %3054 = vmatpush1.msra.mxu0 %v440
      %3055 = vmatprep.subr.mxu0 %v445
      %3056 = vmatpush1.msra.mxu0 %v444
      %3057 = vmatprep.subr.mxu0 %v449
      %3058 = vmatpush1.msra.mxu0 %v448
      %3059 = vmatprep.subr.mxu0 %v453
      %3060 = vmatpush1.msra.mxu0 %v452
      %3061 = vmatprep.subr.mxu0 %v457
      %3062 = vmatpush1.msra.mxu0 %v456
      %3063 = vmatprep.subr.mxu0 %v461
      %3064 = vmatpush1.msra.mxu0 %v460
      %3065 = vmatprep.subr.mxu0 %v465
      %3066 = vmatpush1.msra.mxu0 %v464
      %3067 = vmatprep.subr.mxu0 %v469
      %3068 = vmatpush1.msra.mxu0 %v468
      %3069 = vmatprep.subr.mxu0 %v473
      %3070 = vmatpush1.msra.mxu0 %v472
      %3071 = vmatprep.subr.mxu0 %v477
      %3072 = vmatpush1.msra.mxu0 %v476
      %3073 = vmatprep.subr.mxu0 %v481
      %3074 = vmatpush1.msra.mxu0 %v480
      %3075 = vmatprep.subr.mxu0 %v485
      %3076 = vmatpush1.msra.mxu0 %v484
      %3077 = vmatprep.subr.mxu0 %v489
      %3078 = vmatpush1.msra.mxu0 %v488
      %3079 = vmatprep.subr.mxu0 %v493
      %3080 = vmatpush1.msra.mxu0 %v492
      %3081 = vmatprep.subr.mxu0 %v497
      %3082 = vmatpush1.msra.mxu0 %v496
      %3083 = vmatprep.subr.mxu0 %v501
      %3084 = vmatpush1.msra.mxu0 %v500
      %3085 = vmatprep.subr.mxu0 %v505
      %3086 = vmatpush1.msra.mxu0 %v504
      %3087 = vmatprep.subr.mxu0 %v509
      %3088 = vmatpush1.msra.mxu0 %v508
      %3089 = vmatprep.subr.mxu0 %v513
      %3090 = vmatpush1.msra.mxu0 %v512
      %3091 = vmatprep.subr.mxu0 %v517
      %3092 = vmatpush1.msra.mxu0 %v516
      %3093 = vmatprep.subr.mxu0 %v521
      %3094 = vmatpush1.msra.mxu0 %v520
      %3095 = vmatprep.mubr.f32.mxu0 %v2817
      %3096 = vmatmul.mubr.f32.gmra.mrb[0].mxu0 %v3030
      %v3097 = vpop.f32.mrb[0].mxu0
      %v3098 = vadd.f32 %v529, %v3097
      %v3099 = vpop.f32.mrb[0].mxu0
      %v3100 = vadd.f32 %v533, %v3099
      %3101 = vdwg.mxu0
      %3102 = vmatprep.subr.mxu0 %v399
      %3103 = vmatpush1.msra.mxu0 %v398
      %3104 = vmatprep.subr.mxu0 %v403
      %3105 = vmatpush1.msra.mxu0 %v402
      %3106 = vmatprep.subr.mxu0 %v407
      %3107 = vmatpush1.msra.mxu0 %v406
      %3108 = vmatprep.subr.mxu0 %v411
      %3109 = vmatpush1.msra.mxu0 %v410
      %3110 = vmatprep.subr.mxu0 %v415
      %3111 = vmatpush1.msra.mxu0 %v414
      %3112 = vmatprep.subr.mxu0 %v419
      %3113 = vmatpush1.msra.mxu0 %v418
      %3114 = vmatprep.subr.mxu0 %v423
      %3115 = vmatpush1.msra.mxu0 %v422
      %3116 = vmatprep.subr.mxu0 %v427
      %3117 = vmatpush1.msra.mxu0 %v426
      %3118 = vmatprep.subr.mxu0 %v431
      %3119 = vmatpush1.msra.mxu0 %v430
      %3120 = vmatprep.subr.mxu0 %v435
      %3121 = vmatpush1.msra.mxu0 %v434
      %3122 = vmatprep.subr.mxu0 %v439
      %3123 = vmatpush1.msra.mxu0 %v438
      %3124 = vmatprep.subr.mxu0 %v443
      %3125 = vmatpush1.msra.mxu0 %v442
      %3126 = vmatprep.subr.mxu0 %v447
      %3127 = vmatpush1.msra.mxu0 %v446
      %3128 = vmatprep.subr.mxu0 %v451
      %3129 = vmatpush1.msra.mxu0 %v450
      %3130 = vmatprep.subr.mxu0 %v455
      %3131 = vmatpush1.msra.mxu0 %v454
      %3132 = vmatprep.subr.mxu0 %v459
      %3133 = vmatpush1.msra.mxu0 %v458
      %3134 = vmatprep.subr.mxu0 %v463
      %3135 = vmatpush1.msra.mxu0 %v462
      %3136 = vmatprep.subr.mxu0 %v467
      %3137 = vmatpush1.msra.mxu0 %v466
      %3138 = vmatprep.subr.mxu0 %v471
      %3139 = vmatpush1.msra.mxu0 %v470
      %3140 = vmatprep.subr.mxu0 %v475
      %3141 = vmatpush1.msra.mxu0 %v474
      %3142 = vmatprep.subr.mxu0 %v479
      %3143 = vmatpush1.msra.mxu0 %v478
      %3144 = vmatprep.subr.mxu0 %v483
      %3145 = vmatpush1.msra.mxu0 %v482
      %3146 = vmatprep.subr.mxu0 %v487
      %3147 = vmatpush1.msra.mxu0 %v486
      %3148 = vmatprep.subr.mxu0 %v491
      %3149 = vmatpush1.msra.mxu0 %v490
      %3150 = vmatprep.subr.mxu0 %v495
      %3151 = vmatpush1.msra.mxu0 %v494
      %3152 = vmatprep.subr.mxu0 %v499
      %3153 = vmatpush1.msra.mxu0 %v498
      %3154 = vmatprep.subr.mxu0 %v503
      %3155 = vmatpush1.msra.mxu0 %v502
      %3156 = vmatprep.subr.mxu0 %v507
      %3157 = vmatpush1.msra.mxu0 %v506
      %3158 = vmatprep.subr.mxu0 %v511
      %3159 = vmatpush1.msra.mxu0 %v510
      %3160 = vmatprep.subr.mxu0 %v515
      %3161 = vmatpush1.msra.mxu0 %v514
      %3162 = vmatprep.subr.mxu0 %v519
      %3163 = vmatpush1.msra.mxu0 %v518
      %3164 = vmatprep.subr.mxu0 %v523
      %3165 = vmatpush1.msra.mxu0 %v522
      %3166 = vmatprep.mubr.f32.mxu0 %v2817
      %3167 = vmatmul.mubr.f32.gmra.mrb[0].mxu0 %v3030
      %v3168 = vpop.f32.mrb[0].mxu0
      %v3169 = vadd.f32 %v537, %v3168
      %v3170 = vpop.f32.mrb[0].mxu0
      %v3171 = vadd.f32 %v541, %v3170
      %3172 = vdwg.mxu0
      %v3173 = vxor.u32 %v3098, 2147483648
      %v3174 = vmul.f32 %v3173, 1.442695
      %v3175 = vpow.pop %v3174
      %v3176 = vadd.f32 %v3175, 1.0
      %v3177 = vrcp.pop %v3176
      %v3178 = vmul.f32 1.0, %v3177
      %v3179 = vxor.u32 %v3100, 2147483648
      %v3180 = vmul.f32 %v3179, 1.442695
      %v3181 = vpow.pop %v3180
      %v3182 = vadd.f32 %v3181, 1.0
      %v3183 = vrcp.pop %v3182
      %v3184 = vmul.f32 1.0, %v3183
      %v3185 = vtanh.pop %v3169
      %v3186 = vxor.u32 %v3171, 2147483648
      %v3187 = vmul.f32 %v3186, 1.442695
      %v3188 = vpow.pop %v3187
      %v3189 = vadd.f32 %v3188, 1.0
      %v3190 = vrcp.pop %v3189
      %v3191 = vmul.f32 1.0, %v3190
      %v3192 = vmul.f32 %v3184, %v2814
      %v3193 = vmul.f32 %v3178, %v3185
      %v3194 = vadd.f32 %v3192, %v3193
      %v3195 = vtanh.pop %v3194
      %v3196 = vmul.f32 %v3191, %v3195
      %v3197 = vmul.f32 %v3011, %v3194
      %v3198 = vmul.f32 %v3021, %v2814
      %v3199 = vadd.f32 %v3197, %v3198
      %v3200 = vmul.f32 %v3011, %v3196
      %v3201 = vmul.f32 %v3021, %v2817
      %v3202 = vadd.f32 %v3200, %v3201
      %v3203 = vld [vmem:[%s2 + $0xe] sm:$0x3]
      %v3204 = vld [vmem:[#allocation2 + $0x20] sm:$0xc0]
      %v3205 = vld [vmem:[#allocation2 + $0x28] sm:$0xc0]
      %v3206 = vld [vmem:[#allocation2 + $0x30] sm:$0xc0]
      %v3207 = vld [vmem:[#allocation2 + $0x38] sm:$0xc0]
      %3208 = vmatprep.subr.mxu0 %v333
      %3209 = vmatpush1.msra.mxu0 %v332
      %3210 = vmatprep.subr.mxu0 %v337
      %3211 = vmatpush1.msra.mxu0 %v336
      %3212 = vmatprep.subr.mxu0 %v341
      %3213 = vmatpush1.msra.mxu0 %v340
      %3214 = vmatprep.subr.mxu0 %v345
      %3215 = vmatpush1.msra.mxu0 %v344
      %3216 = vmatprep.subr.mxu0 %v349
      %3217 = vmatpush1.msra.mxu0 %v348
      %3218 = vmatprep.subr.mxu0 %v353
      %3219 = vmatpush1.msra.mxu0 %v352
      %3220 = vmatprep.subr.mxu0 %v357
      %3221 = vmatpush1.msra.mxu0 %v356
      %3222 = vmatprep.subr.mxu0 %v361
      %3223 = vmatpush1.msra.mxu0 %v360
      %3224 = vmatprep.subr.mxu0 %v365
      %3225 = vmatpush1.msra.mxu0 %v364
      %3226 = vmatprep.subr.mxu0 %v369
      %3227 = vmatpush1.msra.mxu0 %v368
      %3228 = vmatprep.subr.mxu0 %v373
      %3229 = vmatpush1.msra.mxu0 %v372
      %3230 = vmatprep.subr.mxu0 %v377
      %3231 = vmatpush1.msra.mxu0 %v376
      %3232 = vmatprep.subr.mxu0 %v381
      %3233 = vmatpush1.msra.mxu0 %v380
      %3234 = vmatprep.subr.mxu0 %v385
      %3235 = vmatpush1.msra.mxu0 %v384
      %3236 = vmatprep.subr.mxu0 %v389
      %3237 = vmatpush1.msra.mxu0 %v388
      %3238 = vmatprep.subr.mxu0 %v393
      %3239 = vmatpush1.msra.mxu0 %v392
      %3240 = vmatprep.subr.mxu0 0.0
      %3241 = vmatpush1.msra.mxu0 0.0
      %3242 = vmatprep.subr.mxu0 0.0
      %3243 = vmatpush1.msra.mxu0 0.0
      %3244 = vmatprep.subr.mxu0 0.0
      %3245 = vmatpush1.msra.mxu0 0.0
      %3246 = vmatprep.subr.mxu0 0.0
      %3247 = vmatpush1.msra.mxu0 0.0
      %3248 = vmatprep.subr.mxu0 0.0
      %3249 = vmatpush1.msra.mxu0 0.0
      %3250 = vmatprep.subr.mxu0 0.0
      %3251 = vmatpush1.msra.mxu0 0.0
      %3252 = vmatprep.subr.mxu0 0.0
      %3253 = vmatpush1.msra.mxu0 0.0
      %3254 = vmatprep.subr.mxu0 0.0
      %3255 = vmatpush1.msra.mxu0 0.0
      %3256 = vmatprep.subr.mxu0 0.0
      %3257 = vmatpush1.msra.mxu0 0.0
      %3258 = vmatprep.subr.mxu0 0.0
      %3259 = vmatpush1.msra.mxu0 0.0
      %3260 = vmatprep.subr.mxu0 0.0
      %3261 = vmatpush1.msra.mxu0 0.0
      %3262 = vmatprep.subr.mxu0 0.0
      %3263 = vmatpush1.msra.mxu0 0.0
      %3264 = vmatprep.subr.mxu0 0.0
      %3265 = vmatpush1.msra.mxu0 0.0
      %3266 = vmatprep.subr.mxu0 0.0
      %3267 = vmatpush1.msra.mxu0 0.0
      %3268 = vmatprep.subr.mxu0 0.0
      %3269 = vmatpush1.msra.mxu0 0.0
      %3270 = vmatprep.subr.mxu0 0.0
      %3271 = vmatpush1.msra.mxu0 0.0
      %3272 = vmatprep.mubr.f32.mxu0 0.0
      %3273 = vmatmul.mubr.f32.gmra.mrb[0].mxu0 %v3030
      %v3274 = vpop.f32.mrb[0].mxu0
      %v3275 = vadd.f32 0.0, %v3274
      %v3276 = vpop.f32.mrb[0].mxu0
      %v3277 = vadd.f32 0.0, %v3276
      %3278 = vdwg.mxu0
      %3279 = vmatprep.subr.mxu0 %v335
      %3280 = vmatpush1.msra.mxu0 %v334
      %3281 = vmatprep.subr.mxu0 %v339
      %3282 = vmatpush1.msra.mxu0 %v338
      %3283 = vmatprep.subr.mxu0 %v343
      %3284 = vmatpush1.msra.mxu0 %v342
      %3285 = vmatprep.subr.mxu0 %v347
      %3286 = vmatpush1.msra.mxu0 %v346
      %3287 = vmatprep.subr.mxu0 %v351
      %3288 = vmatpush1.msra.mxu0 %v350
      %3289 = vmatprep.subr.mxu0 %v355
      %3290 = vmatpush1.msra.mxu0 %v354
      %3291 = vmatprep.subr.mxu0 %v359
      %3292 = vmatpush1.msra.mxu0 %v358
      %3293 = vmatprep.subr.mxu0 %v363
      %3294 = vmatpush1.msra.mxu0 %v362
      %3295 = vmatprep.subr.mxu0 %v367
      %3296 = vmatpush1.msra.mxu0 %v366
      %3297 = vmatprep.subr.mxu0 %v371
      %3298 = vmatpush1.msra.mxu0 %v370
      %3299 = vmatprep.subr.mxu0 %v375
      %3300 = vmatpush1.msra.mxu0 %v374
      %3301 = vmatprep.subr.mxu0 %v379
      %3302 = vmatpush1.msra.mxu0 %v378
      %3303 = vmatprep.subr.mxu0 %v383
      %3304 = vmatpush1.msra.mxu0 %v382
      %3305 = vmatprep.subr.mxu0 %v387
      %3306 = vmatpush1.msra.mxu0 %v386
      %3307 = vmatprep.subr.mxu0 %v391
      %3308 = vmatpush1.msra.mxu0 %v390
      %3309 = vmatprep.subr.mxu0 %v395
      %3310 = vmatpush1.msra.mxu0 %v394
      %3311 = vmatprep.subr.mxu0 0.0
      %3312 = vmatpush1.msra.mxu0 0.0
      %3313 = vmatprep.subr.mxu0 0.0
      %3314 = vmatpush1.msra.mxu0 0.0
      %3315 = vmatprep.subr.mxu0 0.0
      %3316 = vmatpush1.msra.mxu0 0.0
      %3317 = vmatprep.subr.mxu0 0.0
      %3318 = vmatpush1.msra.mxu0 0.0
      %3319 = vmatprep.subr.mxu0 0.0
      %3320 = vmatpush1.msra.mxu0 0.0
      %3321 = vmatprep.subr.mxu0 0.0
      %3322 = vmatpush1.msra.mxu0 0.0
      %3323 = vmatprep.subr.mxu0 0.0
      %3324 = vmatpush1.msra.mxu0 0.0
      %3325 = vmatprep.subr.mxu0 0.0
      %3326 = vmatpush1.msra.mxu0 0.0
      %3327 = vmatprep.subr.mxu0 0.0
      %3328 = vmatpush1.msra.mxu0 0.0
      %3329 = vmatprep.subr.mxu0 0.0
      %3330 = vmatpush1.msra.mxu0 0.0
      %3331 = vmatprep.subr.mxu0 0.0
      %3332 = vmatpush1.msra.mxu0 0.0
      %3333 = vmatprep.subr.mxu0 0.0
      %3334 = vmatpush1.msra.mxu0 0.0
      %3335 = vmatprep.subr.mxu0 0.0
      %3336 = vmatpush1.msra.mxu0 0.0
      %3337 = vmatprep.subr.mxu0 0.0
      %3338 = vmatpush1.msra.mxu0 0.0
      %3339 = vmatprep.subr.mxu0 0.0
      %3340 = vmatpush1.msra.mxu0 0.0
      %3341 = vmatprep.subr.mxu0 0.0
      %3342 = vmatpush1.msra.mxu0 0.0
      %3343 = vmatprep.mubr.f32.mxu0 0.0
      %3344 = vmatmul.mubr.f32.gmra.mrb[0].mxu0 %v3030
      %v3345 = vpop.f32.mrb[0].mxu0
      %v3346 = vadd.f32 0.0, %v3345
      %v3347 = vpop.f32.mrb[0].mxu0
      %v3348 = vadd.f32 0.0, %v3347
      %3349 = vdwg.mxu0
      %v3354 = vrot.slane %v3275, 2
      %v3355 = vrot.slane %v3277, 2
      %v3356 = vrot.slane %v3346, 2
      %v3357 = vrot.slane %v3348, 2
      %v3362 = vadd.f32 %v3204, %v3354
      %v3363 = vadd.f32 %v3205, %v3355
      %v3364 = vadd.f32 %v3206, %v3356
      %v3365 = vadd.f32 %v3207, %v3357
      %v3366 = vxor.u32 %v3362, 2147483648
      %v3367 = vmul.f32 %v3366, 1.442695
      %v3368 = vpow.pop %v3367
      %v3369 = vadd.f32 %v3368, 1.0
      %v3370 = vrcp.pop %v3369
      %v3371 = vmul.f32 1.0, %v3370
      %v3372 = vxor.u32 %v3363, 2147483648
      %v3373 = vmul.f32 %v3372, 1.442695
      %v3374 = vpow.pop %v3373
      %v3375 = vadd.f32 %v3374, 1.0
      %v3376 = vrcp.pop %v3375
      %v3377 = vmul.f32 1.0, %v3376
      %v3378 = vtanh.pop %v3364
      %v3379 = vxor.u32 %v3365, 2147483648
      %v3380 = vmul.f32 %v3379, 1.442695
      %v3381 = vpow.pop %v3380
      %v3382 = vadd.f32 %v3381, 1.0
      %v3383 = vrcp.pop %v3382
      %v3384 = vmul.f32 1.0, %v3383
      %v3386 = vrot.slane %v3024, 2
      %v3388 = vmul.f32 %v3377, %v3386
      %v3389 = vmul.f32 %v3371, %v3378
      %v3390 = vadd.f32 %v3388, %v3389
      %v3391 = vtanh.pop %v3390
      %v3392 = vmul.f32 %v3384, %v3391
      %3394 = vset.pattern.permute.xlu0 0
      %3395 = vperm.xlu0 %3394, %v3203
      %v3396 = vpop.permute.xlu0 %3395
      %v3399 = vrot.slane %v3390, 6
      %v3401 = vmul.f32 %v3396, %v3399
      %v3402 = vsub.f32 1.0, %v3203
      %3404 = vset.pattern.permute.xlu0 0
      %3405 = vperm.xlu0 %3404, %v3402
      %v3406 = vpop.permute.xlu0 %3405
      %v3408 = vmul.f32 %v3406, %v3024
      %v3409 = vadd.f32 %v3401, %v3408
      %v3411 = vrot.slane %v3392, 6
      %v3413 = vmul.f32 %v3396, %v3411
      %v3414 = vmul.f32 %v3406, %v3030
      %v3415 = vadd.f32 %v3413, %v3414
      %3416 = vmatprep.subr.mxu0 %v397
      %3417 = vmatpush1.msra.mxu0 %v396
      %3418 = vmatprep.subr.mxu0 %v401
      %3419 = vmatpush1.msra.mxu0 %v400
      %3420 = vmatprep.subr.mxu0 %v405
      %3421 = vmatpush1.msra.mxu0 %v404
      %3422 = vmatprep.subr.mxu0 %v409
      %3423 = vmatpush1.msra.mxu0 %v408
      %3424 = vmatprep.subr.mxu0 %v413
      %3425 = vmatpush1.msra.mxu0 %v412
      %3426 = vmatprep.subr.mxu0 %v417
      %3427 = vmatpush1.msra.mxu0 %v416
      %3428 = vmatprep.subr.mxu0 %v421
      %3429 = vmatpush1.msra.mxu0 %v420
      %3430 = vmatprep.subr.mxu0 %v425
      %3431 = vmatpush1.msra.mxu0 %v424
      %3432 = vmatprep.subr.mxu0 %v429
      %3433 = vmatpush1.msra.mxu0 %v428
      %3434 = vmatprep.subr.mxu0 %v433
      %3435 = vmatpush1.msra.mxu0 %v432
      %3436 = vmatprep.subr.mxu0 %v437
      %3437 = vmatpush1.msra.mxu0 %v436
      %3438 = vmatprep.subr.mxu0 %v441
      %3439 = vmatpush1.msra.mxu0 %v440
      %3440 = vmatprep.subr.mxu0 %v445
      %3441 = vmatpush1.msra.mxu0 %v444
      %3442 = vmatprep.subr.mxu0 %v449
      %3443 = vmatpush1.msra.mxu0 %v448
      %3444 = vmatprep.subr.mxu0 %v453
      %3445 = vmatpush1.msra.mxu0 %v452
      %3446 = vmatprep.subr.mxu0 %v457
      %3447 = vmatpush1.msra.mxu0 %v456
      %3448 = vmatprep.subr.mxu0 %v461
      %3449 = vmatpush1.msra.mxu0 %v460
      %3450 = vmatprep.subr.mxu0 %v465
      %3451 = vmatpush1.msra.mxu0 %v464
      %3452 = vmatprep.subr.mxu0 %v469
      %3453 = vmatpush1.msra.mxu0 %v468
      %3454 = vmatprep.subr.mxu0 %v473
      %3455 = vmatpush1.msra.mxu0 %v472
      %3456 = vmatprep.subr.mxu0 %v477
      %3457 = vmatpush1.msra.mxu0 %v476
      %3458 = vmatprep.subr.mxu0 %v481
      %3459 = vmatpush1.msra.mxu0 %v480
      %3460 = vmatprep.subr.mxu0 %v485
      %3461 = vmatpush1.msra.mxu0 %v484
      %3462 = vmatprep.subr.mxu0 %v489
      %3463 = vmatpush1.msra.mxu0 %v488
      %3464 = vmatprep.subr.mxu0 %v493
      %3465 = vmatpush1.msra.mxu0 %v492
      %3466 = vmatprep.subr.mxu0 %v497
      %3467 = vmatpush1.msra.mxu0 %v496
      %3468 = vmatprep.subr.mxu0 %v501
      %3469 = vmatpush1.msra.mxu0 %v500
      %3470 = vmatprep.subr.mxu0 %v505
      %3471 = vmatpush1.msra.mxu0 %v504
      %3472 = vmatprep.subr.mxu0 %v509
      %3473 = vmatpush1.msra.mxu0 %v508
      %3474 = vmatprep.subr.mxu0 %v513
      %3475 = vmatpush1.msra.mxu0 %v512
      %3476 = vmatprep.subr.mxu0 %v517
      %3477 = vmatpush1.msra.mxu0 %v516
      %3478 = vmatprep.subr.mxu0 %v521
      %3479 = vmatpush1.msra.mxu0 %v520
      %3480 = vmatprep.mubr.f32.mxu0 %v3202
      %3481 = vmatmul.mubr.f32.gmra.mrb[0].mxu0 %v3415
      %v3482 = vpop.f32.mrb[0].mxu0
      %v3483 = vadd.f32 %v529, %v3482
      %v3484 = vpop.f32.mrb[0].mxu0
      %v3485 = vadd.f32 %v533, %v3484
      %3486 = vdwg.mxu0
      %3487 = vmatprep.subr.mxu0 %v399
      %3488 = vmatpush1.msra.mxu0 %v398
      %3489 = vmatprep.subr.mxu0 %v403
      %3490 = vmatpush1.msra.mxu0 %v402
      %3491 = vmatprep.subr.mxu0 %v407
      %3492 = vmatpush1.msra.mxu0 %v406
      %3493 = vmatprep.subr.mxu0 %v411
      %3494 = vmatpush1.msra.mxu0 %v410
      %3495 = vmatprep.subr.mxu0 %v415
      %3496 = vmatpush1.msra.mxu0 %v414
      %3497 = vmatprep.subr.mxu0 %v419
      %3498 = vmatpush1.msra.mxu0 %v418
      %3499 = vmatprep.subr.mxu0 %v423
      %3500 = vmatpush1.msra.mxu0 %v422
      %3501 = vmatprep.subr.mxu0 %v427
      %3502 = vmatpush1.msra.mxu0 %v426
      %3503 = vmatprep.subr.mxu0 %v431
      %3504 = vmatpush1.msra.mxu0 %v430
      %3505 = vmatprep.subr.mxu0 %v435
      %3506 = vmatpush1.msra.mxu0 %v434
      %3507 = vmatprep.subr.mxu0 %v439
      %3508 = vmatpush1.msra.mxu0 %v438
      %3509 = vmatprep.subr.mxu0 %v443
      %3510 = vmatpush1.msra.mxu0 %v442
      %3511 = vmatprep.subr.mxu0 %v447
      %3512 = vmatpush1.msra.mxu0 %v446
      %3513 = vmatprep.subr.mxu0 %v451
      %3514 = vmatpush1.msra.mxu0 %v450
      %3515 = vmatprep.subr.mxu0 %v455
      %3516 = vmatpush1.msra.mxu0 %v454
      %3517 = vmatprep.subr.mxu0 %v459
      %3518 = vmatpush1.msra.mxu0 %v458
      %3519 = vmatprep.subr.mxu0 %v463
      %3520 = vmatpush1.msra.mxu0 %v462
      %3521 = vmatprep.subr.mxu0 %v467
      %3522 = vmatpush1.msra.mxu0 %v466
      %3523 = vmatprep.subr.mxu0 %v471
      %3524 = vmatpush1.msra.mxu0 %v470
      %3525 = vmatprep.subr.mxu0 %v475
      %3526 = vmatpush1.msra.mxu0 %v474
      %3527 = vmatprep.subr.mxu0 %v479
      %3528 = vmatpush1.msra.mxu0 %v478
      %3529 = vmatprep.subr.mxu0 %v483
      %3530 = vmatpush1.msra.mxu0 %v482
      %3531 = vmatprep.subr.mxu0 %v487
      %3532 = vmatpush1.msra.mxu0 %v486
      %3533 = vmatprep.subr.mxu0 %v491
      %3534 = vmatpush1.msra.mxu0 %v490
      %3535 = vmatprep.subr.mxu0 %v495
      %3536 = vmatpush1.msra.mxu0 %v494
      %3537 = vmatprep.subr.mxu0 %v499
      %3538 = vmatpush1.msra.mxu0 %v498
      %3539 = vmatprep.subr.mxu0 %v503
      %3540 = vmatpush1.msra.mxu0 %v502
      %3541 = vmatprep.subr.mxu0 %v507
      %3542 = vmatpush1.msra.mxu0 %v506
      %3543 = vmatprep.subr.mxu0 %v511
      %3544 = vmatpush1.msra.mxu0 %v510
      %3545 = vmatprep.subr.mxu0 %v515
      %3546 = vmatpush1.msra.mxu0 %v514
      %3547 = vmatprep.subr.mxu0 %v519
      %3548 = vmatpush1.msra.mxu0 %v518
      %3549 = vmatprep.subr.mxu0 %v523
      %3550 = vmatpush1.msra.mxu0 %v522
      %3551 = vmatprep.mubr.f32.mxu0 %v3202
      %3552 = vmatmul.mubr.f32.gmra.mrb[0].mxu0 %v3415
      %v3553 = vpop.f32.mrb[0].mxu0
      %v3554 = vadd.f32 %v537, %v3553
      %v3555 = vpop.f32.mrb[0].mxu0
      %v3556 = vadd.f32 %v541, %v3555
      %3557 = vdwg.mxu0
      %v3558 = vxor.u32 %v3483, 2147483648
      %v3559 = vmul.f32 %v3558, 1.442695
      %v3560 = vpow.pop %v3559
      %v3561 = vadd.f32 %v3560, 1.0
      %v3562 = vrcp.pop %v3561
      %v3563 = vmul.f32 1.0, %v3562
      %v3564 = vxor.u32 %v3485, 2147483648
      %v3565 = vmul.f32 %v3564, 1.442695
      %v3566 = vpow.pop %v3565
      %v3567 = vadd.f32 %v3566, 1.0
      %v3568 = vrcp.pop %v3567
      %v3569 = vmul.f32 1.0, %v3568
      %v3570 = vtanh.pop %v3554
      %v3571 = vxor.u32 %v3556, 2147483648
      %v3572 = vmul.f32 %v3571, 1.442695
      %v3573 = vpow.pop %v3572
      %v3574 = vadd.f32 %v3573, 1.0
      %v3575 = vrcp.pop %v3574
      %v3576 = vmul.f32 1.0, %v3575
      %v3577 = vmul.f32 %v3569, %v3199
      %v3578 = vmul.f32 %v3563, %v3570
      %v3579 = vadd.f32 %v3577, %v3578
      %v3580 = vtanh.pop %v3579
      %v3581 = vmul.f32 %v3576, %v3580
      %v3582 = vmul.f32 %v3396, %v3579
      %v3583 = vmul.f32 %v3406, %v3199
      %v3584 = vadd.f32 %v3582, %v3583
      %v3585 = vmul.f32 %v3396, %v3581
      %v3586 = vmul.f32 %v3406, %v3202
      %v3587 = vadd.f32 %v3585, %v3586
      %3588 = vst [vmem:[#allocation3] sm:$0x3] %v3415
      %3589 = vst [vmem:[#allocation4] sm:$0x3] %v3409
      %3590 = vst [vmem:[#allocation5] sm:$0x3] %v3587
      %3591 = vst [vmem:[#allocation6] sm:$0x3] %v3584
    $region73: #{tpu_custom_call.1} parent=1 // pred_fallthru
      _
    // Predicated region
    $region74: #{tpu_custom_call.1} parent=1 // pred_check
      %p3592 = pneg %p109
    $region75: #{tpu_custom_call.1} parent=1 // pred_check_branch
      %3594 = sbr.rel (%p3592) target = $region77
    $region76: #{tpu_custom_call.1} parent=1 // pred_region
      %v3595 = vld [vmem:[#allocation5] sm:$0x3]
      %v3596 = vld [vmem:[#allocation15] sm:$0xff]
      %v3597 = vld [vmem:[#allocation15 + $0x8] sm:$0xff]
      %v3598 = vld [vmem:[#allocation15 + $0x10] sm:$0xff]
      %v3599 = vld [vmem:[#allocation15 + $0x18] sm:$0xff]
      %v3600 = vld [vmem:[#allocation15 + $0x20] sm:$0xff]
      %v3601 = vld [vmem:[#allocation15 + $0x28] sm:$0xff]
      %v3602 = vld [vmem:[#allocation15 + $0x30] sm:$0xff]
      %v3603 = vld [vmem:[#allocation15 + $0x38] sm:$0xff]
      %v3604 = vld [vmem:[#allocation15 + $0x40] sm:$0xff]
      %v3605 = vld [vmem:[#allocation15 + $0x48] sm:$0xff]
      %v3606 = vld [vmem:[#allocation15 + $0x50] sm:$0xff]
      %v3607 = vld [vmem:[#allocation15 + $0x58] sm:$0xff]
      %v3608 = vld [vmem:[#allocation15 + $0x60] sm:$0xff]
      %v3609 = vld [vmem:[#allocation15 + $0x68] sm:$0xff]
      %v3610 = vld [vmem:[#allocation15 + $0x70] sm:$0xff]
      %v3611 = vld [vmem:[#allocation15 + $0x78] sm:$0xff]
      %v3612 = vld [vmem:[%s9] sm:$0x1]
      %v3614 = vlaneseq
      %v3615 = vshrl.u32 %v3614, 7
      %v3616 = vsub.s32 0, %v3615
      %v3617 = vrot.slane %v3612, %v3616
      %3619 = vmatprep.subr.mxu0 0.0
      %3620 = vmatpush1.msra.mxu0 %v3596
      %3621 = vmatprep.subr.mxu0 0.0
      %3622 = vmatpush1.msra.mxu0 %v3597
      %3623 = vmatprep.subr.mxu0 0.0
      %3624 = vmatpush1.msra.mxu0 %v3598
      %3625 = vmatprep.subr.mxu0 0.0
      %3626 = vmatpush1.msra.mxu0 %v3599
      %3627 = vmatprep.subr.mxu0 0.0
      %3628 = vmatpush1.msra.mxu0 %v3600
      %3629 = vmatprep.subr.mxu0 0.0
      %3630 = vmatpush1.msra.mxu0 %v3601
      %3631 = vmatprep.subr.mxu0 0.0
      %3632 = vmatpush1.msra.mxu0 %v3602
      %3633 = vmatprep.subr.mxu0 0.0
      %3634 = vmatpush1.msra.mxu0 %v3603
      %3635 = vmatprep.subr.mxu0 0.0
      %3636 = vmatpush1.msra.mxu0 %v3604
      %3637 = vmatprep.subr.mxu0 0.0
      %3638 = vmatpush1.msra.mxu0 %v3605
      %3639 = vmatprep.subr.mxu0 0.0
      %3640 = vmatpush1.msra.mxu0 %v3606
      %3641 = vmatprep.subr.mxu0 0.0
      %3642 = vmatpush1.msra.mxu0 %v3607
      %3643 = vmatprep.subr.mxu0 0.0
      %3644 = vmatpush1.msra.mxu0 %v3608
      %3645 = vmatprep.subr.mxu0 0.0
      %3646 = vmatpush1.msra.mxu0 %v3609
      %3647 = vmatprep.subr.mxu0 0.0
      %3648 = vmatpush1.msra.mxu0 %v3610
      %3649 = vmatprep.subr.mxu0 0.0
      %3650 = vmatpush1.msra.mxu0 %v3611
      %3651 = vmatprep.subr.mxu0 0.0
      %3652 = vmatpush1.msra.mxu0 0.0
      %3653 = vmatprep.subr.mxu0 0.0
      %3654 = vmatpush1.msra.mxu0 0.0
      %3655 = vmatprep.subr.mxu0 0.0
      %3656 = vmatpush1.msra.mxu0 0.0
      %3657 = vmatprep.subr.mxu0 0.0
      %3658 = vmatpush1.msra.mxu0 0.0
      %3659 = vmatprep.subr.mxu0 0.0
      %3660 = vmatpush1.msra.mxu0 0.0
      %3661 = vmatprep.subr.mxu0 0.0
      %3662 = vmatpush1.msra.mxu0 0.0
      %3663 = vmatprep.subr.mxu0 0.0
      %3664 = vmatpush1.msra.mxu0 0.0
      %3665 = vmatprep.subr.mxu0 0.0
      %3666 = vmatpush1.msra.mxu0 0.0
      %3667 = vmatprep.subr.mxu0 0.0
      %3668 = vmatpush1.msra.mxu0 0.0
      %3669 = vmatprep.subr.mxu0 0.0
      %3670 = vmatpush1.msra.mxu0 0.0
      %3671 = vmatprep.subr.mxu0 0.0
      %3672 = vmatpush1.msra.mxu0 0.0
      %3673 = vmatprep.subr.mxu0 0.0
      %3674 = vmatpush1.msra.mxu0 0.0
      %3675 = vmatprep.subr.mxu0 0.0
      %3676 = vmatpush1.msra.mxu0 0.0
      %3677 = vmatprep.subr.mxu0 0.0
      %3678 = vmatpush1.msra.mxu0 0.0
      %3679 = vmatprep.subr.mxu0 0.0
      %3680 = vmatpush1.msra.mxu0 0.0
      %3681 = vmatprep.subr.mxu0 0.0
      %3682 = vmatpush1.msra.mxu0 0.0
      %3683 = vmatprep.mubr.f32.mxu0 0.0
      %3684 = vmatmul.mubr.f32.gmra.mrb[0].mxu0 %v3595
      %v3685 = vpop.f32.mrb[0].mxu0
      %v3686 = vadd.f32 %v3617, %v3685
      %v3687 = vpop.f32.mrb[0].mxu0
      %3688 = vdwg.mxu0
      %v3689 = vmax.f32 %v3686, 0.0
      %v3690 = vld [vmem:[#allocation17] sm:$0xff]
      %v3691 = vld [vmem:[#allocation17 + $0x8] sm:$0xff]
      %v3692 = vld [vmem:[#allocation17 + $0x10] sm:$0xff]
      %v3693 = vld [vmem:[#allocation17 + $0x18] sm:$0xff]
      %v3694 = vld [vmem:[#allocation17 + $0x20] sm:$0xff]
      %v3695 = vld [vmem:[#allocation17 + $0x28] sm:$0xff]
      %v3696 = vld [vmem:[#allocation17 + $0x30] sm:$0xff]
      %v3697 = vld [vmem:[#allocation17 + $0x38] sm:$0xff]
      %v3698 = vld [vmem:[#allocation17 + $0x40] sm:$0xff]
      %v3699 = vld [vmem:[#allocation17 + $0x48] sm:$0xff]
      %v3700 = vld [vmem:[#allocation17 + $0x50] sm:$0xff]
      %v3701 = vld [vmem:[#allocation17 + $0x58] sm:$0xff]
      %v3702 = vld [vmem:[#allocation17 + $0x60] sm:$0xff]
      %v3703 = vld [vmem:[#allocation17 + $0x68] sm:$0xff]
      %v3704 = vld [vmem:[#allocation17 + $0x70] sm:$0xff]
      %v3705 = vld [vmem:[#allocation17 + $0x78] sm:$0xff]
      %v3706 = vld [vmem:[%s11] sm:$0x1]
      %v3708 = vlaneseq
      %v3709 = vshrl.u32 %v3708, 7
      %v3710 = vsub.s32 0, %v3709
      %v3711 = vrot.slane %v3706, %v3710
      %3713 = vmatprep.subr.mxu0 0.0
      %3714 = vmatpush1.msra.mxu0 %v3690
      %3715 = vmatprep.subr.mxu0 0.0
      %3716 = vmatpush1.msra.mxu0 %v3691
      %3717 = vmatprep.subr.mxu0 0.0
      %3718 = vmatpush1.msra.mxu0 %v3692
      %3719 = vmatprep.subr.mxu0 0.0
      %3720 = vmatpush1.msra.mxu0 %v3693
      %3721 = vmatprep.subr.mxu0 0.0
      %3722 = vmatpush1.msra.mxu0 %v3694
      %3723 = vmatprep.subr.mxu0 0.0
      %3724 = vmatpush1.msra.mxu0 %v3695
      %3725 = vmatprep.subr.mxu0 0.0
      %3726 = vmatpush1.msra.mxu0 %v3696
      %3727 = vmatprep.subr.mxu0 0.0
      %3728 = vmatpush1.msra.mxu0 %v3697
      %3729 = vmatprep.subr.mxu0 0.0
      %3730 = vmatpush1.msra.mxu0 %v3698
      %3731 = vmatprep.subr.mxu0 0.0
      %3732 = vmatpush1.msra.mxu0 %v3699
      %3733 = vmatprep.subr.mxu0 0.0
      %3734 = vmatpush1.msra.mxu0 %v3700
      %3735 = vmatprep.subr.mxu0 0.0
      %3736 = vmatpush1.msra.mxu0 %v3701
      %3737 = vmatprep.subr.mxu0 0.0
      %3738 = vmatpush1.msra.mxu0 %v3702
      %3739 = vmatprep.subr.mxu0 0.0
      %3740 = vmatpush1.msra.mxu0 %v3703
      %3741 = vmatprep.subr.mxu0 0.0
      %3742 = vmatpush1.msra.mxu0 %v3704
      %3743 = vmatprep.subr.mxu0 0.0
      %3744 = vmatpush1.msra.mxu0 %v3705
      %3745 = vmatprep.subr.mxu0 0.0
      %3746 = vmatpush1.msra.mxu0 0.0
      %3747 = vmatprep.subr.mxu0 0.0
      %3748 = vmatpush1.msra.mxu0 0.0
      %3749 = vmatprep.subr.mxu0 0.0
      %3750 = vmatpush1.msra.mxu0 0.0
      %3751 = vmatprep.subr.mxu0 0.0
      %3752 = vmatpush1.msra.mxu0 0.0
      %3753 = vmatprep.subr.mxu0 0.0
      %3754 = vmatpush1.msra.mxu0 0.0
      %3755 = vmatprep.subr.mxu0 0.0
      %3756 = vmatpush1.msra.mxu0 0.0
      %3757 = vmatprep.subr.mxu0 0.0
      %3758 = vmatpush1.msra.mxu0 0.0
      %3759 = vmatprep.subr.mxu0 0.0
      %3760 = vmatpush1.msra.mxu0 0.0
      %3761 = vmatprep.subr.mxu0 0.0
      %3762 = vmatpush1.msra.mxu0 0.0
      %3763 = vmatprep.subr.mxu0 0.0
      %3764 = vmatpush1.msra.mxu0 0.0
      %3765 = vmatprep.subr.mxu0 0.0
      %3766 = vmatpush1.msra.mxu0 0.0
      %3767 = vmatprep.subr.mxu0 0.0
      %3768 = vmatpush1.msra.mxu0 0.0
      %3769 = vmatprep.subr.mxu0 0.0
      %3770 = vmatpush1.msra.mxu0 0.0
      %3771 = vmatprep.subr.mxu0 0.0
      %3772 = vmatpush1.msra.mxu0 0.0
      %3773 = vmatprep.subr.mxu0 0.0
      %3774 = vmatpush1.msra.mxu0 0.0
      %3775 = vmatprep.subr.mxu0 0.0
      %3776 = vmatpush1.msra.mxu0 0.0
      %3777 = vmatprep.mubr.f32.mxu0 0.0
      %3778 = vmatmul.mubr.f32.gmra.mrb[0].mxu0 %v3689
      %v3779 = vpop.f32.mrb[0].mxu0
      %v3780 = vadd.f32 %v3711, %v3779
      %v3781 = vpop.f32.mrb[0].mxu0
      %3782 = vdwg.mxu0
      %3783 = vst [vmem:[#allocation18] sm:$0x3] %v3780
    $region77: #{tpu_custom_call.1} parent=1 // pred_fallthru
      _
    // Predicated region
    $region78: #{tpu_custom_call.1} parent=1 // pred_check
      _
    $region79: #{tpu_custom_call.1} parent=1 // pred_check_branch
      %3785 = sbr.rel (0) target = $region81
    $region80: #{tpu_custom_call.1} parent=1 // pred_region
      %s3787 = ssub.s32 32, 32
      %3788 = vsyncadd [#allocation11], %s3787
      %s3790 = sshll.u32 [#allocation18], 4
      %s3791 = int_to_ptr.vmem [resolvable:$true] %s3790
      %3793 = dma.vmem_to_hbm [thread:$0]  %s3791, 32, %s12, [#allocation11]
    $region81: #{tpu_custom_call.1} parent=1 // pred_fallthru
      _
    // Predicated region
    $region82: #{tpu_custom_call.1} parent=1 // pred_check
      _
    $region83: #{tpu_custom_call.1} parent=1 // pred_check_branch
      %3795 = sbr.rel (0) target = $region85
    $region84: #{tpu_custom_call.1} parent=1 // pred_region
      %3796 = dma.done [#allocation11], 32
    $region85: #{tpu_custom_call.1} parent=1 // pred_fallthru
      _
    %3797 = vsyncpa [#allocation10], 1
    %3798 = vsyncpa [#allocation13], 1
    %3799 = vsyncpa [#allocation16], 1
    %3800 = vsyncpa [#allocation11], 1

</llo_original>
